<compile_context>
chip_gen: v7x
topology: tpu7x:2x2x1
jax: 0.10.0
libtpu: 0.0.40
codegen_flags: <defaults>
</compile_context>

<pallas_src>
import numpy as np

import jax
import jax.numpy as jnp
from jax import lax
from jax.experimental import pallas as pl
from jax.experimental.pallas import tpu as pltpu


# --------------------------------------------------------------------------
# Host-side helpers (all tiny, become compile-time constants under jit)
# --------------------------------------------------------------------------
def bilinear_matrix(n_in, n_out):
    """U [n_out, n_in]: torch bilinear interpolation, align_corners=True."""
    if n_in == 1:
        return np.ones((n_out, 1), np.float32)
    src = np.arange(n_out, dtype=np.float64) * (n_in - 1) / (n_out - 1)
    i0 = np.clip(np.floor(src).astype(np.int64), 0, n_in - 2)
    frac = (src - i0).astype(np.float32)
    u = np.zeros((n_out, n_in), np.float32)
    rows = np.arange(n_out)
    u[rows, i0] += 1.0 - frac
    u[rows, i0 + 1] += frac
    return u


def upsample_pad_matrix(H, W, H2, W2):
    """[H*W, H2*W2] matrix: flat(x1) @ M == flat(pad_to(H2,W2)(upsample2x(x1)))."""
    h_up, w_up = 2 * H, 2 * W
    assert H2 >= h_up and W2 >= w_up, "cropping (negative diff) not supported"
    uh = np.zeros((H2, H), np.float32)
    uw = np.zeros((W2, W), np.float32)
    dy0 = (H2 - h_up) // 2
    dx0 = (W2 - w_up) // 2
    uh[dy0:dy0 + h_up] = bilinear_matrix(H, h_up)
    uw[dx0:dx0 + w_up] = bilinear_matrix(W, w_up)
    return np.ascontiguousarray(np.kron(uh, uw).T)          # [H*W, H2*W2]


def _fold_bn(gamma, beta, rmean, rvar, eps=1e-5):
    scale = gamma / jnp.sqrt(rvar + eps)
    shift = beta - rmean * scale
    return scale.astype(jnp.float32), shift.astype(jnp.float32)


def init_raw_params(key, in_channels, out_channels):
    """Raw PyTorch-layout parameters (Conv OIHW weights + BN running stats)."""
    mid = in_channels // 2
    ks = jax.random.split(key, 10)
    w1 = 0.1 * jax.random.normal(ks[0], (mid, in_channels, 3, 3), jnp.float32)
    w2 = 0.1 * jax.random.normal(ks[1], (out_channels, mid, 3, 3), jnp.float32)
    g1 = 1.0 + 0.1 * jax.random.normal(ks[2], (mid,), jnp.float32)
    b1 = 0.1 * jax.random.normal(ks[3], (mid,), jnp.float32)
    m1 = 0.1 * jax.random.normal(ks[4], (mid,), jnp.float32)
    v1 = 1.0 + 0.1 * jnp.abs(jax.random.normal(ks[5], (mid,), jnp.float32))
    g2 = 1.0 + 0.1 * jax.random.normal(ks[6], (out_channels,), jnp.float32)
    b2 = 0.1 * jax.random.normal(ks[7], (out_channels,), jnp.float32)
    m2 = 0.1 * jax.random.normal(ks[8], (out_channels,), jnp.float32)
    v2 = 1.0 + 0.1 * jnp.abs(jax.random.normal(ks[9], (out_channels,), jnp.float32))
    return dict(w1=w1, w2=w2, bn1=(g1, b1, m1, v1), bn2=(g2, b2, m2, v2))


def prepare_kernel_params(raw, eps=1e-5):
    """Fold BN scale into bf16 [Cout, 9*Cin] weight matrices; keep shifts f32."""
    w1, w2 = raw["w1"], raw["w2"]
    mid, cin = w1.shape[0], w1.shape[1]
    cout = w2.shape[0]
    s1, sh1 = _fold_bn(*raw["bn1"], eps)
    s2, sh2 = _fold_bn(*raw["bn2"], eps)
    # Column index = (dy*3+dx)*Cin + ci  (tap-major, matches in-kernel im2col).
    w1_mat = (jnp.transpose(w1, (0, 2, 3, 1)).reshape(mid, 9 * cin)
              * s1[:, None]).astype(jnp.bfloat16)
    w2_mat = (jnp.transpose(w2, (0, 2, 3, 1)).reshape(cout, 9 * mid)
              * s2[:, None]).astype(jnp.bfloat16)
    return dict(w1=w1_mat, shift1=sh1.reshape(mid, 1),
                w2=w2_mat, shift2=sh2.reshape(cout, 1))


# --------------------------------------------------------------------------
# Pure-JAX reference (mirrors the kernel's bf16 rounding points) for checking.
# --------------------------------------------------------------------------
def ref_forward(x1, x2, kparams):
    N, C1, H, W = x1.shape
    _, _, H2, W2 = x2.shape
    L = H2 * W2
    f32 = lambda a: a.astype(jnp.float32)
    b16 = lambda a: a.astype(jnp.bfloat16)

    kron = jnp.asarray(upsample_pad_matrix(H, W, H2, W2), jnp.float32)   # [H*W, L]
    x1u = jnp.einsum("ncp,pl->ncl", f32(b16(x1.reshape(N, C1, H * W))),
                     f32(b16(kron)),
                     precision=lax.Precision.HIGHEST).reshape(N, C1, H2, W2)
    x = jnp.concatenate([f32(b16(x2)), f32(b16(x1u))], axis=1)

    def conv_bn_lrelu(x, wmat, shift):
        co = wmat.shape[0]
        ci = x.shape[1]
        w = f32(wmat).reshape(co, 3, 3, ci).transpose(0, 3, 1, 2)        # OIHW
        y = lax.conv_general_dilated(
            x, w, window_strides=(1, 1), padding=((1, 1), (1, 1)),
            dimension_numbers=("NCHW", "OIHW", "NCHW"),
            precision=lax.Precision.HIGHEST)
        y = y + shift.astype(jnp.float32).reshape(1, co, 1, 1)
        return jnp.where(y >= 0, y, 0.2 * y)

    y1 = conv_bn_lrelu(x, kparams["w1"], kparams["shift1"])
    y1 = f32(b16(y1))                                # kernel rounds y1 to bf16
    return conv_bn_lrelu(y1, kparams["w2"], kparams["shift2"])


# --------------------------------------------------------------------------
# Fused `Up` forward: one pallas_call, grid over batch.
# --------------------------------------------------------------------------
@jax.jit
def up_forward(x1, x2, params):
    """x1: [N, C1, H, W], x2: [N, C1, H2, W2] (NCHW) -> [N, Cout, H2, W2]."""
    N, C1, H, W = x1.shape
    Nb, C1b, H2, W2 = x2.shape
    assert Nb == N and C1b == C1
    Cin = 2 * C1
    L = H2 * W2
    Cmid, K1 = params["w1"].shape
    Cout, K2 = params["w2"].shape
    assert K1 == 9 * Cin and K2 == 9 * Cmid

    # Padded-flat row buffer: zeros | image (row-major, length L) | zeros.
    # Data starts at a 128-aligned lane offset O >= W2+1 so every 3x3 tap is a
    # static length-L window and out-of-range rows read zeros.
    O = ((max(W2 + 1, 128) + 127) // 128) * 128
    BUF = O + L + W2 + 1

    # Upsample+pad matrix and the left/right column masks (compile-time consts).
    kronT = jnp.asarray(upsample_pad_matrix(H, W, H2, W2), dtype=jnp.bfloat16)
    col = np.arange(L) % W2
    masks = jnp.asarray(np.stack([(col != 0), (col != W2 - 1)]).astype(np.float32),
                        dtype=jnp.bfloat16)                       # [2, L]

    x1f = x1.reshape(N, C1, H * W).astype(jnp.bfloat16)           # metadata reshape
    x2f = x2.reshape(N, C1, L).astype(jnp.bfloat16)
    w1, sh1 = params["w1"], params["shift1"].astype(jnp.float32)
    w2, sh2 = params["w2"], params["shift2"].astype(jnp.float32)

    def kernel(x1_ref, x2_ref, kT_ref, w1_ref, s1_ref, w2_ref, s2_ref, m_ref,
               o_ref, pad1_ref, pad2_ref, patch1_ref, patch2_ref):

        def zero_halo(pad_ref):
            # Only the halo lanes need zeroing; [O, O+L) is overwritten below.
            # Re-zeroed every step (not just program_id==0) so it stays correct
            # if the "parallel" grid axis is split across TensorCores.
            C = pad_ref.shape[0]
            pad_ref[:, 0:O] = jnp.zeros((C, O), pad_ref.dtype)
            pad_ref[:, O + L:BUF] = jnp.zeros((C, BUF - O - L), pad_ref.dtype)

        def conv3x3_bn_lrelu(pad_ref, patch_ref, wmat, shift):
            # Build im2col patch [9*C, L] from static windows of the flat buffer.
            C = pad_ref.shape[0]
            for dy in range(3):
                for dx in range(3):
                    s = O + (dy - 1) * W2 + (dx - 1)
                    tap = pad_ref[:, s:s + L]                       # [C, L] bf16
                    if dx == 0:                                     # left column wrap
                        tap = tap * m_ref[0:1, :]
                    elif dx == 2:                                   # right column wrap
                        tap = tap * m_ref[1:2, :]
                    t = dy * 3 + dx
                    patch_ref[t * C:(t + 1) * C, :] = tap
            # Single MXU matmul, K = 9*C, lane-dense [Cout, L] result.
            acc = jnp.dot(wmat, patch_ref[...],
                          preferred_element_type=jnp.float32)      # [Co, L] f32
            y = acc + shift                                         # BN (scale folded in w)
            return jnp.maximum(y, 0.2 * y)                          # LeakyReLU(0.2)

        # --- bilinear upsample of x1 (+ pad to x2's HW) as one MXU matmul ---
        x1up = jnp.dot(x1_ref[0], kT_ref[...],
                       preferred_element_type=jnp.float32)          # [C1, L] f32

        # --- implicit concat([x2, x1_up], channel) + zero halo, all in VMEM ---
        zero_halo(pad1_ref)
        pad1_ref[0:C1, O:O + L] = x2_ref[0]
        pad1_ref[C1:Cin, O:O + L] = x1up.astype(jnp.bfloat16)

        y1 = conv3x3_bn_lrelu(pad1_ref, patch1_ref, w1_ref[...], s1_ref[...])

        # --- conv2 input kept in VMEM (no HBM round trip between the convs) ---
        zero_halo(pad2_ref)
        pad2_ref[:, O:O + L] = y1.astype(jnp.bfloat16)

        y2 = conv3x3_bn_lrelu(pad2_ref, patch2_ref, w2_ref[...], s2_ref[...])

        o_ref[0] = y2.astype(o_ref.dtype)                           # [Cout, L] dense store

    out = pl.pallas_call(
        kernel,
        out_shape=jax.ShapeDtypeStruct((N, Cout, L), jnp.float32),
        grid=(N,),
        in_specs=[
            pl.BlockSpec((1, C1, H * W), lambda n: (n, 0, 0)),      # x1 (flat)
            pl.BlockSpec((1, C1, L), lambda n: (n, 0, 0)),          # x2 (flat)
            pl.BlockSpec((H * W, L), lambda n: (0, 0)),             # kron upsample matrix
            pl.BlockSpec((Cmid, 9 * Cin), lambda n: (0, 0)),        # conv1 weights (BN folded)
            pl.BlockSpec((Cmid, 1), lambda n: (0, 0)),              # BN1 shift
            pl.BlockSpec((Cout, 9 * Cmid), lambda n: (0, 0)),       # conv2 weights (BN folded)
            pl.BlockSpec((Cout, 1), lambda n: (0, 0)),              # BN2 shift
            pl.BlockSpec((2, L), lambda n: (0, 0)),                 # column wrap masks
        ],
        out_specs=pl.BlockSpec((1, Cout, L), lambda n: (n, 0, 0)),
        scratch_shapes=[
            pltpu.VMEM((Cin, BUF), jnp.bfloat16),                   # padded-flat conv1 input
            pltpu.VMEM((Cmid, BUF), jnp.bfloat16),                  # padded-flat conv2 input
            pltpu.VMEM((9 * Cin, L), jnp.bfloat16),                 # im2col patch, conv1
            pltpu.VMEM((9 * Cmid, L), jnp.bfloat16),                # im2col patch, conv2
        ],
        compiler_params=pltpu.CompilerParams(
            dimension_semantics=("parallel",)),
    )(x1f, x2f, kronT, w1, sh1, w2, sh2, masks)

    return out.reshape(N, Cout, H2, W2)                             # metadata reshape -> NCHW


if __name__ == "__main__":
    key = jax.random.PRNGKey(0)
    k_x1, k_x2, k_p = jax.random.split(key, 3)

    in_channels, out_channels = 8, 8
    N, H, W = 2, 16, 16
    x1 = jax.random.normal(k_x1, (N, in_channels // 2, H, W), jnp.float32)
    x2 = jax.random.normal(k_x2, (N, in_channels // 2, 2 * H, 2 * W), jnp.float32)

    raw = init_raw_params(k_p, in_channels, out_channels)
    params = prepare_kernel_params(raw)

    y = up_forward(x1, x2, params)
    jax.block_until_ready(y)
    assert y.shape == (N, out_channels, 2 * H, 2 * W), y.shape
    assert jnp.all(jnp.isfinite(y))

    # Correctness check against a pure-JAX reference that mirrors the kernel's
    # bf16 rounding points (only accumulation order differs).
    y_ref = ref_forward(x1, x2, params)
    err = float(jnp.max(jnp.abs(y - y_ref)))
    assert err < 5e-3, f"max abs error vs reference: {err}"

    print("KERNEL_OK")
</pallas_src>

<mosaic_0001>
module attributes {stable_mosaic.version = 11 : i64} {
  func.func @kernel(%arg0: i32, %arg1: memref<1x4x256xbf16, #tpu.memory_space<vmem>>, %arg2: memref<1x4x1024xbf16, #tpu.memory_space<vmem>>, %arg3: memref<256x1024xbf16, #tpu.memory_space<vmem>>, %arg4: memref<4x72xbf16, #tpu.memory_space<vmem>>, %arg5: memref<4x1xf32, #tpu.memory_space<vmem>>, %arg6: memref<8x36xbf16, #tpu.memory_space<vmem>>, %arg7: memref<8x1xf32, #tpu.memory_space<vmem>>, %arg8: memref<2x1024xbf16, #tpu.memory_space<vmem>>, %arg9: memref<1x8x1024xf32, #tpu.memory_space<vmem>>, %arg10: memref<8x1185xbf16, #tpu.memory_space<vmem>>, %arg11: memref<4x1185xbf16, #tpu.memory_space<vmem>>, %arg12: memref<72x1024xbf16, #tpu.memory_space<vmem>>, %arg13: memref<36x1024xbf16, #tpu.memory_space<vmem>>) attributes {dimension_semantics = [#tpu.dimension_semantics<parallel>], iteration_bounds = array<i64: 2>, scalar_prefetch = 0 : i64, scratch_operands = 4 : i64, tpu.core_type = #tpu.core_type<tc>, window_params = [{transform_indices = @transform_0, window_bounds = array<i64: 1, 4, 256>}, {transform_indices = @transform_1, window_bounds = array<i64: 1, 4, 1024>}, {pipeline_mode = #tpu.pipeline_mode<synchronous>, transform_indices = @transform_2, window_bounds = array<i64: 256, 1024>}, {pipeline_mode = #tpu.pipeline_mode<synchronous>, transform_indices = @transform_3, window_bounds = array<i64: 4, 72>}, {pipeline_mode = #tpu.pipeline_mode<synchronous>, transform_indices = @transform_4, window_bounds = array<i64: 4, 1>}, {pipeline_mode = #tpu.pipeline_mode<synchronous>, transform_indices = @transform_5, window_bounds = array<i64: 8, 36>}, {pipeline_mode = #tpu.pipeline_mode<synchronous>, transform_indices = @transform_6, window_bounds = array<i64: 8, 1>}, {pipeline_mode = #tpu.pipeline_mode<synchronous>, transform_indices = @transform_7, window_bounds = array<i64: 2, 1024>}, {transform_indices = @transform_8, window_bounds = array<i64: 1, 8, 1024>}]} {
    %c0 = arith.constant 0 : index
    %c0_0 = arith.constant 0 : index
    %c0_1 = arith.constant 0 : index
    %0 = vector.load %arg1[%c0, %c0_0, %c0_1] : memref<1x4x256xbf16, #tpu.memory_space<vmem>>, vector<1x4x256xbf16>
    %1 = vector.shape_cast %0 : vector<1x4x256xbf16> to vector<4x256xbf16>
    %c0_2 = arith.constant 0 : index
    %c0_3 = arith.constant 0 : index
    %2 = vector.load %arg3[%c0_2, %c0_3] : memref<256x1024xbf16, #tpu.memory_space<vmem>>, vector<256x1024xbf16>
    %cst = arith.constant dense<0.000000e+00> : vector<4x1024xf32>
    %3 = tpu.matmul %1, %2, %cst {dimension_numbers = #tpu.dot_dimension_numbers<[1], [0], [0], [1], [0, 0, 1, 1], [], []>} : vector<4x256xbf16>, vector<256x1024xbf16>, vector<4x1024xf32> -> vector<4x1024xf32>
    %cst_4 = arith.constant 0.000000e+00 : bf16
    %4 = vector.broadcast %cst_4 : bf16 to vector<8x128xbf16>
    %c0_5 = arith.constant 0 : index
    %c0_6 = arith.constant 0 : index
    %5 = vector.load %arg10[%c0_5, %c0_6] : memref<8x1185xbf16, #tpu.memory_space<vmem>>, vector<8x128xbf16>
    tpu.vector_store %arg10[%c0_5, %c0_6], %4 {strides = array<i32>} : memref<8x1185xbf16, #tpu.memory_space<vmem>>, vector<8x128xbf16>,
    %cst_7 = arith.constant 0.000000e+00 : bf16
    %6 = vector.broadcast %cst_7 : bf16 to vector<8x33xbf16>
    %c0_8 = arith.constant 0 : index
    %c1152 = arith.constant 1152 : index
    %7 = vector.load %arg10[%c0_8, %c1152] : memref<8x1185xbf16, #tpu.memory_space<vmem>>, vector<8x33xbf16>
    tpu.vector_store %arg10[%c0_8, %c1152], %6 {strides = array<i32>} : memref<8x1185xbf16, #tpu.memory_space<vmem>>, vector<8x33xbf16>,
    %c0_9 = arith.constant 0 : index
    %c0_10 = arith.constant 0 : index
    %c0_11 = arith.constant 0 : index
    %8 = vector.load %arg2[%c0_9, %c0_10, %c0_11] : memref<1x4x1024xbf16, #tpu.memory_space<vmem>>, vector<1x4x1024xbf16>
    %9 = vector.shape_cast %8 : vector<1x4x1024xbf16> to vector<4x1024xbf16>
    %c0_12 = arith.constant 0 : index
    %c128 = arith.constant 128 : index
    %10 = vector.load %arg10[%c0_12, %c128] : memref<8x1185xbf16, #tpu.memory_space<vmem>>, vector<4x1024xbf16>
    tpu.vector_store %arg10[%c0_12, %c128], %9 {strides = array<i32>} : memref<8x1185xbf16, #tpu.memory_space<vmem>>, vector<4x1024xbf16>,
    %11 = arith.truncf %3 : vector<4x1024xf32> to vector<4x1024xbf16>
    %c4 = arith.constant 4 : index
    %c128_13 = arith.constant 128 : index
    %12 = vector.load %arg10[%c4, %c128_13] : memref<8x1185xbf16, #tpu.memory_space<vmem>>, vector<4x1024xbf16>
    tpu.vector_store %arg10[%c4, %c128_13], %11 {strides = array<i32>} : memref<8x1185xbf16, #tpu.memory_space<vmem>>, vector<4x1024xbf16>,
    %c0_14 = arith.constant 0 : index
    %c0_15 = arith.constant 0 : index
    %13 = vector.load %arg4[%c0_14, %c0_15] : memref<4x72xbf16, #tpu.memory_space<vmem>>, vector<4x72xbf16>
    %c0_16 = arith.constant 0 : index
    %c0_17 = arith.constant 0 : index
    %14 = vector.load %arg5[%c0_16, %c0_17] : memref<4x1xf32, #tpu.memory_space<vmem>>, vector<4x1xf32>
    %c0_18 = arith.constant 0 : index
    %c95 = arith.constant 95 : index
    %15 = vector.load %arg10[%c0_18, %c95] : memref<8x1185xbf16, #tpu.memory_space<vmem>>, vector<8x1024xbf16>
    %c0_19 = arith.constant 0 : index
    %c0_20 = arith.constant 0 : index
    %16 = vector.load %arg8[%c0_19, %c0_20] : memref<2x1024xbf16, #tpu.memory_space<vmem>>, vector<1x1024xbf16>
    %17 = vector.broadcast %16 : vector<1x1024xbf16> to vector<8x1024xbf16>
    %18 = arith.mulf %15, %17 : vector<8x1024xbf16>
    %c0_21 = arith.constant 0 : index
    %c0_22 = arith.constant 0 : index
    %19 = vector.load %arg12[%c0_21, %c0_22] : memref<72x1024xbf16, #tpu.memory_space<vmem>>, vector<8x1024xbf16>
    tpu.vector_store %arg12[%c0_21, %c0_22], %18 {strides = array<i32>} : memref<72x1024xbf16, #tpu.memory_space<vmem>>, vector<8x1024xbf16>,
    %c0_23 = arith.constant 0 : index
    %c96 = arith.constant 96 : index
    %20 = vector.load %arg10[%c0_23, %c96] : memref<8x1185xbf16, #tpu.memory_space<vmem>>, vector<8x1024xbf16>
    %c8 = arith.constant 8 : index
    %c0_24 = arith.constant 0 : index
    %21 = vector.load %arg12[%c8, %c0_24] : memref<72x1024xbf16, #tpu.memory_space<vmem>>, vector<8x1024xbf16>
    tpu.vector_store %arg12[%c8, %c0_24], %20 {strides = array<i32>} : memref<72x1024xbf16, #tpu.memory_space<vmem>>, vector<8x1024xbf16>,
    %c0_25 = arith.constant 0 : index
    %c97 = arith.constant 97 : index
    %22 = vector.load %arg10[%c0_25, %c97] : memref<8x1185xbf16, #tpu.memory_space<vmem>>, vector<8x1024xbf16>
    %c1 = arith.constant 1 : index
    %c0_26 = arith.constant 0 : index
    %23 = vector.load %arg8[%c1, %c0_26] : memref<2x1024xbf16, #tpu.memory_space<vmem>>, vector<1x1024xbf16>
    %24 = vector.broadcast %23 : vector<1x1024xbf16> to vector<8x1024xbf16>
    %25 = arith.mulf %22, %24 : vector<8x1024xbf16>
    %c16 = arith.constant 16 : index
    %c0_27 = arith.constant 0 : index
    %26 = vector.load %arg12[%c16, %c0_27] : memref<72x1024xbf16, #tpu.memory_space<vmem>>, vector<8x1024xbf16>
    tpu.vector_store %arg12[%c16, %c0_27], %25 {strides = array<i32>} : memref<72x1024xbf16, #tpu.memory_space<vmem>>, vector<8x1024xbf16>,
    %c0_28 = arith.constant 0 : index
    %c127 = arith.constant 127 : index
    %27 = vector.load %arg10[%c0_28, %c127] : memref<8x1185xbf16, #tpu.memory_space<vmem>>, vector<8x1024xbf16>
    %c0_29 = arith.constant 0 : index
    %c0_30 = arith.constant 0 : index
    %28 = vector.load %arg8[%c0_29, %c0_30] : memref<2x1024xbf16, #tpu.memory_space<vmem>>, vector<1x1024xbf16>
    %29 = vector.broadcast %28 : vector<1x1024xbf16> to vector<8x1024xbf16>
    %30 = arith.mulf %27, %29 : vector<8x1024xbf16>
    %c24 = arith.constant 24 : index
    %c0_31 = arith.constant 0 : index
    %31 = vector.load %arg12[%c24, %c0_31] : memref<72x1024xbf16, #tpu.memory_space<vmem>>, vector<8x1024xbf16>
    tpu.vector_store %arg12[%c24, %c0_31], %30 {strides = array<i32>} : memref<72x1024xbf16, #tpu.memory_space<vmem>>, vector<8x1024xbf16>,
    %c0_32 = arith.constant 0 : index
    %c128_33 = arith.constant 128 : index
    %32 = vector.load %arg10[%c0_32, %c128_33] : memref<8x1185xbf16, #tpu.memory_space<vmem>>, vector<8x1024xbf16>
    %c32 = arith.constant 32 : index
    %c0_34 = arith.constant 0 : index
    %33 = vector.load %arg12[%c32, %c0_34] : memref<72x1024xbf16, #tpu.memory_space<vmem>>, vector<8x1024xbf16>
    tpu.vector_store %arg12[%c32, %c0_34], %32 {strides = array<i32>} : memref<72x1024xbf16, #tpu.memory_space<vmem>>, vector<8x1024xbf16>,
    %c0_35 = arith.constant 0 : index
    %c129 = arith.constant 129 : index
    %34 = vector.load %arg10[%c0_35, %c129] : memref<8x1185xbf16, #tpu.memory_space<vmem>>, vector<8x1024xbf16>
    %c1_36 = arith.constant 1 : index
    %c0_37 = arith.constant 0 : index
    %35 = vector.load %arg8[%c1_36, %c0_37] : memref<2x1024xbf16, #tpu.memory_space<vmem>>, vector<1x1024xbf16>
    %36 = vector.broadcast %35 : vector<1x1024xbf16> to vector<8x1024xbf16>
    %37 = arith.mulf %34, %36 : vector<8x1024xbf16>
    %c40 = arith.constant 40 : index
    %c0_38 = arith.constant 0 : index
    %38 = vector.load %arg12[%c40, %c0_38] : memref<72x1024xbf16, #tpu.memory_space<vmem>>, vector<8x1024xbf16>
    tpu.vector_store %arg12[%c40, %c0_38], %37 {strides = array<i32>} : memref<72x1024xbf16, #tpu.memory_space<vmem>>, vector<8x1024xbf16>,
    %c0_39 = arith.constant 0 : index
    %c159 = arith.constant 159 : index
    %39 = vector.load %arg10[%c0_39, %c159] : memref<8x1185xbf16, #tpu.memory_space<vmem>>, vector<8x1024xbf16>
    %c0_40 = arith.constant 0 : index
    %c0_41 = arith.constant 0 : index
    %40 = vector.load %arg8[%c0_40, %c0_41] : memref<2x1024xbf16, #tpu.memory_space<vmem>>, vector<1x1024xbf16>
    %41 = vector.broadcast %40 : vector<1x1024xbf16> to vector<8x1024xbf16>
    %42 = arith.mulf %39, %41 : vector<8x1024xbf16>
    %c48 = arith.constant 48 : index
    %c0_42 = arith.constant 0 : index
    %43 = vector.load %arg12[%c48, %c0_42] : memref<72x1024xbf16, #tpu.memory_space<vmem>>, vector<8x1024xbf16>
    tpu.vector_store %arg12[%c48, %c0_42], %42 {strides = array<i32>} : memref<72x1024xbf16, #tpu.memory_space<vmem>>, vector<8x1024xbf16>,
    %c0_43 = arith.constant 0 : index
    %c160 = arith.constant 160 : index
    %44 = vector.load %arg10[%c0_43, %c160] : memref<8x1185xbf16, #tpu.memory_space<vmem>>, vector<8x1024xbf16>
    %c56 = arith.constant 56 : index
    %c0_44 = arith.constant 0 : index
    %45 = vector.load %arg12[%c56, %c0_44] : memref<72x1024xbf16, #tpu.memory_space<vmem>>, vector<8x1024xbf16>
    tpu.vector_store %arg12[%c56, %c0_44], %44 {strides = array<i32>} : memref<72x1024xbf16, #tpu.memory_space<vmem>>, vector<8x1024xbf16>,
    %c0_45 = arith.constant 0 : index
    %c161 = arith.constant 161 : index
    %46 = vector.load %arg10[%c0_45, %c161] : memref<8x1185xbf16, #tpu.memory_space<vmem>>, vector<8x1024xbf16>
    %c1_46 = arith.constant 1 : index
    %c0_47 = arith.constant 0 : index
    %47 = vector.load %arg8[%c1_46, %c0_47] : memref<2x1024xbf16, #tpu.memory_space<vmem>>, vector<1x1024xbf16>
    %48 = vector.broadcast %47 : vector<1x1024xbf16> to vector<8x1024xbf16>
    %49 = arith.mulf %46, %48 : vector<8x1024xbf16>
    %c64 = arith.constant 64 : index
    %c0_48 = arith.constant 0 : index
    %50 = vector.load %arg12[%c64, %c0_48] : memref<72x1024xbf16, #tpu.memory_space<vmem>>, vector<8x1024xbf16>
    tpu.vector_store %arg12[%c64, %c0_48], %49 {strides = array<i32>} : memref<72x1024xbf16, #tpu.memory_space<vmem>>, vector<8x1024xbf16>,
    %c0_49 = arith.constant 0 : index
    %c0_50 = arith.constant 0 : index
    %51 = vector.load %arg12[%c0_49, %c0_50] : memref<72x1024xbf16, #tpu.memory_space<vmem>>, vector<72x1024xbf16>
    %cst_51 = arith.constant dense<0.000000e+00> : vector<4x1024xf32>
    %52 = tpu.matmul %13, %51, %cst_51 {dimension_numbers = #tpu.dot_dimension_numbers<[1], [0], [0], [1], [0, 0, 1, 1], [], []>} : vector<4x72xbf16>, vector<72x1024xbf16>, vector<4x1024xf32> -> vector<4x1024xf32>
    %53 = vector.broadcast %14 : vector<4x1xf32> to vector<4x1024xf32>
    %54 = arith.addf %52, %53 : vector<4x1024xf32>
    %cst_52 = arith.constant 2.000000e-01 : f32
    %55 = vector.broadcast %cst_52 : f32 to vector<4x1024xf32>
    %56 = arith.mulf %55, %54 : vector<4x1024xf32>
    %57 = arith.maximumf %54, %56 : vector<4x1024xf32>
    %cst_53 = arith.constant 0.000000e+00 : bf16
    %58 = vector.broadcast %cst_53 : bf16 to vector<4x128xbf16>
    %c0_54 = arith.constant 0 : index
    %c0_55 = arith.constant 0 : index
    %59 = vector.load %arg11[%c0_54, %c0_55] : memref<4x1185xbf16, #tpu.memory_space<vmem>>, vector<4x128xbf16>
    tpu.vector_store %arg11[%c0_54, %c0_55], %58 {strides = array<i32>} : memref<4x1185xbf16, #tpu.memory_space<vmem>>, vector<4x128xbf16>,
    %cst_56 = arith.constant 0.000000e+00 : bf16
    %60 = vector.broadcast %cst_56 : bf16 to vector<4x33xbf16>
    %c0_57 = arith.constant 0 : index
    %c1152_58 = arith.constant 1152 : index
    %61 = vector.load %arg11[%c0_57, %c1152_58] : memref<4x1185xbf16, #tpu.memory_space<vmem>>, vector<4x33xbf16>
    tpu.vector_store %arg11[%c0_57, %c1152_58], %60 {strides = array<i32>} : memref<4x1185xbf16, #tpu.memory_space<vmem>>, vector<4x33xbf16>,
    %62 = arith.truncf %57 : vector<4x1024xf32> to vector<4x1024xbf16>
    %c0_59 = arith.constant 0 : index
    %c128_60 = arith.constant 128 : index
    %63 = vector.load %arg11[%c0_59, %c128_60] : memref<4x1185xbf16, #tpu.memory_space<vmem>>, vector<4x1024xbf16>
    tpu.vector_store %arg11[%c0_59, %c128_60], %62 {strides = array<i32>} : memref<4x1185xbf16, #tpu.memory_space<vmem>>, vector<4x1024xbf16>,
    %c0_61 = arith.constant 0 : index
    %c0_62 = arith.constant 0 : index
    %64 = vector.load %arg6[%c0_61, %c0_62] : memref<8x36xbf16, #tpu.memory_space<vmem>>, vector<8x36xbf16>
    %c0_63 = arith.constant 0 : index
    %c0_64 = arith.constant 0 : index
    %65 = vector.load %arg7[%c0_63, %c0_64] : memref<8x1xf32, #tpu.memory_space<vmem>>, vector<8x1xf32>
    %c0_65 = arith.constant 0 : index
    %c95_66 = arith.constant 95 : index
    %66 = vector.load %arg11[%c0_65, %c95_66] : memref<4x1185xbf16, #tpu.memory_space<vmem>>, vector<4x1024xbf16>
    %c0_67 = arith.constant 0 : index
    %c0_68 = arith.constant 0 : index
    %67 = vector.load %arg8[%c0_67, %c0_68] : memref<2x1024xbf16, #tpu.memory_space<vmem>>, vector<1x1024xbf16>
    %68 = vector.broadcast %67 : vector<1x1024xbf16> to vector<4x1024xbf16>
    %69 = arith.mulf %66, %68 : vector<4x1024xbf16>
    %c0_69 = arith.constant 0 : index
    %c0_70 = arith.constant 0 : index
    %70 = vector.load %arg13[%c0_69, %c0_70] : memref<36x1024xbf16, #tpu.memory_space<vmem>>, vector<4x1024xbf16>
    tpu.vector_store %arg13[%c0_69, %c0_70], %69 {strides = array<i32>} : memref<36x1024xbf16, #tpu.memory_space<vmem>>, vector<4x1024xbf16>,
    %c0_71 = arith.constant 0 : index
    %c96_72 = arith.constant 96 : index
    %71 = vector.load %arg11[%c0_71, %c96_72] : memref<4x1185xbf16, #tpu.memory_space<vmem>>, vector<4x1024xbf16>
    %c4_73 = arith.constant 4 : index
    %c0_74 = arith.constant 0 : index
    %72 = vector.load %arg13[%c4_73, %c0_74] : memref<36x1024xbf16, #tpu.memory_space<vmem>>, vector<4x1024xbf16>
    tpu.vector_store %arg13[%c4_73, %c0_74], %71 {strides = array<i32>} : memref<36x1024xbf16, #tpu.memory_space<vmem>>, vector<4x1024xbf16>,
    %c0_75 = arith.constant 0 : index
    %c97_76 = arith.constant 97 : index
    %73 = vector.load %arg11[%c0_75, %c97_76] : memref<4x1185xbf16, #tpu.memory_space<vmem>>, vector<4x1024xbf16>
    %c1_77 = arith.constant 1 : index
    %c0_78 = arith.constant 0 : index
    %74 = vector.load %arg8[%c1_77, %c0_78] : memref<2x1024xbf16, #tpu.memory_space<vmem>>, vector<1x1024xbf16>
    %75 = vector.broadcast %74 : vector<1x1024xbf16> to vector<4x1024xbf16>
    %76 = arith.mulf %73, %75 : vector<4x1024xbf16>
    %c8_79 = arith.constant 8 : index
    %c0_80 = arith.constant 0 : index
    %77 = vector.load %arg13[%c8_79, %c0_80] : memref<36x1024xbf16, #tpu.memory_space<vmem>>, vector<4x1024xbf16>
    tpu.vector_store %arg13[%c8_79, %c0_80], %76 {strides = array<i32>} : memref<36x1024xbf16, #tpu.memory_space<vmem>>, vector<4x1024xbf16>,
    %c0_81 = arith.constant 0 : index
    %c127_82 = arith.constant 127 : index
    %78 = vector.load %arg11[%c0_81, %c127_82] : memref<4x1185xbf16, #tpu.memory_space<vmem>>, vector<4x1024xbf16>
    %c0_83 = arith.constant 0 : index
    %c0_84 = arith.constant 0 : index
    %79 = vector.load %arg8[%c0_83, %c0_84] : memref<2x1024xbf16, #tpu.memory_space<vmem>>, vector<1x1024xbf16>
    %80 = vector.broadcast %79 : vector<1x1024xbf16> to vector<4x1024xbf16>
    %81 = arith.mulf %78, %80 : vector<4x1024xbf16>
    %c12 = arith.constant 12 : index
    %c0_85 = arith.constant 0 : index
    %82 = vector.load %arg13[%c12, %c0_85] : memref<36x1024xbf16, #tpu.memory_space<vmem>>, vector<4x1024xbf16>
    tpu.vector_store %arg13[%c12, %c0_85], %81 {strides = array<i32>} : memref<36x1024xbf16, #tpu.memory_space<vmem>>, vector<4x1024xbf16>,
    %c0_86 = arith.constant 0 : index
    %c128_87 = arith.constant 128 : index
    %83 = vector.load %arg11[%c0_86, %c128_87] : memref<4x1185xbf16, #tpu.memory_space<vmem>>, vector<4x1024xbf16>
    %c16_88 = arith.constant 16 : index
    %c0_89 = arith.constant 0 : index
    %84 = vector.load %arg13[%c16_88, %c0_89] : memref<36x1024xbf16, #tpu.memory_space<vmem>>, vector<4x1024xbf16>
    tpu.vector_store %arg13[%c16_88, %c0_89], %83 {strides = array<i32>} : memref<36x1024xbf16, #tpu.memory_space<vmem>>, vector<4x1024xbf16>,
    %c0_90 = arith.constant 0 : index
    %c129_91 = arith.constant 129 : index
    %85 = vector.load %arg11[%c0_90, %c129_91] : memref<4x1185xbf16, #tpu.memory_space<vmem>>, vector<4x1024xbf16>
    %c1_92 = arith.constant 1 : index
    %c0_93 = arith.constant 0 : index
    %86 = vector.load %arg8[%c1_92, %c0_93] : memref<2x1024xbf16, #tpu.memory_space<vmem>>, vector<1x1024xbf16>
    %87 = vector.broadcast %86 : vector<1x1024xbf16> to vector<4x1024xbf16>
    %88 = arith.mulf %85, %87 : vector<4x1024xbf16>
    %c20 = arith.constant 20 : index
    %c0_94 = arith.constant 0 : index
    %89 = vector.load %arg13[%c20, %c0_94] : memref<36x1024xbf16, #tpu.memory_space<vmem>>, vector<4x1024xbf16>
    tpu.vector_store %arg13[%c20, %c0_94], %88 {strides = array<i32>} : memref<36x1024xbf16, #tpu.memory_space<vmem>>, vector<4x1024xbf16>,
    %c0_95 = arith.constant 0 : index
    %c159_96 = arith.constant 159 : index
    %90 = vector.load %arg11[%c0_95, %c159_96] : memref<4x1185xbf16, #tpu.memory_space<vmem>>, vector<4x1024xbf16>
    %c0_97 = arith.constant 0 : index
    %c0_98 = arith.constant 0 : index
    %91 = vector.load %arg8[%c0_97, %c0_98] : memref<2x1024xbf16, #tpu.memory_space<vmem>>, vector<1x1024xbf16>
    %92 = vector.broadcast %91 : vector<1x1024xbf16> to vector<4x1024xbf16>
    %93 = arith.mulf %90, %92 : vector<4x1024xbf16>
    %c24_99 = arith.constant 24 : index
    %c0_100 = arith.constant 0 : index
    %94 = vector.load %arg13[%c24_99, %c0_100] : memref<36x1024xbf16, #tpu.memory_space<vmem>>, vector<4x1024xbf16>
    tpu.vector_store %arg13[%c24_99, %c0_100], %93 {strides = array<i32>} : memref<36x1024xbf16, #tpu.memory_space<vmem>>, vector<4x1024xbf16>,
    %c0_101 = arith.constant 0 : index
    %c160_102 = arith.constant 160 : index
    %95 = vector.load %arg11[%c0_101, %c160_102] : memref<4x1185xbf16, #tpu.memory_space<vmem>>, vector<4x1024xbf16>
    %c28 = arith.constant 28 : index
    %c0_103 = arith.constant 0 : index
    %96 = vector.load %arg13[%c28, %c0_103] : memref<36x1024xbf16, #tpu.memory_space<vmem>>, vector<4x1024xbf16>
    tpu.vector_store %arg13[%c28, %c0_103], %95 {strides = array<i32>} : memref<36x1024xbf16, #tpu.memory_space<vmem>>, vector<4x1024xbf16>,
    %c0_104 = arith.constant 0 : index
    %c161_105 = arith.constant 161 : index
    %97 = vector.load %arg11[%c0_104, %c161_105] : memref<4x1185xbf16, #tpu.memory_space<vmem>>, vector<4x1024xbf16>
    %c1_106 = arith.constant 1 : index
    %c0_107 = arith.constant 0 : index
    %98 = vector.load %arg8[%c1_106, %c0_107] : memref<2x1024xbf16, #tpu.memory_space<vmem>>, vector<1x1024xbf16>
    %99 = vector.broadcast %98 : vector<1x1024xbf16> to vector<4x1024xbf16>
    %100 = arith.mulf %97, %99 : vector<4x1024xbf16>
    %c32_108 = arith.constant 32 : index
    %c0_109 = arith.constant 0 : index
    %101 = vector.load %arg13[%c32_108, %c0_109] : memref<36x1024xbf16, #tpu.memory_space<vmem>>, vector<4x1024xbf16>
    tpu.vector_store %arg13[%c32_108, %c0_109], %100 {strides = array<i32>} : memref<36x1024xbf16, #tpu.memory_space<vmem>>, vector<4x1024xbf16>,
    %c0_110 = arith.constant 0 : index
    %c0_111 = arith.constant 0 : index
    %102 = vector.load %arg13[%c0_110, %c0_111] : memref<36x1024xbf16, #tpu.memory_space<vmem>>, vector<36x1024xbf16>
    %cst_112 = arith.constant dense<0.000000e+00> : vector<8x1024xf32>
    %103 = tpu.matmul %64, %102, %cst_112 {dimension_numbers = #tpu.dot_dimension_numbers<[1], [0], [0], [1], [0, 0, 1, 1], [], []>} : vector<8x36xbf16>, vector<36x1024xbf16>, vector<8x1024xf32> -> vector<8x1024xf32>
    %104 = vector.broadcast %65 : vector<8x1xf32> to vector<8x1024xf32>
    %105 = arith.addf %103, %104 : vector<8x1024xf32>
    %cst_113 = arith.constant 2.000000e-01 : f32
    %106 = vector.broadcast %cst_113 : f32 to vector<8x1024xf32>
    %107 = arith.mulf %106, %105 : vector<8x1024xf32>
    %108 = arith.maximumf %105, %107 : vector<8x1024xf32>
    %c0_114 = arith.constant 0 : index
    %c0_115 = arith.constant 0 : index
    %c0_116 = arith.constant 0 : index
    %109 = vector.load %arg9[%c0_114, %c0_115, %c0_116] : memref<1x8x1024xf32, #tpu.memory_space<vmem>>, vector<1x8x1024xf32>
    %110 = vector.shape_cast %109 : vector<1x8x1024xf32> to vector<8x1024xf32>
    %111 = vector.shape_cast %108 : vector<8x1024xf32> to vector<1x8x1024xf32>
    tpu.vector_store %arg9[%c0_114, %c0_115, %c0_116], %111 {strides = array<i32>} : memref<1x8x1024xf32, #tpu.memory_space<vmem>>, vector<1x8x1024xf32>,
    return
  }
  func.func @transform_0(%arg0: i32) -> (i32, i32, i32) {
    %c0_i32 = arith.constant 0 : i32
    %c0_i32_0 = arith.constant 0 : i32
    %c0_i32_1 = arith.constant 0 : i32
    return %arg0, %c0_i32, %c0_i32_0 : i32, i32, i32
  }
  func.func @transform_1(%arg0: i32) -> (i32, i32, i32) {
    %c0_i32 = arith.constant 0 : i32
    %c0_i32_0 = arith.constant 0 : i32
    %c0_i32_1 = arith.constant 0 : i32
    return %arg0, %c0_i32, %c0_i32_0 : i32, i32, i32
  }
  func.func @transform_2(%arg0: i32) -> (i32, i32) {
    %c0_i32 = arith.constant 0 : i32
    %c0_i32_0 = arith.constant 0 : i32
    %c0_i32_1 = arith.constant 0 : i32
    return %c0_i32, %c0_i32_0 : i32, i32
  }
  func.func @transform_3(%arg0: i32) -> (i32, i32) {
    %c0_i32 = arith.constant 0 : i32
    %c0_i32_0 = arith.constant 0 : i32
    %c0_i32_1 = arith.constant 0 : i32
    return %c0_i32, %c0_i32_0 : i32, i32
  }
  func.func @transform_4(%arg0: i32) -> (i32, i32) {
    %c0_i32 = arith.constant 0 : i32
    %c0_i32_0 = arith.constant 0 : i32
    %c0_i32_1 = arith.constant 0 : i32
    return %c0_i32, %c0_i32_0 : i32, i32
  }
  func.func @transform_5(%arg0: i32) -> (i32, i32) {
    %c0_i32 = arith.constant 0 : i32
    %c0_i32_0 = arith.constant 0 : i32
    %c0_i32_1 = arith.constant 0 : i32
    return %c0_i32, %c0_i32_0 : i32, i32
  }
  func.func @transform_6(%arg0: i32) -> (i32, i32) {
    %c0_i32 = arith.constant 0 : i32
    %c0_i32_0 = arith.constant 0 : i32
    %c0_i32_1 = arith.constant 0 : i32
    return %c0_i32, %c0_i32_0 : i32, i32
  }
  func.func @transform_7(%arg0: i32) -> (i32, i32) {
    %c0_i32 = arith.constant 0 : i32
    %c0_i32_0 = arith.constant 0 : i32
    %c0_i32_1 = arith.constant 0 : i32
    return %c0_i32, %c0_i32_0 : i32, i32
  }
  func.func @transform_8(%arg0: i32) -> (i32, i32, i32) {
    %c0_i32 = arith.constant 0 : i32
    %c0_i32_0 = arith.constant 0 : i32
    %c0_i32_1 = arith.constant 0 : i32
    return %arg0, %c0_i32, %c0_i32_0 : i32, i32, i32
  }
}

</mosaic_0001>

<llo_original>
// kernel: up_forward.1
$region0: #{up_forward.1}
  #allocation0 [shape = 'u32[]', space=smem, size = 0x4, offset = 0x4, fixed_abs, tag = 'smem constant byte address 0x4 - core index']
  #allocation1 [shape = 'u32[144,128]{1,0:T(1,128)}', space=vmem, size = 0x12000, scoped, tag = 'internal scratch']
  #allocation2 [shape = 'bf16[8,1185]{1,0:T(8,128)(2,1)}', space=vmem, size = 0x5000, scoped, tag = 'scratch operand']
  #allocation3 [shape = 'bf16[4,1185]{1,0:T(4,128)(2,1)}', space=vmem, size = 0x2800, scoped, tag = 'scratch operand']
  #allocation4 [shape = 'bf16[72,1024]{1,0:T(8,128)(2,1)}', space=vmem, size = 0x24000, scoped, tag = 'scratch operand']
  #allocation5 [shape = 'bf16[36,1024]{1,0:T(8,128)(2,1)}', space=vmem, size = 0x14000, scoped, tag = 'scratch operand']
  %s0 = inlined_call_operand.vmem [shape: bf16[2,4,256], index: 0, kind: input, shape index: {}]
  %s1 = inlined_call_operand.vmem [shape: bf16[2,4,1024], index: 1, kind: input, shape index: {}]
  %s2 = inlined_call_operand.vmem [shape: bf16[256,1024], index: 2, kind: input, shape index: {}]
  %s3 = inlined_call_operand.vmem [shape: bf16[4,72], index: 3, kind: input, shape index: {}]
  %s4 = inlined_call_operand.vmem [shape: f32[4,1], index: 4, kind: input, shape index: {}]
  %s5 = inlined_call_operand.vmem [shape: bf16[8,36], index: 5, kind: input, shape index: {}]
  %s6 = inlined_call_operand.vmem [shape: f32[8,1], index: 6, kind: input, shape index: {}]
  %s7 = inlined_call_operand.vmem [shape: bf16[2,1024], index: 7, kind: input, shape index: {}]
  %s8 = inlined_call_operand.vmem [shape: f32[2,8,1024], index: 8, kind: output, shape index: {}]
  %s9 = sld [smem:[#allocation0]]
  $region65: #{up_forward.1} parent=0
    _
  %s11 = ssub.s32 1, %s9
  %s12 = scalar_select 0, %s11, %s9
  loop: start=0, step=1, limit=4
  $region2: #{up_forward.1} parent=0 // loop_pre_header
    _
  $region3: #{up_forward.1} parent=0 // loop_header
    %s14 = sphi 0, %s18
    %p15 = scmp.ge.s32.totalorder %s14, 4
    %s24 = sphi 0, %s26
    %s27 = sphi 0, %s24
    %s28 = sphi 0, %s27
    %s44 = sphi 0, %s28
    %s50 = sphi 0, %s52
    %s53 = sphi 0, %s50
    %s54 = sphi 0, %s53
    %s70 = sphi 0, %s54
    %s74 = sphi 0, %s74
    %s76 = sphi 0, %s74
    %s77 = sphi 0, %s76
    %s91 = sphi 0, %s77
    %s95 = sphi 0, %s95
    %s97 = sphi 0, %s95
    %s98 = sphi 0, %s97
    %s112 = sphi 0, %s98
    %s116 = sphi 0, %s116
    %s118 = sphi 0, %s116
    %s119 = sphi 0, %s118
    %s133 = sphi 0, %s119
    %s137 = sphi 0, %s137
    %s139 = sphi 0, %s137
    %s140 = sphi 0, %s139
    %s154 = sphi 0, %s140
    %s158 = sphi 0, %s158
    %s160 = sphi 0, %s158
    %s161 = sphi 0, %s160
    %s175 = sphi 0, %s161
    %s179 = sphi 0, %s179
    %s181 = sphi 0, %s179
    %s182 = sphi 0, %s181
    %s196 = sphi 0, %s182
    %s202 = sphi 0, %s204
    %s205 = sphi 0, %s202
    %s206 = sphi 0, %s205
    %s222 = sphi 0, %s206
  $region4: #{up_forward.1} parent=0 // loop_header_branch
    %17 = sbr.rel (%p15) target = $region8
  $region5: #{up_forward.1} parent=0 // loop_body
    %s19 = ssub.s32 %s14, 1
    %s20 = ssub.s32 %s14, 2
    %s21 = sadd.s32 %s14, 1
    %s22 = ssub.s32 %s14, %s21
    %p23 = scmp.eq.s32.totalorder %s22, 0
    %s25 = sadd.s32 %s24, 1
    %s26 = scalar_select %p23, %s24, %s25
    %p29 = pneg %p23
    %p30 = scmp.eq.s32.totalorder %s14, 1
    %p31 = por %p29, %p30
    %p32 = scmp.ne.s32.totalorder %s24, %s27
    %p33 = scmp.eq.s32.totalorder %s14, 0
    %p34 = por %p32, %p33
    %p35 = scmp.ne.s32.totalorder %s24, %s27
    %p36 = scmp.eq.s32.totalorder %s19, 1
    %p37 = por %p35, %p36
    %p38 = scmp.ne.s32.totalorder %s27, %s28
    %p39 = scmp.eq.s32.totalorder %s19, 0
    %p40 = por %p38, %p39
    %p41 = scmp.ne.s32.totalorder %s27, %s28
    %p42 = scmp.eq.s32.totalorder %s20, 1
    %p43 = por %p41, %p42
    %p45 = scmp.ne.s32.totalorder %s28, %s44
    %p46 = scmp.eq.s32.totalorder %s20, 0
    %p47 = por %p45, %p46
    %s48 = ssub.s32 %s14, %s21
    %p49 = scmp.eq.s32.totalorder %s48, 0
    %s51 = sadd.s32 %s50, 1
    %s52 = scalar_select %p49, %s50, %s51
    %p55 = pneg %p49
    %p56 = scmp.eq.s32.totalorder %s14, 1
    %p57 = por %p55, %p56
    %p58 = scmp.ne.s32.totalorder %s50, %s53
    %p59 = scmp.eq.s32.totalorder %s14, 0
    %p60 = por %p58, %p59
    %p61 = scmp.ne.s32.totalorder %s50, %s53
    %p62 = scmp.eq.s32.totalorder %s19, 1
    %p63 = por %p61, %p62
    %p64 = scmp.ne.s32.totalorder %s53, %s54
    %p65 = scmp.eq.s32.totalorder %s19, 0
    %p66 = por %p64, %p65
    %p67 = scmp.ne.s32.totalorder %s53, %s54
    %p68 = scmp.eq.s32.totalorder %s20, 1
    %p69 = por %p67, %p68
    %p71 = scmp.ne.s32.totalorder %s54, %s70
    %p72 = scmp.eq.s32.totalorder %s20, 0
    %p73 = por %p71, %p72
    %s75 = sadd.s32 %s74, 1
    %p78 = scmp.eq.s32.totalorder %s14, 1
    %p79 = scmp.ne.s32.totalorder %s74, %s76
    %p80 = scmp.eq.s32.totalorder %s14, 0
    %p81 = por %p79, %p80
    %p82 = scmp.ne.s32.totalorder %s74, %s76
    %p83 = scmp.eq.s32.totalorder %s19, 1
    %p84 = por %p82, %p83
    %p85 = scmp.ne.s32.totalorder %s76, %s77
    %p86 = scmp.eq.s32.totalorder %s19, 0
    %p87 = por %p85, %p86
    %p88 = scmp.ne.s32.totalorder %s76, %s77
    %p89 = scmp.eq.s32.totalorder %s20, 1
    %p90 = por %p88, %p89
    %p92 = scmp.ne.s32.totalorder %s77, %s91
    %p93 = scmp.eq.s32.totalorder %s20, 0
    %p94 = por %p92, %p93
    %s96 = sadd.s32 %s95, 1
    %p99 = scmp.eq.s32.totalorder %s14, 1
    %p100 = scmp.ne.s32.totalorder %s95, %s97
    %p101 = scmp.eq.s32.totalorder %s14, 0
    %p102 = por %p100, %p101
    %p103 = scmp.ne.s32.totalorder %s95, %s97
    %p104 = scmp.eq.s32.totalorder %s19, 1
    %p105 = por %p103, %p104
    %p106 = scmp.ne.s32.totalorder %s97, %s98
    %p107 = scmp.eq.s32.totalorder %s19, 0
    %p108 = por %p106, %p107
    %p109 = scmp.ne.s32.totalorder %s97, %s98
    %p110 = scmp.eq.s32.totalorder %s20, 1
    %p111 = por %p109, %p110
    %p113 = scmp.ne.s32.totalorder %s98, %s112
    %p114 = scmp.eq.s32.totalorder %s20, 0
    %p115 = por %p113, %p114
    %s117 = sadd.s32 %s116, 1
    %p120 = scmp.eq.s32.totalorder %s14, 1
    %p121 = scmp.ne.s32.totalorder %s116, %s118
    %p122 = scmp.eq.s32.totalorder %s14, 0
    %p123 = por %p121, %p122
    %p124 = scmp.ne.s32.totalorder %s116, %s118
    %p125 = scmp.eq.s32.totalorder %s19, 1
    %p126 = por %p124, %p125
    %p127 = scmp.ne.s32.totalorder %s118, %s119
    %p128 = scmp.eq.s32.totalorder %s19, 0
    %p129 = por %p127, %p128
    %p130 = scmp.ne.s32.totalorder %s118, %s119
    %p131 = scmp.eq.s32.totalorder %s20, 1
    %p132 = por %p130, %p131
    %p134 = scmp.ne.s32.totalorder %s119, %s133
    %p135 = scmp.eq.s32.totalorder %s20, 0
    %p136 = por %p134, %p135
    %s138 = sadd.s32 %s137, 1
    %p141 = scmp.eq.s32.totalorder %s14, 1
    %p142 = scmp.ne.s32.totalorder %s137, %s139
    %p143 = scmp.eq.s32.totalorder %s14, 0
    %p144 = por %p142, %p143
    %p145 = scmp.ne.s32.totalorder %s137, %s139
    %p146 = scmp.eq.s32.totalorder %s19, 1
    %p147 = por %p145, %p146
    %p148 = scmp.ne.s32.totalorder %s139, %s140
    %p149 = scmp.eq.s32.totalorder %s19, 0
    %p150 = por %p148, %p149
    %p151 = scmp.ne.s32.totalorder %s139, %s140
    %p152 = scmp.eq.s32.totalorder %s20, 1
    %p153 = por %p151, %p152
    %p155 = scmp.ne.s32.totalorder %s140, %s154
    %p156 = scmp.eq.s32.totalorder %s20, 0
    %p157 = por %p155, %p156
    %s159 = sadd.s32 %s158, 1
    %p162 = scmp.eq.s32.totalorder %s14, 1
    %p163 = scmp.ne.s32.totalorder %s158, %s160
    %p164 = scmp.eq.s32.totalorder %s14, 0
    %p165 = por %p163, %p164
    %p166 = scmp.ne.s32.totalorder %s158, %s160
    %p167 = scmp.eq.s32.totalorder %s19, 1
    %p168 = por %p166, %p167
    %p169 = scmp.ne.s32.totalorder %s160, %s161
    %p170 = scmp.eq.s32.totalorder %s19, 0
    %p171 = por %p169, %p170
    %p172 = scmp.ne.s32.totalorder %s160, %s161
    %p173 = scmp.eq.s32.totalorder %s20, 1
    %p174 = por %p172, %p173
    %p176 = scmp.ne.s32.totalorder %s161, %s175
    %p177 = scmp.eq.s32.totalorder %s20, 0
    %p178 = por %p176, %p177
    %s180 = sadd.s32 %s179, 1
    %p183 = scmp.eq.s32.totalorder %s14, 1
    %p184 = scmp.ne.s32.totalorder %s179, %s181
    %p185 = scmp.eq.s32.totalorder %s14, 0
    %p186 = por %p184, %p185
    %p187 = scmp.ne.s32.totalorder %s179, %s181
    %p188 = scmp.eq.s32.totalorder %s19, 1
    %p189 = por %p187, %p188
    %p190 = scmp.ne.s32.totalorder %s181, %s182
    %p191 = scmp.eq.s32.totalorder %s19, 0
    %p192 = por %p190, %p191
    %p193 = scmp.ne.s32.totalorder %s181, %s182
    %p194 = scmp.eq.s32.totalorder %s20, 1
    %p195 = por %p193, %p194
    %p197 = scmp.ne.s32.totalorder %s182, %s196
    %p198 = scmp.eq.s32.totalorder %s20, 0
    %p199 = por %p197, %p198
    %s200 = ssub.s32 %s14, %s21
    %p201 = scmp.eq.s32.totalorder %s200, 0
    %s203 = sadd.s32 %s202, 1
    %s204 = scalar_select %p201, %s202, %s203
    %p207 = pneg %p201
    %p208 = scmp.eq.s32.totalorder %s14, 1
    %p209 = por %p207, %p208
    %p210 = scmp.ne.s32.totalorder %s202, %s205
    %p211 = scmp.eq.s32.totalorder %s14, 0
    %p212 = por %p210, %p211
    %p213 = scmp.ne.s32.totalorder %s202, %s205
    %p214 = scmp.eq.s32.totalorder %s19, 1
    %p215 = por %p213, %p214
    %p216 = scmp.ne.s32.totalorder %s205, %s206
    %p217 = scmp.eq.s32.totalorder %s19, 0
    %p218 = por %p216, %p217
    %p219 = scmp.ne.s32.totalorder %s205, %s206
    %p220 = scmp.eq.s32.totalorder %s20, 1
    %p221 = por %p219, %p220
    %p223 = scmp.ne.s32.totalorder %s206, %s222
    %p224 = scmp.eq.s32.totalorder %s20, 0
    %p225 = por %p223, %p224
    %p226 = scmp.le.s32.totalorder 1, %s14
    %p227 = scmp.lt.s32.totalorder %s14, 3
    %p228 = pnand %p226, %p227
    %p229 = pneg %p228
    // Predicated region
    $region9: #{up_forward.1} parent=5 // pred_check
      _
    $region10: #{up_forward.1} parent=5 // pred_check_branch
      %231 = sbr.rel (%p228) target = $region12
    $region11: #{up_forward.1} parent=5 // pred_region
      %s232 = ssub.s32 %s14, 1
      // Predicated region
      $region13: #{up_forward.1} parent=11 // pred_check
        %p233 = pneg %p87
      $region14: #{up_forward.1} parent=11 // pred_check_branch
        %235 = sbr.rel (%p233) target = $region16
      $region15: #{up_forward.1} parent=11 // pred_region
        _
      $region16: #{up_forward.1} parent=11 // pred_fallthru
        _
      // Predicated region
      $region17: #{up_forward.1} parent=11 // pred_check
        %p236 = pneg %p108
      $region18: #{up_forward.1} parent=11 // pred_check_branch
        %238 = sbr.rel (%p236) target = $region20
      $region19: #{up_forward.1} parent=11 // pred_region
        _
      $region20: #{up_forward.1} parent=11 // pred_fallthru
        _
      // Predicated region
      $region21: #{up_forward.1} parent=11 // pred_check
        %p239 = pneg %p129
      $region22: #{up_forward.1} parent=11 // pred_check_branch
        %241 = sbr.rel (%p239) target = $region24
      $region23: #{up_forward.1} parent=11 // pred_region
        _
      $region24: #{up_forward.1} parent=11 // pred_fallthru
        _
      // Predicated region
      $region25: #{up_forward.1} parent=11 // pred_check
        %p242 = pneg %p150
      $region26: #{up_forward.1} parent=11 // pred_check_branch
        %244 = sbr.rel (%p242) target = $region28
      $region27: #{up_forward.1} parent=11 // pred_region
        _
      $region28: #{up_forward.1} parent=11 // pred_fallthru
        _
      // Predicated region
      $region29: #{up_forward.1} parent=11 // pred_check
        %p245 = pneg %p171
      $region30: #{up_forward.1} parent=11 // pred_check_branch
        %247 = sbr.rel (%p245) target = $region32
      $region31: #{up_forward.1} parent=11 // pred_region
        _
      $region32: #{up_forward.1} parent=11 // pred_fallthru
        _
      // Predicated region
      $region33: #{up_forward.1} parent=11 // pred_check
        %p248 = pneg %p192
      $region34: #{up_forward.1} parent=11 // pred_check_branch
        %250 = sbr.rel (%p248) target = $region36
      $region35: #{up_forward.1} parent=11 // pred_region
        _
      $region36: #{up_forward.1} parent=11 // pred_fallthru
        _
    $region12: #{up_forward.1} parent=5 // pred_fallthru
      _
    %p251 = scmp.lt.s32.totalorder %s14, 2
    // Predicated region
    $region37: #{up_forward.1} parent=5 // pred_check
      %p252 = pneg %p251
    $region38: #{up_forward.1} parent=5 // pred_check_branch
      %254 = sbr.rel (%p252) target = $region40
    $region39: #{up_forward.1} parent=5 // pred_region
      // Predicated region
      $region41: #{up_forward.1} parent=39 // pred_check
        %p255 = pneg %p34
      $region42: #{up_forward.1} parent=39 // pred_check_branch
        %257 = sbr.rel (%p255) target = $region44
      $region43: #{up_forward.1} parent=39 // pred_region
        %p258 = scmp.lt.s32.totalorder %s14, 1
        %s259 = scalar_select %p258, %s14, 1
        %s260 = smul.addr %s259, 2
        %s261 = smul.addr %s260, 2
        %s262 = scalar_lea.vmem %s0, %s261
      $region44: #{up_forward.1} parent=39 // pred_fallthru
        _
      // Predicated region
      $region45: #{up_forward.1} parent=39 // pred_check
        %p263 = pneg %p60
      $region46: #{up_forward.1} parent=39 // pred_check_branch
        %265 = sbr.rel (%p263) target = $region48
      $region47: #{up_forward.1} parent=39 // pred_region
        %p266 = scmp.lt.s32.totalorder %s14, 1
        %s267 = scalar_select %p266, %s14, 1
        %s268 = smul.addr %s267, 8
        %s269 = smul.addr %s268, 2
        %s270 = scalar_lea.vmem %s1, %s269
      $region48: #{up_forward.1} parent=39 // pred_fallthru
        _
    $region40: #{up_forward.1} parent=5 // pred_fallthru
      _
    %p271 = scmp.le.s32.totalorder 1, %s14
    %p272 = scmp.lt.s32.totalorder %s14, 3
    %p273 = pnand %p271, %p272
    %p274 = pneg %p273
    // Predicated region
    $region49: #{up_forward.1} parent=5 // pred_check
      _
    $region50: #{up_forward.1} parent=5 // pred_check_branch
      %276 = sbr.rel (%p273) target = $region52
    $region51: #{up_forward.1} parent=5 // pred_region
      %s277 = ssub.s32 %s14, 1
      %p278 = scmp.lt.s32.totalorder %s19, 1
      %s279 = scalar_select %p278, %s19, 1
      %s280 = smul.addr %s279, 2
      %s281 = smul.addr %s280, 2
      %s282 = scalar_lea.vmem %s0, %s281
      %p283 = pneg %p40
      %p284 = pneg %p37
      %p285 = scmp.lt.s32.totalorder %s19, 1
      %s286 = scalar_select %p285, %s19, 1
      %s287 = smul.addr %s286, 8
      %s288 = smul.addr %s287, 2
      %s289 = scalar_lea.vmem %s1, %s288
      %p290 = pneg %p66
      %p291 = pneg %p63
      %p292 = pneg %p87
      %p293 = pneg %p84
      %p294 = pneg %p108
      %p295 = pneg %p105
      %p296 = pneg %p129
      %p297 = pneg %p126
      %p298 = pneg %p150
      %p299 = pneg %p147
      %p300 = pneg %p171
      %p301 = pneg %p168
      %p302 = pneg %p192
      %p303 = pneg %p189
      %p304 = pneg %p218
      %p305 = pneg %p215
      %p306 = scmp.lt.s32.totalorder %s19, 1
      %s307 = scalar_select %p306, %s19, 1
      %s308 = smul.addr %s307, 8
      %s309 = smul.addr %s308, 8
      %s310 = scalar_lea.vmem %s8, %s309
      %p311 = scmp.lt.s32.totalorder %s19, 1
      %s312 = scalar_select %p311, %s19, 1
      %s313 = smul.addr %s312, 2
      %s314 = smul.addr %s313, 2
      %s315 = scalar_lea.vmem %s0, %s314
      %p316 = scmp.lt.s32.totalorder %s19, 1
      %s317 = scalar_select %p316, %s19, 1
      %s318 = smul.addr %s317, 8
      %s319 = smul.addr %s318, 2
      %s320 = scalar_lea.vmem %s1, %s319
      %p321 = scmp.lt.s32.totalorder %s19, 1
      %s322 = scalar_select %p321, %s19, 1
      %s323 = smul.addr %s322, 8
      %s324 = smul.addr %s323, 8
      %s325 = scalar_lea.vmem %s8, %s324
      %v327 = vld [vmem:[%s315] sm:$0xf]
      %v328 = vld [vmem:[%s2] sm:$0xff]
      %v329 = vld [vmem:[%s2 + $0x8] sm:$0xff]
      %v330 = vld [vmem:[%s2 + $0x10] sm:$0xff]
      %v331 = vld [vmem:[%s2 + $0x18] sm:$0xff]
      %v332 = vld [vmem:[%s2 + $0x20] sm:$0xff]
      %v333 = vld [vmem:[%s2 + $0x28] sm:$0xff]
      %v334 = vld [vmem:[%s2 + $0x30] sm:$0xff]
      %v335 = vld [vmem:[%s2 + $0x38] sm:$0xff]
      %v336 = vld [vmem:[%s2 + $0x40] sm:$0xff]
      %v337 = vld [vmem:[%s2 + $0x48] sm:$0xff]
      %v338 = vld [vmem:[%s2 + $0x50] sm:$0xff]
      %v339 = vld [vmem:[%s2 + $0x58] sm:$0xff]
      %v340 = vld [vmem:[%s2 + $0x60] sm:$0xff]
      %v341 = vld [vmem:[%s2 + $0x68] sm:$0xff]
      %v342 = vld [vmem:[%s2 + $0x70] sm:$0xff]
      %v343 = vld [vmem:[%s2 + $0x78] sm:$0xff]
      %v344 = vld [vmem:[%s2 + $0x80] sm:$0xff]
      %v345 = vld [vmem:[%s2 + $0x88] sm:$0xff]
      %v346 = vld [vmem:[%s2 + $0x90] sm:$0xff]
      %v347 = vld [vmem:[%s2 + $0x98] sm:$0xff]
      %v348 = vld [vmem:[%s2 + $0xa0] sm:$0xff]
      %v349 = vld [vmem:[%s2 + $0xa8] sm:$0xff]
      %v350 = vld [vmem:[%s2 + $0xb0] sm:$0xff]
      %v351 = vld [vmem:[%s2 + $0xb8] sm:$0xff]
      %v352 = vld [vmem:[%s2 + $0xc0] sm:$0xff]
      %v353 = vld [vmem:[%s2 + $0xc8] sm:$0xff]
      %v354 = vld [vmem:[%s2 + $0xd0] sm:$0xff]
      %v355 = vld [vmem:[%s2 + $0xd8] sm:$0xff]
      %v356 = vld [vmem:[%s2 + $0xe0] sm:$0xff]
      %v357 = vld [vmem:[%s2 + $0xe8] sm:$0xff]
      %v358 = vld [vmem:[%s2 + $0xf0] sm:$0xff]
      %v359 = vld [vmem:[%s2 + $0xf8] sm:$0xff]
      %v360 = vld [vmem:[%s2 + $0x100] sm:$0xff]
      %v361 = vld [vmem:[%s2 + $0x108] sm:$0xff]
      %v362 = vld [vmem:[%s2 + $0x110] sm:$0xff]
      %v363 = vld [vmem:[%s2 + $0x118] sm:$0xff]
      %v364 = vld [vmem:[%s2 + $0x120] sm:$0xff]
      %v365 = vld [vmem:[%s2 + $0x128] sm:$0xff]
      %v366 = vld [vmem:[%s2 + $0x130] sm:$0xff]
      %v367 = vld [vmem:[%s2 + $0x138] sm:$0xff]
      %v368 = vld [vmem:[%s2 + $0x140] sm:$0xff]
      %v369 = vld [vmem:[%s2 + $0x148] sm:$0xff]
      %v370 = vld [vmem:[%s2 + $0x150] sm:$0xff]
      %v371 = vld [vmem:[%s2 + $0x158] sm:$0xff]
      %v372 = vld [vmem:[%s2 + $0x160] sm:$0xff]
      %v373 = vld [vmem:[%s2 + $0x168] sm:$0xff]
      %v374 = vld [vmem:[%s2 + $0x170] sm:$0xff]
      %v375 = vld [vmem:[%s2 + $0x178] sm:$0xff]
      %v376 = vld [vmem:[%s2 + $0x180] sm:$0xff]
      %v377 = vld [vmem:[%s2 + $0x188] sm:$0xff]
      %v378 = vld [vmem:[%s2 + $0x190] sm:$0xff]
      %v379 = vld [vmem:[%s2 + $0x198] sm:$0xff]
      %v380 = vld [vmem:[%s2 + $0x1a0] sm:$0xff]
      %v381 = vld [vmem:[%s2 + $0x1a8] sm:$0xff]
      %v382 = vld [vmem:[%s2 + $0x1b0] sm:$0xff]
      %v383 = vld [vmem:[%s2 + $0x1b8] sm:$0xff]
      %v384 = vld [vmem:[%s2 + $0x1c0] sm:$0xff]
      %v385 = vld [vmem:[%s2 + $0x1c8] sm:$0xff]
      %v386 = vld [vmem:[%s2 + $0x1d0] sm:$0xff]
      %v387 = vld [vmem:[%s2 + $0x1d8] sm:$0xff]
      %v388 = vld [vmem:[%s2 + $0x1e0] sm:$0xff]
      %v389 = vld [vmem:[%s2 + $0x1e8] sm:$0xff]
      %v390 = vld [vmem:[%s2 + $0x1f0] sm:$0xff]
      %v391 = vld [vmem:[%s2 + $0x1f8] sm:$0xff]
      %v392 = vld [vmem:[%s2 + $0x200] sm:$0xff]
      %v393 = vld [vmem:[%s2 + $0x208] sm:$0xff]
      %v394 = vld [vmem:[%s2 + $0x210] sm:$0xff]
      %v395 = vld [vmem:[%s2 + $0x218] sm:$0xff]
      %v396 = vld [vmem:[%s2 + $0x220] sm:$0xff]
      %v397 = vld [vmem:[%s2 + $0x228] sm:$0xff]
      %v398 = vld [vmem:[%s2 + $0x230] sm:$0xff]
      %v399 = vld [vmem:[%s2 + $0x238] sm:$0xff]
      %v400 = vld [vmem:[%s2 + $0x240] sm:$0xff]
      %v401 = vld [vmem:[%s2 + $0x248] sm:$0xff]
      %v402 = vld [vmem:[%s2 + $0x250] sm:$0xff]
      %v403 = vld [vmem:[%s2 + $0x258] sm:$0xff]
      %v404 = vld [vmem:[%s2 + $0x260] sm:$0xff]
      %v405 = vld [vmem:[%s2 + $0x268] sm:$0xff]
      %v406 = vld [vmem:[%s2 + $0x270] sm:$0xff]
      %v407 = vld [vmem:[%s2 + $0x278] sm:$0xff]
      %v408 = vld [vmem:[%s2 + $0x280] sm:$0xff]
      %v409 = vld [vmem:[%s2 + $0x288] sm:$0xff]
      %v410 = vld [vmem:[%s2 + $0x290] sm:$0xff]
      %v411 = vld [vmem:[%s2 + $0x298] sm:$0xff]
      %v412 = vld [vmem:[%s2 + $0x2a0] sm:$0xff]
      %v413 = vld [vmem:[%s2 + $0x2a8] sm:$0xff]
      %v414 = vld [vmem:[%s2 + $0x2b0] sm:$0xff]
      %v415 = vld [vmem:[%s2 + $0x2b8] sm:$0xff]
      %v416 = vld [vmem:[%s2 + $0x2c0] sm:$0xff]
      %v417 = vld [vmem:[%s2 + $0x2c8] sm:$0xff]
      %v418 = vld [vmem:[%s2 + $0x2d0] sm:$0xff]
      %v419 = vld [vmem:[%s2 + $0x2d8] sm:$0xff]
      %v420 = vld [vmem:[%s2 + $0x2e0] sm:$0xff]
      %v421 = vld [vmem:[%s2 + $0x2e8] sm:$0xff]
      %v422 = vld [vmem:[%s2 + $0x2f0] sm:$0xff]
      %v423 = vld [vmem:[%s2 + $0x2f8] sm:$0xff]
      %v424 = vld [vmem:[%s2 + $0x300] sm:$0xff]
      %v425 = vld [vmem:[%s2 + $0x308] sm:$0xff]
      %v426 = vld [vmem:[%s2 + $0x310] sm:$0xff]
      %v427 = vld [vmem:[%s2 + $0x318] sm:$0xff]
      %v428 = vld [vmem:[%s2 + $0x320] sm:$0xff]
      %v429 = vld [vmem:[%s2 + $0x328] sm:$0xff]
      %v430 = vld [vmem:[%s2 + $0x330] sm:$0xff]
      %v431 = vld [vmem:[%s2 + $0x338] sm:$0xff]
      %v432 = vld [vmem:[%s2 + $0x340] sm:$0xff]
      %v433 = vld [vmem:[%s2 + $0x348] sm:$0xff]
      %v434 = vld [vmem:[%s2 + $0x350] sm:$0xff]
      %v435 = vld [vmem:[%s2 + $0x358] sm:$0xff]
      %v436 = vld [vmem:[%s2 + $0x360] sm:$0xff]
      %v437 = vld [vmem:[%s2 + $0x368] sm:$0xff]
      %v438 = vld [vmem:[%s2 + $0x370] sm:$0xff]
      %v439 = vld [vmem:[%s2 + $0x378] sm:$0xff]
      %v440 = vld [vmem:[%s2 + $0x380] sm:$0xff]
      %v441 = vld [vmem:[%s2 + $0x388] sm:$0xff]
      %v442 = vld [vmem:[%s2 + $0x390] sm:$0xff]
      %v443 = vld [vmem:[%s2 + $0x398] sm:$0xff]
      %v444 = vld [vmem:[%s2 + $0x3a0] sm:$0xff]
      %v445 = vld [vmem:[%s2 + $0x3a8] sm:$0xff]
      %v446 = vld [vmem:[%s2 + $0x3b0] sm:$0xff]
      %v447 = vld [vmem:[%s2 + $0x3b8] sm:$0xff]
      %v448 = vld [vmem:[%s2 + $0x3c0] sm:$0xff]
      %v449 = vld [vmem:[%s2 + $0x3c8] sm:$0xff]
      %v450 = vld [vmem:[%s2 + $0x3d0] sm:$0xff]
      %v451 = vld [vmem:[%s2 + $0x3d8] sm:$0xff]
      %v452 = vld [vmem:[%s2 + $0x3e0] sm:$0xff]
      %v453 = vld [vmem:[%s2 + $0x3e8] sm:$0xff]
      %v454 = vld [vmem:[%s2 + $0x3f0] sm:$0xff]
      %v455 = vld [vmem:[%s2 + $0x3f8] sm:$0xff]
      %v458 = vunpack.c.l.s4 1983009808
      %v459 = vunpack.c.0.s8 %v458
      %v460 = vlaneseq
      %v461 = vshrl.u32 %v460, 7
      %v462 = vsub.s32 %v459, %v461
      %v463 = vrot.slane %v327, %v462
      %v464 = vcombine.high %v463, %v463
      %v595 = vunpack.c.l.b16 %v328
      %v596 = vunpack.c.h.b16 %v328
      %v597 = vunpack.c.l.b16 %v329
      %v598 = vunpack.c.h.b16 %v329
      %v599 = vunpack.c.l.b16 %v330
      %v600 = vunpack.c.h.b16 %v330
      %v601 = vunpack.c.l.b16 %v331
      %v602 = vunpack.c.h.b16 %v331
      %v603 = vunpack.c.l.b16 %v332
      %v604 = vunpack.c.h.b16 %v332
      %v605 = vunpack.c.l.b16 %v333
      %v606 = vunpack.c.h.b16 %v333
      %v607 = vunpack.c.l.b16 %v334
      %v608 = vunpack.c.h.b16 %v334
      %v609 = vunpack.c.l.b16 %v335
      %v610 = vunpack.c.h.b16 %v335
      %v611 = vunpack.c.l.b16 %v336
      %v612 = vunpack.c.h.b16 %v336
      %v613 = vunpack.c.l.b16 %v337
      %v614 = vunpack.c.h.b16 %v337
      %v615 = vunpack.c.l.b16 %v338
      %v616 = vunpack.c.h.b16 %v338
      %v617 = vunpack.c.l.b16 %v339
      %v618 = vunpack.c.h.b16 %v339
      %v619 = vunpack.c.l.b16 %v340
      %v620 = vunpack.c.h.b16 %v340
      %v621 = vunpack.c.l.b16 %v341
      %v622 = vunpack.c.h.b16 %v341
      %v623 = vunpack.c.l.b16 %v342
      %v624 = vunpack.c.h.b16 %v342
      %v625 = vunpack.c.l.b16 %v343
      %v626 = vunpack.c.h.b16 %v343
      %v627 = vunpack.c.l.b16 %v344
      %v628 = vunpack.c.h.b16 %v344
      %v629 = vunpack.c.l.b16 %v345
      %v630 = vunpack.c.h.b16 %v345
      %v631 = vunpack.c.l.b16 %v346
      %v632 = vunpack.c.h.b16 %v346
      %v633 = vunpack.c.l.b16 %v347
      %v634 = vunpack.c.h.b16 %v347
      %v635 = vunpack.c.l.b16 %v348
      %v636 = vunpack.c.h.b16 %v348
      %v637 = vunpack.c.l.b16 %v349
      %v638 = vunpack.c.h.b16 %v349
      %v639 = vunpack.c.l.b16 %v350
      %v640 = vunpack.c.h.b16 %v350
      %v641 = vunpack.c.l.b16 %v351
      %v642 = vunpack.c.h.b16 %v351
      %v643 = vunpack.c.l.b16 %v352
      %v644 = vunpack.c.h.b16 %v352
      %v645 = vunpack.c.l.b16 %v353
      %v646 = vunpack.c.h.b16 %v353
      %v647 = vunpack.c.l.b16 %v354
      %v648 = vunpack.c.h.b16 %v354
      %v649 = vunpack.c.l.b16 %v355
      %v650 = vunpack.c.h.b16 %v355
      %v651 = vunpack.c.l.b16 %v356
      %v652 = vunpack.c.h.b16 %v356
      %v653 = vunpack.c.l.b16 %v357
      %v654 = vunpack.c.h.b16 %v357
      %v655 = vunpack.c.l.b16 %v358
      %v656 = vunpack.c.h.b16 %v358
      %v657 = vunpack.c.l.b16 %v359
      %v658 = vunpack.c.h.b16 %v359
      %v659 = vunpack.c.l.b16 %v360
      %v660 = vunpack.c.h.b16 %v360
      %v661 = vunpack.c.l.b16 %v361
      %v662 = vunpack.c.h.b16 %v361
      %v663 = vunpack.c.l.b16 %v362
      %v664 = vunpack.c.h.b16 %v362
      %v665 = vunpack.c.l.b16 %v363
      %v666 = vunpack.c.h.b16 %v363
      %v667 = vunpack.c.l.b16 %v364
      %v668 = vunpack.c.h.b16 %v364
      %v669 = vunpack.c.l.b16 %v365
      %v670 = vunpack.c.h.b16 %v365
      %v671 = vunpack.c.l.b16 %v366
      %v672 = vunpack.c.h.b16 %v366
      %v673 = vunpack.c.l.b16 %v367
      %v674 = vunpack.c.h.b16 %v367
      %v675 = vunpack.c.l.b16 %v368
      %v676 = vunpack.c.h.b16 %v368
      %v677 = vunpack.c.l.b16 %v369
      %v678 = vunpack.c.h.b16 %v369
      %v679 = vunpack.c.l.b16 %v370
      %v680 = vunpack.c.h.b16 %v370
      %v681 = vunpack.c.l.b16 %v371
      %v682 = vunpack.c.h.b16 %v371
      %v683 = vunpack.c.l.b16 %v372
      %v684 = vunpack.c.h.b16 %v372
      %v685 = vunpack.c.l.b16 %v373
      %v686 = vunpack.c.h.b16 %v373
      %v687 = vunpack.c.l.b16 %v374
      %v688 = vunpack.c.h.b16 %v374
      %v689 = vunpack.c.l.b16 %v375
      %v690 = vunpack.c.h.b16 %v375
      %v691 = vunpack.c.l.b16 %v376
      %v692 = vunpack.c.h.b16 %v376
      %v693 = vunpack.c.l.b16 %v377
      %v694 = vunpack.c.h.b16 %v377
      %v695 = vunpack.c.l.b16 %v378
      %v696 = vunpack.c.h.b16 %v378
      %v697 = vunpack.c.l.b16 %v379
      %v698 = vunpack.c.h.b16 %v379
      %v699 = vunpack.c.l.b16 %v380
      %v700 = vunpack.c.h.b16 %v380
      %v701 = vunpack.c.l.b16 %v381
      %v702 = vunpack.c.h.b16 %v381
      %v703 = vunpack.c.l.b16 %v382
      %v704 = vunpack.c.h.b16 %v382
      %v705 = vunpack.c.l.b16 %v383
      %v706 = vunpack.c.h.b16 %v383
      %v707 = vunpack.c.l.b16 %v384
      %v708 = vunpack.c.h.b16 %v384
      %v709 = vunpack.c.l.b16 %v385
      %v710 = vunpack.c.h.b16 %v385
      %v711 = vunpack.c.l.b16 %v386
      %v712 = vunpack.c.h.b16 %v386
      %v713 = vunpack.c.l.b16 %v387
      %v714 = vunpack.c.h.b16 %v387
      %v715 = vunpack.c.l.b16 %v388
      %v716 = vunpack.c.h.b16 %v388
      %v717 = vunpack.c.l.b16 %v389
      %v718 = vunpack.c.h.b16 %v389
      %v719 = vunpack.c.l.b16 %v390
      %v720 = vunpack.c.h.b16 %v390
      %v721 = vunpack.c.l.b16 %v391
      %v722 = vunpack.c.h.b16 %v391
      %v723 = vunpack.c.l.b16 %v392
      %v724 = vunpack.c.h.b16 %v392
      %v725 = vunpack.c.l.b16 %v393
      %v726 = vunpack.c.h.b16 %v393
      %v727 = vunpack.c.l.b16 %v394
      %v728 = vunpack.c.h.b16 %v394
      %v729 = vunpack.c.l.b16 %v395
      %v730 = vunpack.c.h.b16 %v395
      %v731 = vunpack.c.l.b16 %v396
      %v732 = vunpack.c.h.b16 %v396
      %v733 = vunpack.c.l.b16 %v397
      %v734 = vunpack.c.h.b16 %v397
      %v735 = vunpack.c.l.b16 %v398
      %v736 = vunpack.c.h.b16 %v398
      %v737 = vunpack.c.l.b16 %v399
      %v738 = vunpack.c.h.b16 %v399
      %v739 = vunpack.c.l.b16 %v400
      %v740 = vunpack.c.h.b16 %v400
      %v741 = vunpack.c.l.b16 %v401
      %v742 = vunpack.c.h.b16 %v401
      %v743 = vunpack.c.l.b16 %v402
      %v744 = vunpack.c.h.b16 %v402
      %v745 = vunpack.c.l.b16 %v403
      %v746 = vunpack.c.h.b16 %v403
      %v747 = vunpack.c.l.b16 %v404
      %v748 = vunpack.c.h.b16 %v404
      %v749 = vunpack.c.l.b16 %v405
      %v750 = vunpack.c.h.b16 %v405
      %v751 = vunpack.c.l.b16 %v406
      %v752 = vunpack.c.h.b16 %v406
      %v753 = vunpack.c.l.b16 %v407
      %v754 = vunpack.c.h.b16 %v407
      %v755 = vunpack.c.l.b16 %v408
      %v756 = vunpack.c.h.b16 %v408
      %v757 = vunpack.c.l.b16 %v409
      %v758 = vunpack.c.h.b16 %v409
      %v759 = vunpack.c.l.b16 %v410
      %v760 = vunpack.c.h.b16 %v410
      %v761 = vunpack.c.l.b16 %v411
      %v762 = vunpack.c.h.b16 %v411
      %v763 = vunpack.c.l.b16 %v412
      %v764 = vunpack.c.h.b16 %v412
      %v765 = vunpack.c.l.b16 %v413
      %v766 = vunpack.c.h.b16 %v413
      %v767 = vunpack.c.l.b16 %v414
      %v768 = vunpack.c.h.b16 %v414
      %v769 = vunpack.c.l.b16 %v415
      %v770 = vunpack.c.h.b16 %v415
      %v771 = vunpack.c.l.b16 %v416
      %v772 = vunpack.c.h.b16 %v416
      %v773 = vunpack.c.l.b16 %v417
      %v774 = vunpack.c.h.b16 %v417
      %v775 = vunpack.c.l.b16 %v418
      %v776 = vunpack.c.h.b16 %v418
      %v777 = vunpack.c.l.b16 %v419
      %v778 = vunpack.c.h.b16 %v419
      %v779 = vunpack.c.l.b16 %v420
      %v780 = vunpack.c.h.b16 %v420
      %v781 = vunpack.c.l.b16 %v421
      %v782 = vunpack.c.h.b16 %v421
      %v783 = vunpack.c.l.b16 %v422
      %v784 = vunpack.c.h.b16 %v422
      %v785 = vunpack.c.l.b16 %v423
      %v786 = vunpack.c.h.b16 %v423
      %v787 = vunpack.c.l.b16 %v424
      %v788 = vunpack.c.h.b16 %v424
      %v789 = vunpack.c.l.b16 %v425
      %v790 = vunpack.c.h.b16 %v425
      %v791 = vunpack.c.l.b16 %v426
      %v792 = vunpack.c.h.b16 %v426
      %v793 = vunpack.c.l.b16 %v427
      %v794 = vunpack.c.h.b16 %v427
      %v795 = vunpack.c.l.b16 %v428
      %v796 = vunpack.c.h.b16 %v428
      %v797 = vunpack.c.l.b16 %v429
      %v798 = vunpack.c.h.b16 %v429
      %v799 = vunpack.c.l.b16 %v430
      %v800 = vunpack.c.h.b16 %v430
      %v801 = vunpack.c.l.b16 %v431
      %v802 = vunpack.c.h.b16 %v431
      %v803 = vunpack.c.l.b16 %v432
      %v804 = vunpack.c.h.b16 %v432
      %v805 = vunpack.c.l.b16 %v433
      %v806 = vunpack.c.h.b16 %v433
      %v807 = vunpack.c.l.b16 %v434
      %v808 = vunpack.c.h.b16 %v434
      %v809 = vunpack.c.l.b16 %v435
      %v810 = vunpack.c.h.b16 %v435
      %v811 = vunpack.c.l.b16 %v436
      %v812 = vunpack.c.h.b16 %v436
      %v813 = vunpack.c.l.b16 %v437
      %v814 = vunpack.c.h.b16 %v437
      %v815 = vunpack.c.l.b16 %v438
      %v816 = vunpack.c.h.b16 %v438
      %v817 = vunpack.c.l.b16 %v439
      %v818 = vunpack.c.h.b16 %v439
      %v819 = vunpack.c.l.b16 %v440
      %v820 = vunpack.c.h.b16 %v440
      %v821 = vunpack.c.l.b16 %v441
      %v822 = vunpack.c.h.b16 %v441
      %v823 = vunpack.c.l.b16 %v442
      %v824 = vunpack.c.h.b16 %v442
      %v825 = vunpack.c.l.b16 %v443
      %v826 = vunpack.c.h.b16 %v443
      %v827 = vunpack.c.l.b16 %v444
      %v828 = vunpack.c.h.b16 %v444
      %v829 = vunpack.c.l.b16 %v445
      %v830 = vunpack.c.h.b16 %v445
      %v831 = vunpack.c.l.b16 %v446
      %v832 = vunpack.c.h.b16 %v446
      %v833 = vunpack.c.l.b16 %v447
      %v834 = vunpack.c.h.b16 %v447
      %v835 = vunpack.c.l.b16 %v448
      %v836 = vunpack.c.h.b16 %v448
      %v837 = vunpack.c.l.b16 %v449
      %v838 = vunpack.c.h.b16 %v449
      %v839 = vunpack.c.l.b16 %v450
      %v840 = vunpack.c.h.b16 %v450
      %v841 = vunpack.c.l.b16 %v451
      %v842 = vunpack.c.h.b16 %v451
      %v843 = vunpack.c.l.b16 %v452
      %v844 = vunpack.c.h.b16 %v452
      %v845 = vunpack.c.l.b16 %v453
      %v846 = vunpack.c.h.b16 %v453
      %v847 = vunpack.c.l.b16 %v454
      %v848 = vunpack.c.h.b16 %v454
      %v849 = vunpack.c.l.b16 %v455
      %v850 = vunpack.c.h.b16 %v455
      %v851 = vpack.c.b16 %v603, %v595
      %v852 = vpack.c.b16 %v604, %v596
      %v853 = vpack.c.b16 %v605, %v597
      %v854 = vpack.c.b16 %v606, %v598
      %v855 = vpack.c.b16 %v607, %v599
      %v856 = vpack.c.b16 %v608, %v600
      %v857 = vpack.c.b16 %v609, %v601
      %v858 = vpack.c.b16 %v610, %v602
      %v859 = vpack.c.b16 %v619, %v611
      %v860 = vpack.c.b16 %v620, %v612
      %v861 = vpack.c.b16 %v621, %v613
      %v862 = vpack.c.b16 %v622, %v614
      %v863 = vpack.c.b16 %v623, %v615
      %v864 = vpack.c.b16 %v624, %v616
      %v865 = vpack.c.b16 %v625, %v617
      %v866 = vpack.c.b16 %v626, %v618
      %v867 = vpack.c.b16 %v635, %v627
      %v868 = vpack.c.b16 %v636, %v628
      %v869 = vpack.c.b16 %v637, %v629
      %v870 = vpack.c.b16 %v638, %v630
      %v871 = vpack.c.b16 %v639, %v631
      %v872 = vpack.c.b16 %v640, %v632
      %v873 = vpack.c.b16 %v641, %v633
      %v874 = vpack.c.b16 %v642, %v634
      %v875 = vpack.c.b16 %v651, %v643
      %v876 = vpack.c.b16 %v652, %v644
      %v877 = vpack.c.b16 %v653, %v645
      %v878 = vpack.c.b16 %v654, %v646
      %v879 = vpack.c.b16 %v655, %v647
      %v880 = vpack.c.b16 %v656, %v648
      %v881 = vpack.c.b16 %v657, %v649
      %v882 = vpack.c.b16 %v658, %v650
      %v883 = vpack.c.b16 %v667, %v659
      %v884 = vpack.c.b16 %v668, %v660
      %v885 = vpack.c.b16 %v669, %v661
      %v886 = vpack.c.b16 %v670, %v662
      %v887 = vpack.c.b16 %v671, %v663
      %v888 = vpack.c.b16 %v672, %v664
      %v889 = vpack.c.b16 %v673, %v665
      %v890 = vpack.c.b16 %v674, %v666
      %v891 = vpack.c.b16 %v683, %v675
      %v892 = vpack.c.b16 %v684, %v676
      %v893 = vpack.c.b16 %v685, %v677
      %v894 = vpack.c.b16 %v686, %v678
      %v895 = vpack.c.b16 %v687, %v679
      %v896 = vpack.c.b16 %v688, %v680
      %v897 = vpack.c.b16 %v689, %v681
      %v898 = vpack.c.b16 %v690, %v682
      %v899 = vpack.c.b16 %v699, %v691
      %v900 = vpack.c.b16 %v700, %v692
      %v901 = vpack.c.b16 %v701, %v693
      %v902 = vpack.c.b16 %v702, %v694
      %v903 = vpack.c.b16 %v703, %v695
      %v904 = vpack.c.b16 %v704, %v696
      %v905 = vpack.c.b16 %v705, %v697
      %v906 = vpack.c.b16 %v706, %v698
      %v907 = vpack.c.b16 %v715, %v707
      %v908 = vpack.c.b16 %v716, %v708
      %v909 = vpack.c.b16 %v717, %v709
      %v910 = vpack.c.b16 %v718, %v710
      %v911 = vpack.c.b16 %v719, %v711
      %v912 = vpack.c.b16 %v720, %v712
      %v913 = vpack.c.b16 %v721, %v713
      %v914 = vpack.c.b16 %v722, %v714
      %v915 = vpack.c.b16 %v731, %v723
      %v916 = vpack.c.b16 %v732, %v724
      %v917 = vpack.c.b16 %v733, %v725
      %v918 = vpack.c.b16 %v734, %v726
      %v919 = vpack.c.b16 %v735, %v727
      %v920 = vpack.c.b16 %v736, %v728
      %v921 = vpack.c.b16 %v737, %v729
      %v922 = vpack.c.b16 %v738, %v730
      %v923 = vpack.c.b16 %v747, %v739
      %v924 = vpack.c.b16 %v748, %v740
      %v925 = vpack.c.b16 %v749, %v741
      %v926 = vpack.c.b16 %v750, %v742
      %v927 = vpack.c.b16 %v751, %v743
      %v928 = vpack.c.b16 %v752, %v744
      %v929 = vpack.c.b16 %v753, %v745
      %v930 = vpack.c.b16 %v754, %v746
      %v931 = vpack.c.b16 %v763, %v755
      %v932 = vpack.c.b16 %v764, %v756
      %v933 = vpack.c.b16 %v765, %v757
      %v934 = vpack.c.b16 %v766, %v758
      %v935 = vpack.c.b16 %v767, %v759
      %v936 = vpack.c.b16 %v768, %v760
      %v937 = vpack.c.b16 %v769, %v761
      %v938 = vpack.c.b16 %v770, %v762
      %v939 = vpack.c.b16 %v779, %v771
      %v940 = vpack.c.b16 %v780, %v772
      %v941 = vpack.c.b16 %v781, %v773
      %v942 = vpack.c.b16 %v782, %v774
      %v943 = vpack.c.b16 %v783, %v775
      %v944 = vpack.c.b16 %v784, %v776
      %v945 = vpack.c.b16 %v785, %v777
      %v946 = vpack.c.b16 %v786, %v778
      %v947 = vpack.c.b16 %v795, %v787
      %v948 = vpack.c.b16 %v796, %v788
      %v949 = vpack.c.b16 %v797, %v789
      %v950 = vpack.c.b16 %v798, %v790
      %v951 = vpack.c.b16 %v799, %v791
      %v952 = vpack.c.b16 %v800, %v792
      %v953 = vpack.c.b16 %v801, %v793
      %v954 = vpack.c.b16 %v802, %v794
      %v955 = vpack.c.b16 %v811, %v803
      %v956 = vpack.c.b16 %v812, %v804
      %v957 = vpack.c.b16 %v813, %v805
      %v958 = vpack.c.b16 %v814, %v806
      %v959 = vpack.c.b16 %v815, %v807
      %v960 = vpack.c.b16 %v816, %v808
      %v961 = vpack.c.b16 %v817, %v809
      %v962 = vpack.c.b16 %v818, %v810
      %v963 = vpack.c.b16 %v827, %v819
      %v964 = vpack.c.b16 %v828, %v820
      %v965 = vpack.c.b16 %v829, %v821
      %v966 = vpack.c.b16 %v830, %v822
      %v967 = vpack.c.b16 %v831, %v823
      %v968 = vpack.c.b16 %v832, %v824
      %v969 = vpack.c.b16 %v833, %v825
      %v970 = vpack.c.b16 %v834, %v826
      %v971 = vpack.c.b16 %v843, %v835
      %v972 = vpack.c.b16 %v844, %v836
      %v973 = vpack.c.b16 %v845, %v837
      %v974 = vpack.c.b16 %v846, %v838
      %v975 = vpack.c.b16 %v847, %v839
      %v976 = vpack.c.b16 %v848, %v840
      %v977 = vpack.c.b16 %v849, %v841
      %v978 = vpack.c.b16 %v850, %v842
      %1107 = vmatprep.subr.bf16.mxu0 %v852
      %1108 = vmatpush1.bf16.msra.mxu0 %v851
      %1109 = vmatprep.subr.bf16.mxu0 %v860
      %1110 = vmatpush1.bf16.msra.mxu0 %v859
      %1111 = vmatprep.subr.bf16.mxu0 %v868
      %1112 = vmatpush1.bf16.msra.mxu0 %v867
      %1113 = vmatprep.subr.bf16.mxu0 %v876
      %1114 = vmatpush1.bf16.msra.mxu0 %v875
      %1115 = vmatprep.subr.bf16.mxu0 %v884
      %1116 = vmatpush1.bf16.msra.mxu0 %v883
      %1117 = vmatprep.subr.bf16.mxu0 %v892
      %1118 = vmatpush1.bf16.msra.mxu0 %v891
      %1119 = vmatprep.subr.bf16.mxu0 %v900
      %1120 = vmatpush1.bf16.msra.mxu0 %v899
      %1121 = vmatprep.subr.bf16.mxu0 %v908
      %1122 = vmatpush1.bf16.msra.mxu0 %v907
      %1123 = vmatprep.subr.bf16.mxu0 %v916
      %1124 = vmatpush1.bf16.msra.mxu0 %v915
      %1125 = vmatprep.subr.bf16.mxu0 %v924
      %1126 = vmatpush1.bf16.msra.mxu0 %v923
      %1127 = vmatprep.subr.bf16.mxu0 %v932
      %1128 = vmatpush1.bf16.msra.mxu0 %v931
      %1129 = vmatprep.subr.bf16.mxu0 %v940
      %1130 = vmatpush1.bf16.msra.mxu0 %v939
      %1131 = vmatprep.subr.bf16.mxu0 %v948
      %1132 = vmatpush1.bf16.msra.mxu0 %v947
      %1133 = vmatprep.subr.bf16.mxu0 %v956
      %1134 = vmatpush1.bf16.msra.mxu0 %v955
      %1135 = vmatprep.subr.bf16.mxu0 %v964
      %1136 = vmatpush1.bf16.msra.mxu0 %v963
      %1137 = vmatprep.subr.bf16.mxu0 %v972
      %1138 = vmatpush1.bf16.msra.mxu0 %v971
      %1139 = vmatprep.mubr.bf16.mxu0 %v464
      %1140 = vmatmul.mubr.bf16.gmra.mrb[0].mxu0 %v463
      %v1141 = vpop.f32.mrb[0].mxu0
      %v1142 = vadd.f32 0.0, %v1141
      %v1143 = vpop.f32.mrb[0].mxu0
      %v1144 = vadd.f32 0.0, %v1143
      %v1145 = vpop.f32.mrb[0].mxu0
      %v1146 = vpop.f32.mrb[0].mxu0
      %1147 = vdwg.mxu0
      %1148 = vmatprep.subr.bf16.mxu0 %v854
      %1149 = vmatpush1.bf16.msra.mxu0 %v853
      %1150 = vmatprep.subr.bf16.mxu0 %v862
      %1151 = vmatpush1.bf16.msra.mxu0 %v861
      %1152 = vmatprep.subr.bf16.mxu0 %v870
      %1153 = vmatpush1.bf16.msra.mxu0 %v869
      %1154 = vmatprep.subr.bf16.mxu0 %v878
      %1155 = vmatpush1.bf16.msra.mxu0 %v877
      %1156 = vmatprep.subr.bf16.mxu0 %v886
      %1157 = vmatpush1.bf16.msra.mxu0 %v885
      %1158 = vmatprep.subr.bf16.mxu0 %v894
      %1159 = vmatpush1.bf16.msra.mxu0 %v893
      %1160 = vmatprep.subr.bf16.mxu0 %v902
      %1161 = vmatpush1.bf16.msra.mxu0 %v901
      %1162 = vmatprep.subr.bf16.mxu0 %v910
      %1163 = vmatpush1.bf16.msra.mxu0 %v909
      %1164 = vmatprep.subr.bf16.mxu0 %v918
      %1165 = vmatpush1.bf16.msra.mxu0 %v917
      %1166 = vmatprep.subr.bf16.mxu0 %v926
      %1167 = vmatpush1.bf16.msra.mxu0 %v925
      %1168 = vmatprep.subr.bf16.mxu0 %v934
      %1169 = vmatpush1.bf16.msra.mxu0 %v933
      %1170 = vmatprep.subr.bf16.mxu0 %v942
      %1171 = vmatpush1.bf16.msra.mxu0 %v941
      %1172 = vmatprep.subr.bf16.mxu0 %v950
      %1173 = vmatpush1.bf16.msra.mxu0 %v949
      %1174 = vmatprep.subr.bf16.mxu0 %v958
      %1175 = vmatpush1.bf16.msra.mxu0 %v957
      %1176 = vmatprep.subr.bf16.mxu0 %v966
      %1177 = vmatpush1.bf16.msra.mxu0 %v965
      %1178 = vmatprep.subr.bf16.mxu0 %v974
      %1179 = vmatpush1.bf16.msra.mxu0 %v973
      %1180 = vmatprep.mubr.bf16.mxu0 %v464
      %1181 = vmatmul.mubr.bf16.gmra.mrb[0].mxu0 %v463
      %v1182 = vpop.f32.mrb[0].mxu0
      %v1183 = vadd.f32 0.0, %v1182
      %v1184 = vpop.f32.mrb[0].mxu0
      %v1185 = vadd.f32 0.0, %v1184
      %v1186 = vpop.f32.mrb[0].mxu0
      %v1187 = vpop.f32.mrb[0].mxu0
      %1188 = vdwg.mxu0
      %1189 = vmatprep.subr.bf16.mxu0 %v856
      %1190 = vmatpush1.bf16.msra.mxu0 %v855
      %1191 = vmatprep.subr.bf16.mxu0 %v864
      %1192 = vmatpush1.bf16.msra.mxu0 %v863
      %1193 = vmatprep.subr.bf16.mxu0 %v872
      %1194 = vmatpush1.bf16.msra.mxu0 %v871
      %1195 = vmatprep.subr.bf16.mxu0 %v880
      %1196 = vmatpush1.bf16.msra.mxu0 %v879
      %1197 = vmatprep.subr.bf16.mxu0 %v888
      %1198 = vmatpush1.bf16.msra.mxu0 %v887
      %1199 = vmatprep.subr.bf16.mxu0 %v896
      %1200 = vmatpush1.bf16.msra.mxu0 %v895
      %1201 = vmatprep.subr.bf16.mxu0 %v904
      %1202 = vmatpush1.bf16.msra.mxu0 %v903
      %1203 = vmatprep.subr.bf16.mxu0 %v912
      %1204 = vmatpush1.bf16.msra.mxu0 %v911
      %1205 = vmatprep.subr.bf16.mxu0 %v920
      %1206 = vmatpush1.bf16.msra.mxu0 %v919
      %1207 = vmatprep.subr.bf16.mxu0 %v928
      %1208 = vmatpush1.bf16.msra.mxu0 %v927
      %1209 = vmatprep.subr.bf16.mxu0 %v936
      %1210 = vmatpush1.bf16.msra.mxu0 %v935
      %1211 = vmatprep.subr.bf16.mxu0 %v944
      %1212 = vmatpush1.bf16.msra.mxu0 %v943
      %1213 = vmatprep.subr.bf16.mxu0 %v952
      %1214 = vmatpush1.bf16.msra.mxu0 %v951
      %1215 = vmatprep.subr.bf16.mxu0 %v960
      %1216 = vmatpush1.bf16.msra.mxu0 %v959
      %1217 = vmatprep.subr.bf16.mxu0 %v968
      %1218 = vmatpush1.bf16.msra.mxu0 %v967
      %1219 = vmatprep.subr.bf16.mxu0 %v976
      %1220 = vmatpush1.bf16.msra.mxu0 %v975
      %1221 = vmatprep.mubr.bf16.mxu0 %v464
      %1222 = vmatmul.mubr.bf16.gmra.mrb[0].mxu0 %v463
      %v1223 = vpop.f32.mrb[0].mxu0
      %v1224 = vadd.f32 0.0, %v1223
      %v1225 = vpop.f32.mrb[0].mxu0
      %v1226 = vadd.f32 0.0, %v1225
      %v1227 = vpop.f32.mrb[0].mxu0
      %v1228 = vpop.f32.mrb[0].mxu0
      %1229 = vdwg.mxu0
      %1230 = vmatprep.subr.bf16.mxu0 %v858
      %1231 = vmatpush1.bf16.msra.mxu0 %v857
      %1232 = vmatprep.subr.bf16.mxu0 %v866
      %1233 = vmatpush1.bf16.msra.mxu0 %v865
      %1234 = vmatprep.subr.bf16.mxu0 %v874
      %1235 = vmatpush1.bf16.msra.mxu0 %v873
      %1236 = vmatprep.subr.bf16.mxu0 %v882
      %1237 = vmatpush1.bf16.msra.mxu0 %v881
      %1238 = vmatprep.subr.bf16.mxu0 %v890
      %1239 = vmatpush1.bf16.msra.mxu0 %v889
      %1240 = vmatprep.subr.bf16.mxu0 %v898
      %1241 = vmatpush1.bf16.msra.mxu0 %v897
      %1242 = vmatprep.subr.bf16.mxu0 %v906
      %1243 = vmatpush1.bf16.msra.mxu0 %v905
      %1244 = vmatprep.subr.bf16.mxu0 %v914
      %1245 = vmatpush1.bf16.msra.mxu0 %v913
      %1246 = vmatprep.subr.bf16.mxu0 %v922
      %1247 = vmatpush1.bf16.msra.mxu0 %v921
      %1248 = vmatprep.subr.bf16.mxu0 %v930
      %1249 = vmatpush1.bf16.msra.mxu0 %v929
      %1250 = vmatprep.subr.bf16.mxu0 %v938
      %1251 = vmatpush1.bf16.msra.mxu0 %v937
      %1252 = vmatprep.subr.bf16.mxu0 %v946
      %1253 = vmatpush1.bf16.msra.mxu0 %v945
      %1254 = vmatprep.subr.bf16.mxu0 %v954
      %1255 = vmatpush1.bf16.msra.mxu0 %v953
      %1256 = vmatprep.subr.bf16.mxu0 %v962
      %1257 = vmatpush1.bf16.msra.mxu0 %v961
      %1258 = vmatprep.subr.bf16.mxu0 %v970
      %1259 = vmatpush1.bf16.msra.mxu0 %v969
      %1260 = vmatprep.subr.bf16.mxu0 %v978
      %1261 = vmatpush1.bf16.msra.mxu0 %v977
      %1262 = vmatprep.mubr.bf16.mxu0 %v464
      %1263 = vmatmul.mubr.bf16.gmra.mrb[0].mxu0 %v463
      %v1264 = vpop.f32.mrb[0].mxu0
      %v1265 = vadd.f32 0.0, %v1264
      %v1266 = vpop.f32.mrb[0].mxu0
      %v1267 = vadd.f32 0.0, %v1266
      %v1268 = vpop.f32.mrb[0].mxu0
      %v1269 = vpop.f32.mrb[0].mxu0
      %1270 = vdwg.mxu0
      %1271 = vst [vmem:[#allocation2] sm:$0xf] 0
      %vm1272 = vcmask 265216
      %1273 = vst.msk [vmem:[#allocation2 + $0x24] sm:$0xf] %vm1272, 0
      %v1274 = vld [vmem:[%s320] sm:$0xff]
      %v1275 = vld [vmem:[%s320 + $0x8] sm:$0xff]
      %v1278 = vcombine.high %v1274, %v1274
      %v1280 = vunpack.c.l.s4 1983009808
      %v1281 = vunpack.c.0.s8 %v1280
      %v1282 = vlaneseq
      %v1283 = vshrl.u32 %v1282, 7
      %v1284 = vsub.s32 %v1281, %v1283
      %v1285 = vrot.slane %v1274, %v1284
      %v1287 = vunpack.c.l.s4 1983009808
      %v1288 = vunpack.c.0.s8 %v1287
      %v1289 = vlaneseq
      %v1290 = vshrl.u32 %v1289, 7
      %v1291 = vsub.s32 %v1288, %v1290
      %v1292 = vrot.slane %v1278, %v1291
      %v1293 = vcombine.high %v1275, %v1275
      %v1295 = vunpack.c.l.s4 1983009808
      %v1296 = vunpack.c.0.s8 %v1295
      %v1297 = vlaneseq
      %v1298 = vshrl.u32 %v1297, 7
      %v1299 = vsub.s32 %v1296, %v1298
      %v1300 = vrot.slane %v1275, %v1299
      %v1302 = vunpack.c.l.s4 1983009808
      %v1303 = vunpack.c.0.s8 %v1302
      %v1304 = vlaneseq
      %v1305 = vshrl.u32 %v1304, 7
      %v1306 = vsub.s32 %v1303, %v1305
      %v1307 = vrot.slane %v1293, %v1306
      %1312 = vst [vmem:[#allocation2 + $0x4] sm:$0x33] %v1285
      %1313 = vst [vmem:[#allocation2 + $0xc] sm:$0x33] %v1292
      %1314 = vst [vmem:[#allocation2 + $0x14] sm:$0x33] %v1300
      %1315 = vst [vmem:[#allocation2 + $0x1c] sm:$0x33] %v1307
      %v1316 = vpack.c.bf16 %v1142, %v1142
      %v1317 = vpack.c.bf16 %v1144, %v1144
      %v1318 = vpack.c.bf16 %v1183, %v1183
      %v1319 = vpack.c.bf16 %v1185, %v1185
      %v1320 = vpack.c.bf16 %v1224, %v1224
      %v1321 = vpack.c.bf16 %v1226, %v1226
      %v1322 = vpack.c.bf16 %v1265, %v1265
      %v1323 = vpack.c.bf16 %v1267, %v1267
      %v1332 = vunpack.c.l.b16 %v1316
      %v1333 = vunpack.c.l.b16 %v1317
      %v1334 = vunpack.c.l.b16 %v1318
      %v1335 = vunpack.c.l.b16 %v1319
      %v1336 = vunpack.c.l.b16 %v1320
      %v1337 = vunpack.c.l.b16 %v1321
      %v1338 = vunpack.c.l.b16 %v1322
      %v1339 = vunpack.c.l.b16 %v1323
      %v1340 = vpack.c.b16 %v1333, %v1332
      %v1341 = vpack.c.b16 %v1335, %v1334
      %v1342 = vpack.c.b16 %v1337, %v1336
      %v1343 = vpack.c.b16 %v1339, %v1338
      %v1344 = vrot.slane %v1340, 6
      %v1345 = vrot.slane %v1341, 6
      %v1346 = vrot.slane %v1342, 6
      %v1347 = vrot.slane %v1343, 6
      %1352 = vst [vmem:[#allocation2 + $0x4] sm:$0xcc] %v1344
      %1353 = vst [vmem:[#allocation2 + $0xc] sm:$0xcc] %v1345
      %1354 = vst [vmem:[#allocation2 + $0x14] sm:$0xcc] %v1346
      %1355 = vst [vmem:[#allocation2 + $0x1c] sm:$0xcc] %v1347
      %v1356 = vld [vmem:[%s3] sm:$0x3]
      %v1357 = vld [vmem:[%s4] sm:$0xf]
      %v1358 = vld [vmem:[#allocation2] sm:$0xff]
      %v1359 = vld [vmem:[#allocation2 + $0x8] sm:$0xff]
      %v1360 = vld [vmem:[#allocation2 + $0x10] sm:$0xff]
      %v1361 = vld [vmem:[#allocation2 + $0x18] sm:$0xff]
      %v1362 = vld [vmem:[#allocation2 + $0x20] sm:$0xf]
      %v1363 = vld [vmem:[%s7] sm:$0xff]
      %v1365 = vcombine.high %v1363, %v1363
      %v1367 = vunpack.c.l.s4 1966171168
      %v1368 = vunpack.c.0.s8 %v1367
      %v1369 = vlaneseq
      %v1370 = vshrl.u32 %v1369, 7
      %v1371 = vsub.s32 %v1368, %v1370
      %v1372 = vrot.slane %v1363, %v1371
      %v1374 = vunpack.c.l.s4 1966171168
      %v1375 = vunpack.c.0.s8 %v1374
      %v1376 = vlaneseq
      %v1377 = vshrl.u32 %v1376, 7
      %v1378 = vsub.s32 %v1375, %v1377
      %v1379 = vrot.slane %v1365, %v1378
      %v1380 = vcombine.high %v1372, %v1372
      %v1381 = vcombine.high %v1379, %v1379
      %v1383 = vunpack.c.l.s4 1966171168
      %v1384 = vunpack.c.0.s8 %v1383
      %v1385 = vlaneseq
      %v1386 = vshrl.u32 %v1385, 7
      %v1387 = vsub.s32 %v1384, %v1386
      %v1388 = vrot.slane %v1372, %v1387
      %v1390 = vunpack.c.l.s4 1966171168
      %v1391 = vunpack.c.0.s8 %v1390
      %v1392 = vlaneseq
      %v1393 = vshrl.u32 %v1392, 7
      %v1394 = vsub.s32 %v1391, %v1393
      %v1395 = vrot.slane %v1379, %v1394
      %v1397 = vunpack.c.l.s4 1966171168
      %v1398 = vunpack.c.0.s8 %v1397
      %v1399 = vlaneseq
      %v1400 = vshrl.u32 %v1399, 7
      %v1401 = vsub.s32 %v1398, %v1400
      %v1402 = vrot.slane %v1380, %v1401
      %v1404 = vunpack.c.l.s4 1966171168
      %v1405 = vunpack.c.0.s8 %v1404
      %v1406 = vlaneseq
      %v1407 = vshrl.u32 %v1406, 7
      %v1408 = vsub.s32 %v1405, %v1407
      %v1409 = vrot.slane %v1381, %v1408
      %v1410 = vcombine.high %v1388, %v1388
      %v1411 = vcombine.high %v1395, %v1395
      %v1412 = vcombine.high %v1402, %v1402
      %v1413 = vcombine.high %v1409, %v1409
      %v1415 = vpack.i.b16 %v1388, %v1388
      %v1417 = vlaneseq
      %v1418 = vshrl.u32 %v1417, 7
      %v1419 = vsub.s32 0, %v1418
      %v1420 = vrot.slane %v1415, %v1419
      %v1422 = vpack.i.b16 %v1402, %v1402
      %v1424 = vlaneseq
      %v1425 = vshrl.u32 %v1424, 7
      %v1426 = vsub.s32 0, %v1425
      %v1427 = vrot.slane %v1422, %v1426
      %v1429 = vpack.i.b16 %v1410, %v1410
      %v1431 = vlaneseq
      %v1432 = vshrl.u32 %v1431, 7
      %v1433 = vsub.s32 0, %v1432
      %v1434 = vrot.slane %v1429, %v1433
      %v1436 = vpack.i.b16 %v1412, %v1412
      %v1438 = vlaneseq
      %v1439 = vshrl.u32 %v1438, 7
      %v1440 = vsub.s32 0, %v1439
      %v1441 = vrot.slane %v1436, %v1440
      %v1443 = vpack.i.b16 %v1395, %v1395
      %v1445 = vlaneseq
      %v1446 = vshrl.u32 %v1445, 7
      %v1447 = vsub.s32 0, %v1446
      %v1448 = vrot.slane %v1443, %v1447
      %v1450 = vpack.i.b16 %v1409, %v1409
      %v1452 = vlaneseq
      %v1453 = vshrl.u32 %v1452, 7
      %v1454 = vsub.s32 0, %v1453
      %v1455 = vrot.slane %v1450, %v1454
      %v1457 = vpack.i.b16 %v1411, %v1411
      %v1459 = vlaneseq
      %v1460 = vshrl.u32 %v1459, 7
      %v1461 = vsub.s32 0, %v1460
      %v1462 = vrot.slane %v1457, %v1461
      %v1464 = vpack.i.b16 %v1413, %v1413
      %v1466 = vlaneseq
      %v1467 = vshrl.u32 %v1466, 7
      %v1468 = vsub.s32 0, %v1467
      %v1469 = vrot.slane %v1464, %v1468
      %v1478 = vunpack.c.l.b16 %v1420
      %v1479 = vunpack.c.l.b16 %v1427
      %v1480 = vunpack.c.l.b16 %v1434
      %v1481 = vunpack.c.l.b16 %v1441
      %v1482 = vunpack.c.l.b16 %v1448
      %v1483 = vunpack.c.l.b16 %v1455
      %v1484 = vunpack.c.l.b16 %v1462
      %v1485 = vunpack.c.l.b16 %v1469
      %v1486 = vpack.c.b16 %v1479, %v1478
      %v1487 = vpack.c.b16 %v1481, %v1480
      %v1488 = vpack.c.b16 %v1483, %v1482
      %v1489 = vpack.c.b16 %v1485, %v1484
      %1490 = vrot.lane.b32.xlu0 %v1486, 95
      %v1491 = vpop.permute.xlu0 %1490
      %1492 = vrot.lane.b32.xlu0 %v1487, 95
      %v1493 = vpop.permute.xlu0 %1492
      %1494 = vrot.lane.b32.xlu0 %v1488, 95
      %v1495 = vpop.permute.xlu0 %1494
      %1496 = vrot.lane.b32.xlu0 %v1489, 95
      %v1497 = vpop.permute.xlu0 %1496
      %v1498 = vrot.slane %v1491, 4
      %v1499 = vrot.slane %v1493, 4
      %v1500 = vrot.slane %v1495, 4
      %v1501 = vrot.slane %v1497, 4
      %vm1502 = vcmask 777216
      %v1503 = vsel %vm1502, %v1498, %v1491
      %vm1504 = vcmask 1043456
      %v1505 = vsel %vm1504, %v1498, %v1499
      %v1506 = vsel %vm1502, %v1505, %v1493
      %v1507 = vsel %vm1504, %v1499, %v1500
      %v1508 = vsel %vm1502, %v1507, %v1495
      %v1509 = vsel %vm1504, %v1500, %v1501
      %v1510 = vsel %vm1502, %v1509, %v1497
      %v1516 = vmul.bf16 %v1358, %v1503
      %v1517 = vmul.bf16 %v1359, %v1506
      %v1518 = vmul.bf16 %v1360, %v1508
      %v1519 = vmul.bf16 %v1361, %v1510
      %v1520 = vmul.bf16 %v1362, %v1501
      %1526 = vrot.lane.b32.xlu0 %v1516, 33
      %v1527 = vpop.permute.xlu0 %1526
      %1528 = vrot.lane.b32.xlu0 %v1517, 33
      %v1529 = vpop.permute.xlu0 %1528
      %1530 = vrot.lane.b32.xlu0 %v1518, 33
      %v1531 = vpop.permute.xlu0 %1530
      %1532 = vrot.lane.b32.xlu0 %v1519, 33
      %v1533 = vpop.permute.xlu0 %1532
      %1534 = vrot.lane.b32.xlu0 %v1520, 33
      %v1535 = vpop.permute.xlu0 %1534
      %v1536 = vrot.slane %v1527, 4
      %v1537 = vrot.slane %v1529, 4
      %v1538 = vrot.slane %v1531, 4
      %v1539 = vrot.slane %v1533, 4
      %v1540 = vrot.slane %v1535, 4
      %v1541 = vsel %vm1504, %v1536, %v1537
      %vm1542 = vcmask 269312
      %v1543 = vsel %vm1542, %v1527, %v1541
      %v1544 = vsel %vm1504, %v1537, %v1538
      %v1545 = vsel %vm1542, %v1529, %v1544
      %v1546 = vsel %vm1504, %v1538, %v1539
      %v1547 = vsel %vm1542, %v1531, %v1546
      %v1548 = vsel %vm1504, %v1539, %v1540
      %v1549 = vsel %vm1542, %v1533, %v1548
      %1554 = vst [vmem:[#allocation4] sm:$0xff] %v1543
      %1555 = vst [vmem:[#allocation4 + $0x8] sm:$0xff] %v1545
      %1556 = vst [vmem:[#allocation4 + $0x10] sm:$0xff] %v1547
      %1557 = vst [vmem:[#allocation4 + $0x18] sm:$0xff] %v1549
      %v1558 = vld [vmem:[#allocation2] sm:$0xff]
      %v1559 = vld [vmem:[#allocation2 + $0x8] sm:$0xff]
      %v1560 = vld [vmem:[#allocation2 + $0x10] sm:$0xff]
      %v1561 = vld [vmem:[#allocation2 + $0x18] sm:$0xff]
      %v1562 = vld [vmem:[#allocation2 + $0x20] sm:$0xf]
      %1568 = vrot.lane.b32.xlu0 %v1558, 32
      %v1569 = vpop.permute.xlu0 %1568
      %1570 = vrot.lane.b32.xlu0 %v1559, 32
      %v1571 = vpop.permute.xlu0 %1570
      %1572 = vrot.lane.b32.xlu0 %v1560, 32
      %v1573 = vpop.permute.xlu0 %1572
      %1574 = vrot.lane.b32.xlu0 %v1561, 32
      %v1575 = vpop.permute.xlu0 %1574
      %1576 = vrot.lane.b32.xlu0 %v1562, 32
      %v1577 = vpop.permute.xlu0 %1576
      %v1578 = vrot.slane %v1569, 4
      %v1579 = vrot.slane %v1571, 4
      %v1580 = vrot.slane %v1573, 4
      %v1581 = vrot.slane %v1575, 4
      %v1582 = vrot.slane %v1577, 4
      %v1583 = vsel %vm1504, %v1578, %v1579
      %vm1584 = vcmask 261120
      %v1585 = vsel %vm1584, %v1569, %v1583
      %v1586 = vsel %vm1504, %v1579, %v1580
      %v1587 = vsel %vm1584, %v1571, %v1586
      %v1588 = vsel %vm1504, %v1580, %v1581
      %v1589 = vsel %vm1584, %v1573, %v1588
      %v1590 = vsel %vm1504, %v1581, %v1582
      %v1591 = vsel %vm1584, %v1575, %v1590
      %1596 = vst [vmem:[#allocation4 + $0x20] sm:$0xff] %v1585
      %1597 = vst [vmem:[#allocation4 + $0x28] sm:$0xff] %v1587
      %1598 = vst [vmem:[#allocation4 + $0x30] sm:$0xff] %v1589
      %1599 = vst [vmem:[#allocation4 + $0x38] sm:$0xff] %v1591
      %v1600 = vld [vmem:[#allocation2] sm:$0xff]
      %v1601 = vld [vmem:[#allocation2 + $0x8] sm:$0xff]
      %v1602 = vld [vmem:[#allocation2 + $0x10] sm:$0xff]
      %v1603 = vld [vmem:[#allocation2 + $0x18] sm:$0xff]
      %v1604 = vld [vmem:[#allocation2 + $0x20] sm:$0xf]
      %v1605 = vld [vmem:[%s7] sm:$0xff]
      %v1607 = vcombine.high %v1605, %v1605
      %v1609 = vunpack.c.l.s4 1966171168
      %v1610 = vunpack.c.0.s8 %v1609
      %v1611 = vlaneseq
      %v1612 = vshrl.u32 %v1611, 7
      %v1613 = vsub.s32 %v1610, %v1612
      %v1614 = vrot.slane %v1605, %v1613
      %v1616 = vunpack.c.l.s4 1966171168
      %v1617 = vunpack.c.0.s8 %v1616
      %v1618 = vlaneseq
      %v1619 = vshrl.u32 %v1618, 7
      %v1620 = vsub.s32 %v1617, %v1619
      %v1621 = vrot.slane %v1607, %v1620
      %v1622 = vcombine.high %v1614, %v1614
      %v1623 = vcombine.high %v1621, %v1621
      %v1625 = vunpack.c.l.s4 1966171168
      %v1626 = vunpack.c.0.s8 %v1625
      %v1627 = vlaneseq
      %v1628 = vshrl.u32 %v1627, 7
      %v1629 = vsub.s32 %v1626, %v1628
      %v1630 = vrot.slane %v1614, %v1629
      %v1632 = vunpack.c.l.s4 1966171168
      %v1633 = vunpack.c.0.s8 %v1632
      %v1634 = vlaneseq
      %v1635 = vshrl.u32 %v1634, 7
      %v1636 = vsub.s32 %v1633, %v1635
      %v1637 = vrot.slane %v1621, %v1636
      %v1639 = vunpack.c.l.s4 1966171168
      %v1640 = vunpack.c.0.s8 %v1639
      %v1641 = vlaneseq
      %v1642 = vshrl.u32 %v1641, 7
      %v1643 = vsub.s32 %v1640, %v1642
      %v1644 = vrot.slane %v1622, %v1643
      %v1646 = vunpack.c.l.s4 1966171168
      %v1647 = vunpack.c.0.s8 %v1646
      %v1648 = vlaneseq
      %v1649 = vshrl.u32 %v1648, 7
      %v1650 = vsub.s32 %v1647, %v1649
      %v1651 = vrot.slane %v1623, %v1650
      %v1652 = vcombine.high %v1630, %v1630
      %v1653 = vcombine.high %v1637, %v1637
      %v1654 = vcombine.high %v1644, %v1644
      %v1655 = vcombine.high %v1651, %v1651
      %v1657 = vshrl.u32 %v1630, 16
      %v1658 = vpack.i.b16 %v1657, %v1657
      %v1660 = vlaneseq
      %v1661 = vshrl.u32 %v1660, 7
      %v1662 = vsub.s32 0, %v1661
      %v1663 = vrot.slane %v1658, %v1662
      %v1665 = vshrl.u32 %v1644, 16
      %v1666 = vpack.i.b16 %v1665, %v1665
      %v1668 = vlaneseq
      %v1669 = vshrl.u32 %v1668, 7
      %v1670 = vsub.s32 0, %v1669
      %v1671 = vrot.slane %v1666, %v1670
      %v1673 = vshrl.u32 %v1652, 16
      %v1674 = vpack.i.b16 %v1673, %v1673
      %v1676 = vlaneseq
      %v1677 = vshrl.u32 %v1676, 7
      %v1678 = vsub.s32 0, %v1677
      %v1679 = vrot.slane %v1674, %v1678
      %v1681 = vshrl.u32 %v1654, 16
      %v1682 = vpack.i.b16 %v1681, %v1681
      %v1684 = vlaneseq
      %v1685 = vshrl.u32 %v1684, 7
      %v1686 = vsub.s32 0, %v1685
      %v1687 = vrot.slane %v1682, %v1686
      %v1689 = vshrl.u32 %v1637, 16
      %v1690 = vpack.i.b16 %v1689, %v1689
      %v1692 = vlaneseq
      %v1693 = vshrl.u32 %v1692, 7
      %v1694 = vsub.s32 0, %v1693
      %v1695 = vrot.slane %v1690, %v1694
      %v1697 = vshrl.u32 %v1651, 16
      %v1698 = vpack.i.b16 %v1697, %v1697
      %v1700 = vlaneseq
      %v1701 = vshrl.u32 %v1700, 7
      %v1702 = vsub.s32 0, %v1701
      %v1703 = vrot.slane %v1698, %v1702
      %v1705 = vshrl.u32 %v1653, 16
      %v1706 = vpack.i.b16 %v1705, %v1705
      %v1708 = vlaneseq
      %v1709 = vshrl.u32 %v1708, 7
      %v1710 = vsub.s32 0, %v1709
      %v1711 = vrot.slane %v1706, %v1710
      %v1713 = vshrl.u32 %v1655, 16
      %v1714 = vpack.i.b16 %v1713, %v1713
      %v1716 = vlaneseq
      %v1717 = vshrl.u32 %v1716, 7
      %v1718 = vsub.s32 0, %v1717
      %v1719 = vrot.slane %v1714, %v1718
      %v1728 = vunpack.c.l.b16 %v1663
      %v1729 = vunpack.c.l.b16 %v1671
      %v1730 = vunpack.c.l.b16 %v1679
      %v1731 = vunpack.c.l.b16 %v1687
      %v1732 = vunpack.c.l.b16 %v1695
      %v1733 = vunpack.c.l.b16 %v1703
      %v1734 = vunpack.c.l.b16 %v1711
      %v1735 = vunpack.c.l.b16 %v1719
      %v1736 = vpack.c.b16 %v1729, %v1728
      %v1737 = vpack.c.b16 %v1731, %v1730
      %v1738 = vpack.c.b16 %v1733, %v1732
      %v1739 = vpack.c.b16 %v1735, %v1734
      %1740 = vrot.lane.b32.xlu0 %v1736, 97
      %v1741 = vpop.permute.xlu0 %1740
      %1742 = vrot.lane.b32.xlu0 %v1737, 97
      %v1743 = vpop.permute.xlu0 %1742
      %1744 = vrot.lane.b32.xlu0 %v1738, 97
      %v1745 = vpop.permute.xlu0 %1744
      %1746 = vrot.lane.b32.xlu0 %v1739, 97
      %v1747 = vpop.permute.xlu0 %1746
      %v1748 = vrot.slane %v1741, 4
      %v1749 = vrot.slane %v1743, 4
      %v1750 = vrot.slane %v1745, 4
      %v1751 = vrot.slane %v1747, 4
      %vm1752 = vcmask 793600
      %v1753 = vsel %vm1752, %v1748, %v1741
      %v1754 = vsel %vm1504, %v1748, %v1749
      %v1755 = vsel %vm1752, %v1754, %v1743
      %v1756 = vsel %vm1504, %v1749, %v1750
      %v1757 = vsel %vm1752, %v1756, %v1745
      %v1758 = vsel %vm1504, %v1750, %v1751
      %v1759 = vsel %vm1752, %v1758, %v1747
      %v1765 = vmul.bf16 %v1600, %v1753
      %v1766 = vmul.bf16 %v1601, %v1755
      %v1767 = vmul.bf16 %v1602, %v1757
      %v1768 = vmul.bf16 %v1603, %v1759
      %v1769 = vmul.bf16 %v1604, %v1751
      %1775 = vrot.lane.b32.xlu0 %v1765, 31
      %v1776 = vpop.permute.xlu0 %1775
      %1777 = vrot.lane.b32.xlu0 %v1766, 31
      %v1778 = vpop.permute.xlu0 %1777
      %1779 = vrot.lane.b32.xlu0 %v1767, 31
      %v1780 = vpop.permute.xlu0 %1779
      %1781 = vrot.lane.b32.xlu0 %v1768, 31
      %v1782 = vpop.permute.xlu0 %1781
      %1783 = vrot.lane.b32.xlu0 %v1769, 31
      %v1784 = vpop.permute.xlu0 %1783
      %v1785 = vrot.slane %v1776, 4
      %v1786 = vrot.slane %v1778, 4
      %v1787 = vrot.slane %v1780, 4
      %v1788 = vrot.slane %v1782, 4
      %v1789 = vrot.slane %v1784, 4
      %v1790 = vsel %vm1504, %v1785, %v1786
      %vm1791 = vcmask 252928
      %v1792 = vsel %vm1791, %v1776, %v1790
      %v1793 = vsel %vm1504, %v1786, %v1787
      %v1794 = vsel %vm1791, %v1778, %v1793
      %v1795 = vsel %vm1504, %v1787, %v1788
      %v1796 = vsel %vm1791, %v1780, %v1795
      %v1797 = vsel %vm1504, %v1788, %v1789
      %v1798 = vsel %vm1791, %v1782, %v1797
      %1803 = vst [vmem:[#allocation4 + $0x40] sm:$0xff] %v1792
      %1804 = vst [vmem:[#allocation4 + $0x48] sm:$0xff] %v1794
      %1805 = vst [vmem:[#allocation4 + $0x50] sm:$0xff] %v1796
      %1806 = vst [vmem:[#allocation4 + $0x58] sm:$0xff] %v1798
      %v1807 = vld [vmem:[#allocation2] sm:$0xff]
      %v1808 = vld [vmem:[#allocation2 + $0x8] sm:$0xff]
      %v1809 = vld [vmem:[#allocation2 + $0x10] sm:$0xff]
      %v1810 = vld [vmem:[#allocation2 + $0x18] sm:$0xff]
      %v1811 = vld [vmem:[#allocation2 + $0x20] sm:$0xf]
      %v1812 = vld [vmem:[%s7] sm:$0xff]
      %v1814 = vcombine.high %v1812, %v1812
      %v1816 = vunpack.c.l.s4 1966171168
      %v1817 = vunpack.c.0.s8 %v1816
      %v1818 = vlaneseq
      %v1819 = vshrl.u32 %v1818, 7
      %v1820 = vsub.s32 %v1817, %v1819
      %v1821 = vrot.slane %v1812, %v1820
      %v1823 = vunpack.c.l.s4 1966171168
      %v1824 = vunpack.c.0.s8 %v1823
      %v1825 = vlaneseq
      %v1826 = vshrl.u32 %v1825, 7
      %v1827 = vsub.s32 %v1824, %v1826
      %v1828 = vrot.slane %v1814, %v1827
      %v1829 = vcombine.high %v1821, %v1821
      %v1830 = vcombine.high %v1828, %v1828
      %v1832 = vunpack.c.l.s4 1966171168
      %v1833 = vunpack.c.0.s8 %v1832
      %v1834 = vlaneseq
      %v1835 = vshrl.u32 %v1834, 7
      %v1836 = vsub.s32 %v1833, %v1835
      %v1837 = vrot.slane %v1821, %v1836
      %v1839 = vunpack.c.l.s4 1966171168
      %v1840 = vunpack.c.0.s8 %v1839
      %v1841 = vlaneseq
      %v1842 = vshrl.u32 %v1841, 7
      %v1843 = vsub.s32 %v1840, %v1842
      %v1844 = vrot.slane %v1828, %v1843
      %v1846 = vunpack.c.l.s4 1966171168
      %v1847 = vunpack.c.0.s8 %v1846
      %v1848 = vlaneseq
      %v1849 = vshrl.u32 %v1848, 7
      %v1850 = vsub.s32 %v1847, %v1849
      %v1851 = vrot.slane %v1829, %v1850
      %v1853 = vunpack.c.l.s4 1966171168
      %v1854 = vunpack.c.0.s8 %v1853
      %v1855 = vlaneseq
      %v1856 = vshrl.u32 %v1855, 7
      %v1857 = vsub.s32 %v1854, %v1856
      %v1858 = vrot.slane %v1830, %v1857
      %v1859 = vcombine.high %v1837, %v1837
      %v1860 = vcombine.high %v1844, %v1844
      %v1861 = vcombine.high %v1851, %v1851
      %v1862 = vcombine.high %v1858, %v1858
      %v1864 = vpack.i.b16 %v1837, %v1837
      %v1866 = vlaneseq
      %v1867 = vshrl.u32 %v1866, 7
      %v1868 = vsub.s32 0, %v1867
      %v1869 = vrot.slane %v1864, %v1868
      %v1871 = vpack.i.b16 %v1851, %v1851
      %v1873 = vlaneseq
      %v1874 = vshrl.u32 %v1873, 7
      %v1875 = vsub.s32 0, %v1874
      %v1876 = vrot.slane %v1871, %v1875
      %v1878 = vpack.i.b16 %v1859, %v1859
      %v1880 = vlaneseq
      %v1881 = vshrl.u32 %v1880, 7
      %v1882 = vsub.s32 0, %v1881
      %v1883 = vrot.slane %v1878, %v1882
      %v1885 = vpack.i.b16 %v1861, %v1861
      %v1887 = vlaneseq
      %v1888 = vshrl.u32 %v1887, 7
      %v1889 = vsub.s32 0, %v1888
      %v1890 = vrot.slane %v1885, %v1889
      %v1892 = vpack.i.b16 %v1844, %v1844
      %v1894 = vlaneseq
      %v1895 = vshrl.u32 %v1894, 7
      %v1896 = vsub.s32 0, %v1895
      %v1897 = vrot.slane %v1892, %v1896
      %v1899 = vpack.i.b16 %v1858, %v1858
      %v1901 = vlaneseq
      %v1902 = vshrl.u32 %v1901, 7
      %v1903 = vsub.s32 0, %v1902
      %v1904 = vrot.slane %v1899, %v1903
      %v1906 = vpack.i.b16 %v1860, %v1860
      %v1908 = vlaneseq
      %v1909 = vshrl.u32 %v1908, 7
      %v1910 = vsub.s32 0, %v1909
      %v1911 = vrot.slane %v1906, %v1910
      %v1913 = vpack.i.b16 %v1862, %v1862
      %v1915 = vlaneseq
      %v1916 = vshrl.u32 %v1915, 7
      %v1917 = vsub.s32 0, %v1916
      %v1918 = vrot.slane %v1913, %v1917
      %v1927 = vunpack.c.l.b16 %v1869
      %v1928 = vunpack.c.l.b16 %v1876
      %v1929 = vunpack.c.l.b16 %v1883
      %v1930 = vunpack.c.l.b16 %v1890
      %v1931 = vunpack.c.l.b16 %v1897
      %v1932 = vunpack.c.l.b16 %v1904
      %v1933 = vunpack.c.l.b16 %v1911
      %v1934 = vunpack.c.l.b16 %v1918
      %v1935 = vpack.c.b16 %v1928, %v1927
      %v1936 = vpack.c.b16 %v1930, %v1929
      %v1937 = vpack.c.b16 %v1932, %v1931
      %v1938 = vpack.c.b16 %v1934, %v1933
      %1939 = vrot.lane.b32.xlu0 %v1935, 127
      %v1940 = vpop.permute.xlu0 %1939
      %1941 = vrot.lane.b32.xlu0 %v1936, 127
      %v1942 = vpop.permute.xlu0 %1941
      %1943 = vrot.lane.b32.xlu0 %v1937, 127
      %v1944 = vpop.permute.xlu0 %1943
      %1945 = vrot.lane.b32.xlu0 %v1938, 127
      %v1946 = vpop.permute.xlu0 %1945
      %v1947 = vrot.slane %v1940, 4
      %v1948 = vrot.slane %v1942, 4
      %v1949 = vrot.slane %v1944, 4
      %v1950 = vrot.slane %v1946, 4
      %vm1951 = vcmask 1039360
      %v1952 = vsel %vm1951, %v1947, %v1940
      %v1953 = vsel %vm1504, %v1947, %v1948
      %v1954 = vsel %vm1951, %v1953, %v1942
      %v1955 = vsel %vm1504, %v1948, %v1949
      %v1956 = vsel %vm1951, %v1955, %v1944
      %v1957 = vsel %vm1504, %v1949, %v1950
      %v1958 = vsel %vm1951, %v1957, %v1946
      %v1964 = vmul.bf16 %v1807, %v1952
      %v1965 = vmul.bf16 %v1808, %v1954
      %v1966 = vmul.bf16 %v1809, %v1956
      %v1967 = vmul.bf16 %v1810, %v1958
      %v1968 = vmul.bf16 %v1811, %v1950
      %1974 = vrot.lane.b32.xlu0 %v1964, 1
      %v1975 = vpop.permute.xlu0 %1974
      %1976 = vrot.lane.b32.xlu0 %v1965, 1
      %v1977 = vpop.permute.xlu0 %1976
      %1978 = vrot.lane.b32.xlu0 %v1966, 1
      %v1979 = vpop.permute.xlu0 %1978
      %1980 = vrot.lane.b32.xlu0 %v1967, 1
      %v1981 = vpop.permute.xlu0 %1980
      %1982 = vrot.lane.b32.xlu0 %v1968, 1
      %v1983 = vpop.permute.xlu0 %1982
      %v1984 = vrot.slane %v1975, 4
      %v1985 = vrot.slane %v1977, 4
      %v1986 = vrot.slane %v1979, 4
      %v1987 = vrot.slane %v1981, 4
      %v1988 = vrot.slane %v1983, 4
      %v1989 = vsel %vm1504, %v1984, %v1985
      %vm1990 = vcmask 7168
      %v1991 = vsel %vm1990, %v1975, %v1989
      %v1992 = vsel %vm1504, %v1985, %v1986
      %v1993 = vsel %vm1990, %v1977, %v1992
      %v1994 = vsel %vm1504, %v1986, %v1987
      %v1995 = vsel %vm1990, %v1979, %v1994
      %v1996 = vsel %vm1504, %v1987, %v1988
      %v1997 = vsel %vm1990, %v1981, %v1996
      %2002 = vst [vmem:[#allocation4 + $0x60] sm:$0xff] %v1991
      %2003 = vst [vmem:[#allocation4 + $0x68] sm:$0xff] %v1993
      %2004 = vst [vmem:[#allocation4 + $0x70] sm:$0xff] %v1995
      %2005 = vst [vmem:[#allocation4 + $0x78] sm:$0xff] %v1997
      %v2006 = vld [vmem:[#allocation2 + $0x4] sm:$0xff]
      %v2007 = vld [vmem:[#allocation2 + $0xc] sm:$0xff]
      %v2008 = vld [vmem:[#allocation2 + $0x14] sm:$0xff]
      %v2009 = vld [vmem:[#allocation2 + $0x1c] sm:$0xff]
      %2010 = vst [vmem:[#allocation4 + $0x80] sm:$0xff] %v2006
      %2011 = vst [vmem:[#allocation4 + $0x88] sm:$0xff] %v2007
      %2012 = vst [vmem:[#allocation4 + $0x90] sm:$0xff] %v2008
      %2013 = vst [vmem:[#allocation4 + $0x98] sm:$0xff] %v2009
      %v2014 = vld [vmem:[#allocation2 + $0x4] sm:$0xff]
      %v2015 = vld [vmem:[#allocation2 + $0xc] sm:$0xff]
      %v2016 = vld [vmem:[#allocation2 + $0x14] sm:$0xff]
      %v2017 = vld [vmem:[#allocation2 + $0x1c] sm:$0xff]
      %v2018 = vld [vmem:[#allocation2 + $0x24] sm:$0xf]
      %v2019 = vld [vmem:[%s7] sm:$0xff]
      %v2021 = vcombine.high %v2019, %v2019
      %v2023 = vunpack.c.l.s4 1966171168
      %v2024 = vunpack.c.0.s8 %v2023
      %v2025 = vlaneseq
      %v2026 = vshrl.u32 %v2025, 7
      %v2027 = vsub.s32 %v2024, %v2026
      %v2028 = vrot.slane %v2019, %v2027
      %v2030 = vunpack.c.l.s4 1966171168
      %v2031 = vunpack.c.0.s8 %v2030
      %v2032 = vlaneseq
      %v2033 = vshrl.u32 %v2032, 7
      %v2034 = vsub.s32 %v2031, %v2033
      %v2035 = vrot.slane %v2021, %v2034
      %v2036 = vcombine.high %v2028, %v2028
      %v2037 = vcombine.high %v2035, %v2035
      %v2039 = vunpack.c.l.s4 1966171168
      %v2040 = vunpack.c.0.s8 %v2039
      %v2041 = vlaneseq
      %v2042 = vshrl.u32 %v2041, 7
      %v2043 = vsub.s32 %v2040, %v2042
      %v2044 = vrot.slane %v2028, %v2043
      %v2046 = vunpack.c.l.s4 1966171168
      %v2047 = vunpack.c.0.s8 %v2046
      %v2048 = vlaneseq
      %v2049 = vshrl.u32 %v2048, 7
      %v2050 = vsub.s32 %v2047, %v2049
      %v2051 = vrot.slane %v2035, %v2050
      %v2053 = vunpack.c.l.s4 1966171168
      %v2054 = vunpack.c.0.s8 %v2053
      %v2055 = vlaneseq
      %v2056 = vshrl.u32 %v2055, 7
      %v2057 = vsub.s32 %v2054, %v2056
      %v2058 = vrot.slane %v2036, %v2057
      %v2060 = vunpack.c.l.s4 1966171168
      %v2061 = vunpack.c.0.s8 %v2060
      %v2062 = vlaneseq
      %v2063 = vshrl.u32 %v2062, 7
      %v2064 = vsub.s32 %v2061, %v2063
      %v2065 = vrot.slane %v2037, %v2064
      %v2066 = vcombine.high %v2044, %v2044
      %v2067 = vcombine.high %v2051, %v2051
      %v2068 = vcombine.high %v2058, %v2058
      %v2069 = vcombine.high %v2065, %v2065
      %v2071 = vshrl.u32 %v2044, 16
      %v2072 = vpack.i.b16 %v2071, %v2071
      %v2074 = vlaneseq
      %v2075 = vshrl.u32 %v2074, 7
      %v2076 = vsub.s32 0, %v2075
      %v2077 = vrot.slane %v2072, %v2076
      %v2079 = vshrl.u32 %v2058, 16
      %v2080 = vpack.i.b16 %v2079, %v2079
      %v2082 = vlaneseq
      %v2083 = vshrl.u32 %v2082, 7
      %v2084 = vsub.s32 0, %v2083
      %v2085 = vrot.slane %v2080, %v2084
      %v2087 = vshrl.u32 %v2066, 16
      %v2088 = vpack.i.b16 %v2087, %v2087
      %v2090 = vlaneseq
      %v2091 = vshrl.u32 %v2090, 7
      %v2092 = vsub.s32 0, %v2091
      %v2093 = vrot.slane %v2088, %v2092
      %v2095 = vshrl.u32 %v2068, 16
      %v2096 = vpack.i.b16 %v2095, %v2095
      %v2098 = vlaneseq
      %v2099 = vshrl.u32 %v2098, 7
      %v2100 = vsub.s32 0, %v2099
      %v2101 = vrot.slane %v2096, %v2100
      %v2103 = vshrl.u32 %v2051, 16
      %v2104 = vpack.i.b16 %v2103, %v2103
      %v2106 = vlaneseq
      %v2107 = vshrl.u32 %v2106, 7
      %v2108 = vsub.s32 0, %v2107
      %v2109 = vrot.slane %v2104, %v2108
      %v2111 = vshrl.u32 %v2065, 16
      %v2112 = vpack.i.b16 %v2111, %v2111
      %v2114 = vlaneseq
      %v2115 = vshrl.u32 %v2114, 7
      %v2116 = vsub.s32 0, %v2115
      %v2117 = vrot.slane %v2112, %v2116
      %v2119 = vshrl.u32 %v2067, 16
      %v2120 = vpack.i.b16 %v2119, %v2119
      %v2122 = vlaneseq
      %v2123 = vshrl.u32 %v2122, 7
      %v2124 = vsub.s32 0, %v2123
      %v2125 = vrot.slane %v2120, %v2124
      %v2127 = vshrl.u32 %v2069, 16
      %v2128 = vpack.i.b16 %v2127, %v2127
      %v2130 = vlaneseq
      %v2131 = vshrl.u32 %v2130, 7
      %v2132 = vsub.s32 0, %v2131
      %v2133 = vrot.slane %v2128, %v2132
      %v2142 = vunpack.c.l.b16 %v2077
      %v2143 = vunpack.c.l.b16 %v2085
      %v2144 = vunpack.c.l.b16 %v2093
      %v2145 = vunpack.c.l.b16 %v2101
      %v2146 = vunpack.c.l.b16 %v2109
      %v2147 = vunpack.c.l.b16 %v2117
      %v2148 = vunpack.c.l.b16 %v2125
      %v2149 = vunpack.c.l.b16 %v2133
      %v2150 = vpack.c.b16 %v2143, %v2142
      %v2151 = vpack.c.b16 %v2145, %v2144
      %v2152 = vpack.c.b16 %v2147, %v2146
      %v2153 = vpack.c.b16 %v2149, %v2148
      %2154 = vrot.lane.b32.xlu0 %v2150, 1
      %v2155 = vpop.permute.xlu0 %2154
      %2156 = vrot.lane.b32.xlu0 %v2151, 1
      %v2157 = vpop.permute.xlu0 %2156
      %2158 = vrot.lane.b32.xlu0 %v2152, 1
      %v2159 = vpop.permute.xlu0 %2158
      %2160 = vrot.lane.b32.xlu0 %v2153, 1
      %v2161 = vpop.permute.xlu0 %2160
      %v2162 = vrot.slane %v2155, 4
      %v2163 = vrot.slane %v2157, 4
      %v2164 = vrot.slane %v2159, 4
      %v2165 = vrot.slane %v2161, 4
      %v2166 = vsel %vm1990, %v2162, %v2155
      %v2167 = vsel %vm1504, %v2162, %v2163
      %v2168 = vsel %vm1990, %v2167, %v2157
      %v2169 = vsel %vm1504, %v2163, %v2164
      %v2170 = vsel %vm1990, %v2169, %v2159
      %v2171 = vsel %vm1504, %v2164, %v2165
      %v2172 = vsel %vm1990, %v2171, %v2161
      %v2178 = vmul.bf16 %v2014, %v2166
      %v2179 = vmul.bf16 %v2015, %v2168
      %v2180 = vmul.bf16 %v2016, %v2170
      %v2181 = vmul.bf16 %v2017, %v2172
      %v2182 = vmul.bf16 %v2018, %v2165
      %2188 = vrot.lane.b32.xlu0 %v2178, 127
      %v2189 = vpop.permute.xlu0 %2188
      %2190 = vrot.lane.b32.xlu0 %v2179, 127
      %v2191 = vpop.permute.xlu0 %2190
      %2192 = vrot.lane.b32.xlu0 %v2180, 127
      %v2193 = vpop.permute.xlu0 %2192
      %2194 = vrot.lane.b32.xlu0 %v2181, 127
      %v2195 = vpop.permute.xlu0 %2194
      %2196 = vrot.lane.b32.xlu0 %v2182, 127
      %v2197 = vpop.permute.xlu0 %2196
      %v2198 = vrot.slane %v2189, 4
      %v2199 = vrot.slane %v2191, 4
      %v2200 = vrot.slane %v2193, 4
      %v2201 = vrot.slane %v2195, 4
      %v2202 = vrot.slane %v2197, 4
      %v2203 = vsel %vm1504, %v2198, %v2199
      %v2204 = vsel %vm1951, %v2189, %v2203
      %v2205 = vsel %vm1504, %v2199, %v2200
      %v2206 = vsel %vm1951, %v2191, %v2205
      %v2207 = vsel %vm1504, %v2200, %v2201
      %v2208 = vsel %vm1951, %v2193, %v2207
      %v2209 = vsel %vm1504, %v2201, %v2202
      %v2210 = vsel %vm1951, %v2195, %v2209
      %2215 = vst [vmem:[#allocation4 + $0xa0] sm:$0xff] %v2204
      %2216 = vst [vmem:[#allocation4 + $0xa8] sm:$0xff] %v2206
      %2217 = vst [vmem:[#allocation4 + $0xb0] sm:$0xff] %v2208
      %2218 = vst [vmem:[#allocation4 + $0xb8] sm:$0xff] %v2210
      %v2219 = vld [vmem:[#allocation2 + $0x4] sm:$0xff]
      %v2220 = vld [vmem:[#allocation2 + $0xc] sm:$0xff]
      %v2221 = vld [vmem:[#allocation2 + $0x14] sm:$0xff]
      %v2222 = vld [vmem:[#allocation2 + $0x1c] sm:$0xff]
      %v2223 = vld [vmem:[#allocation2 + $0x24] sm:$0xf]
      %v2224 = vld [vmem:[%s7] sm:$0xff]
      %v2226 = vcombine.high %v2224, %v2224
      %v2228 = vunpack.c.l.s4 1966171168
      %v2229 = vunpack.c.0.s8 %v2228
      %v2230 = vlaneseq
      %v2231 = vshrl.u32 %v2230, 7
      %v2232 = vsub.s32 %v2229, %v2231
      %v2233 = vrot.slane %v2224, %v2232
      %v2235 = vunpack.c.l.s4 1966171168
      %v2236 = vunpack.c.0.s8 %v2235
      %v2237 = vlaneseq
      %v2238 = vshrl.u32 %v2237, 7
      %v2239 = vsub.s32 %v2236, %v2238
      %v2240 = vrot.slane %v2226, %v2239
      %v2241 = vcombine.high %v2233, %v2233
      %v2242 = vcombine.high %v2240, %v2240
      %v2244 = vunpack.c.l.s4 1966171168
      %v2245 = vunpack.c.0.s8 %v2244
      %v2246 = vlaneseq
      %v2247 = vshrl.u32 %v2246, 7
      %v2248 = vsub.s32 %v2245, %v2247
      %v2249 = vrot.slane %v2233, %v2248
      %v2251 = vunpack.c.l.s4 1966171168
      %v2252 = vunpack.c.0.s8 %v2251
      %v2253 = vlaneseq
      %v2254 = vshrl.u32 %v2253, 7
      %v2255 = vsub.s32 %v2252, %v2254
      %v2256 = vrot.slane %v2240, %v2255
      %v2258 = vunpack.c.l.s4 1966171168
      %v2259 = vunpack.c.0.s8 %v2258
      %v2260 = vlaneseq
      %v2261 = vshrl.u32 %v2260, 7
      %v2262 = vsub.s32 %v2259, %v2261
      %v2263 = vrot.slane %v2241, %v2262
      %v2265 = vunpack.c.l.s4 1966171168
      %v2266 = vunpack.c.0.s8 %v2265
      %v2267 = vlaneseq
      %v2268 = vshrl.u32 %v2267, 7
      %v2269 = vsub.s32 %v2266, %v2268
      %v2270 = vrot.slane %v2242, %v2269
      %v2271 = vcombine.high %v2249, %v2249
      %v2272 = vcombine.high %v2256, %v2256
      %v2273 = vcombine.high %v2263, %v2263
      %v2274 = vcombine.high %v2270, %v2270
      %v2276 = vpack.i.b16 %v2249, %v2249
      %v2278 = vlaneseq
      %v2279 = vshrl.u32 %v2278, 7
      %v2280 = vsub.s32 0, %v2279
      %v2281 = vrot.slane %v2276, %v2280
      %v2283 = vpack.i.b16 %v2263, %v2263
      %v2285 = vlaneseq
      %v2286 = vshrl.u32 %v2285, 7
      %v2287 = vsub.s32 0, %v2286
      %v2288 = vrot.slane %v2283, %v2287
      %v2290 = vpack.i.b16 %v2271, %v2271
      %v2292 = vlaneseq
      %v2293 = vshrl.u32 %v2292, 7
      %v2294 = vsub.s32 0, %v2293
      %v2295 = vrot.slane %v2290, %v2294
      %v2297 = vpack.i.b16 %v2273, %v2273
      %v2299 = vlaneseq
      %v2300 = vshrl.u32 %v2299, 7
      %v2301 = vsub.s32 0, %v2300
      %v2302 = vrot.slane %v2297, %v2301
      %v2304 = vpack.i.b16 %v2256, %v2256
      %v2306 = vlaneseq
      %v2307 = vshrl.u32 %v2306, 7
      %v2308 = vsub.s32 0, %v2307
      %v2309 = vrot.slane %v2304, %v2308
      %v2311 = vpack.i.b16 %v2270, %v2270
      %v2313 = vlaneseq
      %v2314 = vshrl.u32 %v2313, 7
      %v2315 = vsub.s32 0, %v2314
      %v2316 = vrot.slane %v2311, %v2315
      %v2318 = vpack.i.b16 %v2272, %v2272
      %v2320 = vlaneseq
      %v2321 = vshrl.u32 %v2320, 7
      %v2322 = vsub.s32 0, %v2321
      %v2323 = vrot.slane %v2318, %v2322
      %v2325 = vpack.i.b16 %v2274, %v2274
      %v2327 = vlaneseq
      %v2328 = vshrl.u32 %v2327, 7
      %v2329 = vsub.s32 0, %v2328
      %v2330 = vrot.slane %v2325, %v2329
      %v2339 = vunpack.c.l.b16 %v2281
      %v2340 = vunpack.c.l.b16 %v2288
      %v2341 = vunpack.c.l.b16 %v2295
      %v2342 = vunpack.c.l.b16 %v2302
      %v2343 = vunpack.c.l.b16 %v2309
      %v2344 = vunpack.c.l.b16 %v2316
      %v2345 = vunpack.c.l.b16 %v2323
      %v2346 = vunpack.c.l.b16 %v2330
      %v2347 = vpack.c.b16 %v2340, %v2339
      %v2348 = vpack.c.b16 %v2342, %v2341
      %v2349 = vpack.c.b16 %v2344, %v2343
      %v2350 = vpack.c.b16 %v2346, %v2345
      %2351 = vrot.lane.b32.xlu0 %v2347, 31
      %v2352 = vpop.permute.xlu0 %2351
      %2353 = vrot.lane.b32.xlu0 %v2348, 31
      %v2354 = vpop.permute.xlu0 %2353
      %2355 = vrot.lane.b32.xlu0 %v2349, 31
      %v2356 = vpop.permute.xlu0 %2355
      %2357 = vrot.lane.b32.xlu0 %v2350, 31
      %v2358 = vpop.permute.xlu0 %2357
      %v2359 = vrot.slane %v2352, 4
      %v2360 = vrot.slane %v2354, 4
      %v2361 = vrot.slane %v2356, 4
      %v2362 = vrot.slane %v2358, 4
      %v2363 = vsel %vm1791, %v2359, %v2352
      %v2364 = vsel %vm1504, %v2359, %v2360
      %v2365 = vsel %vm1791, %v2364, %v2354
      %v2366 = vsel %vm1504, %v2360, %v2361
      %v2367 = vsel %vm1791, %v2366, %v2356
      %v2368 = vsel %vm1504, %v2361, %v2362
      %v2369 = vsel %vm1791, %v2368, %v2358
      %v2375 = vmul.bf16 %v2219, %v2363
      %v2376 = vmul.bf16 %v2220, %v2365
      %v2377 = vmul.bf16 %v2221, %v2367
      %v2378 = vmul.bf16 %v2222, %v2369
      %v2379 = vmul.bf16 %v2223, %v2362
      %2385 = vrot.lane.b32.xlu0 %v2375, 97
      %v2386 = vpop.permute.xlu0 %2385
      %2387 = vrot.lane.b32.xlu0 %v2376, 97
      %v2388 = vpop.permute.xlu0 %2387
      %2389 = vrot.lane.b32.xlu0 %v2377, 97
      %v2390 = vpop.permute.xlu0 %2389
      %2391 = vrot.lane.b32.xlu0 %v2378, 97
      %v2392 = vpop.permute.xlu0 %2391
      %2393 = vrot.lane.b32.xlu0 %v2379, 97
      %v2394 = vpop.permute.xlu0 %2393
      %v2395 = vrot.slane %v2386, 4
      %v2396 = vrot.slane %v2388, 4
      %v2397 = vrot.slane %v2390, 4
      %v2398 = vrot.slane %v2392, 4
      %v2399 = vrot.slane %v2394, 4
      %v2400 = vsel %vm1504, %v2395, %v2396
      %v2401 = vsel %vm1752, %v2386, %v2400
      %v2402 = vsel %vm1504, %v2396, %v2397
      %v2403 = vsel %vm1752, %v2388, %v2402
      %v2404 = vsel %vm1504, %v2397, %v2398
      %v2405 = vsel %vm1752, %v2390, %v2404
      %v2406 = vsel %vm1504, %v2398, %v2399
      %v2407 = vsel %vm1752, %v2392, %v2406
      %2412 = vst [vmem:[#allocation4 + $0xc0] sm:$0xff] %v2401
      %2413 = vst [vmem:[#allocation4 + $0xc8] sm:$0xff] %v2403
      %2414 = vst [vmem:[#allocation4 + $0xd0] sm:$0xff] %v2405
      %2415 = vst [vmem:[#allocation4 + $0xd8] sm:$0xff] %v2407
      %v2416 = vld [vmem:[#allocation2 + $0x4] sm:$0xff]
      %v2417 = vld [vmem:[#allocation2 + $0xc] sm:$0xff]
      %v2418 = vld [vmem:[#allocation2 + $0x14] sm:$0xff]
      %v2419 = vld [vmem:[#allocation2 + $0x1c] sm:$0xff]
      %v2420 = vld [vmem:[#allocation2 + $0x24] sm:$0xf]
      %2426 = vrot.lane.b32.xlu0 %v2416, 96
      %v2427 = vpop.permute.xlu0 %2426
      %2428 = vrot.lane.b32.xlu0 %v2417, 96
      %v2429 = vpop.permute.xlu0 %2428
      %2430 = vrot.lane.b32.xlu0 %v2418, 96
      %v2431 = vpop.permute.xlu0 %2430
      %2432 = vrot.lane.b32.xlu0 %v2419, 96
      %v2433 = vpop.permute.xlu0 %2432
      %2434 = vrot.lane.b32.xlu0 %v2420, 96
      %v2435 = vpop.permute.xlu0 %2434
      %v2436 = vrot.slane %v2427, 4
      %v2437 = vrot.slane %v2429, 4
      %v2438 = vrot.slane %v2431, 4
      %v2439 = vrot.slane %v2433, 4
      %v2440 = vrot.slane %v2435, 4
      %v2441 = vsel %vm1504, %v2436, %v2437
      %vm2442 = vcmask 785408
      %v2443 = vsel %vm2442, %v2427, %v2441
      %v2444 = vsel %vm1504, %v2437, %v2438
      %v2445 = vsel %vm2442, %v2429, %v2444
      %v2446 = vsel %vm1504, %v2438, %v2439
      %v2447 = vsel %vm2442, %v2431, %v2446
      %v2448 = vsel %vm1504, %v2439, %v2440
      %v2449 = vsel %vm2442, %v2433, %v2448
      %2454 = vst [vmem:[#allocation4 + $0xe0] sm:$0xff] %v2443
      %2455 = vst [vmem:[#allocation4 + $0xe8] sm:$0xff] %v2445
      %2456 = vst [vmem:[#allocation4 + $0xf0] sm:$0xff] %v2447
      %2457 = vst [vmem:[#allocation4 + $0xf8] sm:$0xff] %v2449
      %v2458 = vld [vmem:[#allocation2 + $0x4] sm:$0xff]
      %v2459 = vld [vmem:[#allocation2 + $0xc] sm:$0xff]
      %v2460 = vld [vmem:[#allocation2 + $0x14] sm:$0xff]
      %v2461 = vld [vmem:[#allocation2 + $0x1c] sm:$0xff]
      %v2462 = vld [vmem:[#allocation2 + $0x24] sm:$0xf]
      %v2463 = vld [vmem:[%s7] sm:$0xff]
      %v2465 = vcombine.high %v2463, %v2463
      %v2467 = vunpack.c.l.s4 1966171168
      %v2468 = vunpack.c.0.s8 %v2467
      %v2469 = vlaneseq
      %v2470 = vshrl.u32 %v2469, 7
      %v2471 = vsub.s32 %v2468, %v2470
      %v2472 = vrot.slane %v2463, %v2471
      %v2474 = vunpack.c.l.s4 1966171168
      %v2475 = vunpack.c.0.s8 %v2474
      %v2476 = vlaneseq
      %v2477 = vshrl.u32 %v2476, 7
      %v2478 = vsub.s32 %v2475, %v2477
      %v2479 = vrot.slane %v2465, %v2478
      %v2480 = vcombine.high %v2472, %v2472
      %v2481 = vcombine.high %v2479, %v2479
      %v2483 = vunpack.c.l.s4 1966171168
      %v2484 = vunpack.c.0.s8 %v2483
      %v2485 = vlaneseq
      %v2486 = vshrl.u32 %v2485, 7
      %v2487 = vsub.s32 %v2484, %v2486
      %v2488 = vrot.slane %v2472, %v2487
      %v2490 = vunpack.c.l.s4 1966171168
      %v2491 = vunpack.c.0.s8 %v2490
      %v2492 = vlaneseq
      %v2493 = vshrl.u32 %v2492, 7
      %v2494 = vsub.s32 %v2491, %v2493
      %v2495 = vrot.slane %v2479, %v2494
      %v2497 = vunpack.c.l.s4 1966171168
      %v2498 = vunpack.c.0.s8 %v2497
      %v2499 = vlaneseq
      %v2500 = vshrl.u32 %v2499, 7
      %v2501 = vsub.s32 %v2498, %v2500
      %v2502 = vrot.slane %v2480, %v2501
      %v2504 = vunpack.c.l.s4 1966171168
      %v2505 = vunpack.c.0.s8 %v2504
      %v2506 = vlaneseq
      %v2507 = vshrl.u32 %v2506, 7
      %v2508 = vsub.s32 %v2505, %v2507
      %v2509 = vrot.slane %v2481, %v2508
      %v2510 = vcombine.high %v2488, %v2488
      %v2511 = vcombine.high %v2495, %v2495
      %v2512 = vcombine.high %v2502, %v2502
      %v2513 = vcombine.high %v2509, %v2509
      %v2515 = vshrl.u32 %v2488, 16
      %v2516 = vpack.i.b16 %v2515, %v2515
      %v2518 = vlaneseq
      %v2519 = vshrl.u32 %v2518, 7
      %v2520 = vsub.s32 0, %v2519
      %v2521 = vrot.slane %v2516, %v2520
      %v2523 = vshrl.u32 %v2502, 16
      %v2524 = vpack.i.b16 %v2523, %v2523
      %v2526 = vlaneseq
      %v2527 = vshrl.u32 %v2526, 7
      %v2528 = vsub.s32 0, %v2527
      %v2529 = vrot.slane %v2524, %v2528
      %v2531 = vshrl.u32 %v2510, 16
      %v2532 = vpack.i.b16 %v2531, %v2531
      %v2534 = vlaneseq
      %v2535 = vshrl.u32 %v2534, 7
      %v2536 = vsub.s32 0, %v2535
      %v2537 = vrot.slane %v2532, %v2536
      %v2539 = vshrl.u32 %v2512, 16
      %v2540 = vpack.i.b16 %v2539, %v2539
      %v2542 = vlaneseq
      %v2543 = vshrl.u32 %v2542, 7
      %v2544 = vsub.s32 0, %v2543
      %v2545 = vrot.slane %v2540, %v2544
      %v2547 = vshrl.u32 %v2495, 16
      %v2548 = vpack.i.b16 %v2547, %v2547
      %v2550 = vlaneseq
      %v2551 = vshrl.u32 %v2550, 7
      %v2552 = vsub.s32 0, %v2551
      %v2553 = vrot.slane %v2548, %v2552
      %v2555 = vshrl.u32 %v2509, 16
      %v2556 = vpack.i.b16 %v2555, %v2555
      %v2558 = vlaneseq
      %v2559 = vshrl.u32 %v2558, 7
      %v2560 = vsub.s32 0, %v2559
      %v2561 = vrot.slane %v2556, %v2560
      %v2563 = vshrl.u32 %v2511, 16
      %v2564 = vpack.i.b16 %v2563, %v2563
      %v2566 = vlaneseq
      %v2567 = vshrl.u32 %v2566, 7
      %v2568 = vsub.s32 0, %v2567
      %v2569 = vrot.slane %v2564, %v2568
      %v2571 = vshrl.u32 %v2513, 16
      %v2572 = vpack.i.b16 %v2571, %v2571
      %v2574 = vlaneseq
      %v2575 = vshrl.u32 %v2574, 7
      %v2576 = vsub.s32 0, %v2575
      %v2577 = vrot.slane %v2572, %v2576
      %v2586 = vunpack.c.l.b16 %v2521
      %v2587 = vunpack.c.l.b16 %v2529
      %v2588 = vunpack.c.l.b16 %v2537
      %v2589 = vunpack.c.l.b16 %v2545
      %v2590 = vunpack.c.l.b16 %v2553
      %v2591 = vunpack.c.l.b16 %v2561
      %v2592 = vunpack.c.l.b16 %v2569
      %v2593 = vunpack.c.l.b16 %v2577
      %v2594 = vpack.c.b16 %v2587, %v2586
      %v2595 = vpack.c.b16 %v2589, %v2588
      %v2596 = vpack.c.b16 %v2591, %v2590
      %v2597 = vpack.c.b16 %v2593, %v2592
      %2598 = vrot.lane.b32.xlu0 %v2594, 33
      %v2599 = vpop.permute.xlu0 %2598
      %2600 = vrot.lane.b32.xlu0 %v2595, 33
      %v2601 = vpop.permute.xlu0 %2600
      %2602 = vrot.lane.b32.xlu0 %v2596, 33
      %v2603 = vpop.permute.xlu0 %2602
      %2604 = vrot.lane.b32.xlu0 %v2597, 33
      %v2605 = vpop.permute.xlu0 %2604
      %v2606 = vrot.slane %v2599, 4
      %v2607 = vrot.slane %v2601, 4
      %v2608 = vrot.slane %v2603, 4
      %v2609 = vrot.slane %v2605, 4
      %v2610 = vsel %vm1542, %v2606, %v2599
      %v2611 = vsel %vm1504, %v2606, %v2607
      %v2612 = vsel %vm1542, %v2611, %v2601
      %v2613 = vsel %vm1504, %v2607, %v2608
      %v2614 = vsel %vm1542, %v2613, %v2603
      %v2615 = vsel %vm1504, %v2608, %v2609
      %v2616 = vsel %vm1542, %v2615, %v2605
      %v2622 = vmul.bf16 %v2458, %v2610
      %v2623 = vmul.bf16 %v2459, %v2612
      %v2624 = vmul.bf16 %v2460, %v2614
      %v2625 = vmul.bf16 %v2461, %v2616
      %v2626 = vmul.bf16 %v2462, %v2609
      %2632 = vrot.lane.b32.xlu0 %v2622, 95
      %v2633 = vpop.permute.xlu0 %2632
      %2634 = vrot.lane.b32.xlu0 %v2623, 95
      %v2635 = vpop.permute.xlu0 %2634
      %2636 = vrot.lane.b32.xlu0 %v2624, 95
      %v2637 = vpop.permute.xlu0 %2636
      %2638 = vrot.lane.b32.xlu0 %v2625, 95
      %v2639 = vpop.permute.xlu0 %2638
      %2640 = vrot.lane.b32.xlu0 %v2626, 95
      %v2641 = vpop.permute.xlu0 %2640
      %v2642 = vrot.slane %v2633, 4
      %v2643 = vrot.slane %v2635, 4
      %v2644 = vrot.slane %v2637, 4
      %v2645 = vrot.slane %v2639, 4
      %v2646 = vrot.slane %v2641, 4
      %v2647 = vsel %vm1504, %v2642, %v2643
      %v2648 = vsel %vm1502, %v2633, %v2647
      %v2649 = vsel %vm1504, %v2643, %v2644
      %v2650 = vsel %vm1502, %v2635, %v2649
      %v2651 = vsel %vm1504, %v2644, %v2645
      %v2652 = vsel %vm1502, %v2637, %v2651
      %v2653 = vsel %vm1504, %v2645, %v2646
      %v2654 = vsel %vm1502, %v2639, %v2653
      %2659 = vst [vmem:[#allocation4 + $0x100] sm:$0xff] %v2648
      %2660 = vst [vmem:[#allocation4 + $0x108] sm:$0xff] %v2650
      %2661 = vst [vmem:[#allocation4 + $0x110] sm:$0xff] %v2652
      %2662 = vst [vmem:[#allocation4 + $0x118] sm:$0xff] %v2654
      %v2663 = vld [vmem:[#allocation4] sm:$0xff]
      %v2664 = vld [vmem:[#allocation4 + $0x8] sm:$0xff]
      %v2665 = vld [vmem:[#allocation4 + $0x10] sm:$0xff]
      %v2666 = vld [vmem:[#allocation4 + $0x18] sm:$0xff]
      %v2667 = vld [vmem:[#allocation4 + $0x20] sm:$0xff]
      %v2668 = vld [vmem:[#allocation4 + $0x28] sm:$0xff]
      %v2669 = vld [vmem:[#allocation4 + $0x30] sm:$0xff]
      %v2670 = vld [vmem:[#allocation4 + $0x38] sm:$0xff]
      %v2671 = vld [vmem:[#allocation4 + $0x40] sm:$0xff]
      %v2672 = vld [vmem:[#allocation4 + $0x48] sm:$0xff]
      %v2673 = vld [vmem:[#allocation4 + $0x50] sm:$0xff]
      %v2674 = vld [vmem:[#allocation4 + $0x58] sm:$0xff]
      %v2675 = vld [vmem:[#allocation4 + $0x60] sm:$0xff]
      %v2676 = vld [vmem:[#allocation4 + $0x68] sm:$0xff]
      %v2677 = vld [vmem:[#allocation4 + $0x70] sm:$0xff]
      %v2678 = vld [vmem:[#allocation4 + $0x78] sm:$0xff]
      %v2679 = vld [vmem:[#allocation4 + $0x80] sm:$0xff]
      %v2680 = vld [vmem:[#allocation4 + $0x88] sm:$0xff]
      %v2681 = vld [vmem:[#allocation4 + $0x90] sm:$0xff]
      %v2682 = vld [vmem:[#allocation4 + $0x98] sm:$0xff]
      %v2683 = vld [vmem:[#allocation4 + $0xa0] sm:$0xff]
      %v2684 = vld [vmem:[#allocation4 + $0xa8] sm:$0xff]
      %v2685 = vld [vmem:[#allocation4 + $0xb0] sm:$0xff]
      %v2686 = vld [vmem:[#allocation4 + $0xb8] sm:$0xff]
      %v2687 = vld [vmem:[#allocation4 + $0xc0] sm:$0xff]
      %v2688 = vld [vmem:[#allocation4 + $0xc8] sm:$0xff]
      %v2689 = vld [vmem:[#allocation4 + $0xd0] sm:$0xff]
      %v2690 = vld [vmem:[#allocation4 + $0xd8] sm:$0xff]
      %v2691 = vld [vmem:[#allocation4 + $0xe0] sm:$0xff]
      %v2692 = vld [vmem:[#allocation4 + $0xe8] sm:$0xff]
      %v2693 = vld [vmem:[#allocation4 + $0xf0] sm:$0xff]
      %v2694 = vld [vmem:[#allocation4 + $0xf8] sm:$0xff]
      %v2695 = vld [vmem:[#allocation4 + $0x100] sm:$0xff]
      %v2696 = vld [vmem:[#allocation4 + $0x108] sm:$0xff]
      %v2697 = vld [vmem:[#allocation4 + $0x110] sm:$0xff]
      %v2698 = vld [vmem:[#allocation4 + $0x118] sm:$0xff]
      %2700 = vset.pattern.permute.xlu0 0
      %2701 = vperm.xlu0 %2700, %v1357
      %v2702 = vpop.permute.xlu0 %2701
      %v2740 = vunpack.c.l.b16 %v2663
      %v2741 = vunpack.c.h.b16 %v2663
      %v2742 = vunpack.c.l.b16 %v2664
      %v2743 = vunpack.c.h.b16 %v2664
      %v2744 = vunpack.c.l.b16 %v2665
      %v2745 = vunpack.c.h.b16 %v2665
      %v2746 = vunpack.c.l.b16 %v2666
      %v2747 = vunpack.c.h.b16 %v2666
      %v2748 = vunpack.c.l.b16 %v2667
      %v2749 = vunpack.c.h.b16 %v2667
      %v2750 = vunpack.c.l.b16 %v2668
      %v2751 = vunpack.c.h.b16 %v2668
      %v2752 = vunpack.c.l.b16 %v2669
      %v2753 = vunpack.c.h.b16 %v2669
      %v2754 = vunpack.c.l.b16 %v2670
      %v2755 = vunpack.c.h.b16 %v2670
      %v2756 = vunpack.c.l.b16 %v2671
      %v2757 = vunpack.c.h.b16 %v2671
      %v2758 = vunpack.c.l.b16 %v2672
      %v2759 = vunpack.c.h.b16 %v2672
      %v2760 = vunpack.c.l.b16 %v2673
      %v2761 = vunpack.c.h.b16 %v2673
      %v2762 = vunpack.c.l.b16 %v2674
      %v2763 = vunpack.c.h.b16 %v2674
      %v2764 = vunpack.c.l.b16 %v2675
      %v2765 = vunpack.c.h.b16 %v2675
      %v2766 = vunpack.c.l.b16 %v2676
      %v2767 = vunpack.c.h.b16 %v2676
      %v2768 = vunpack.c.l.b16 %v2677
      %v2769 = vunpack.c.h.b16 %v2677
      %v2770 = vunpack.c.l.b16 %v2678
      %v2771 = vunpack.c.h.b16 %v2678
      %v2772 = vunpack.c.l.b16 %v2679
      %v2773 = vunpack.c.h.b16 %v2679
      %v2774 = vunpack.c.l.b16 %v2680
      %v2775 = vunpack.c.h.b16 %v2680
      %v2776 = vunpack.c.l.b16 %v2681
      %v2777 = vunpack.c.h.b16 %v2681
      %v2778 = vunpack.c.l.b16 %v2682
      %v2779 = vunpack.c.h.b16 %v2682
      %v2780 = vunpack.c.l.b16 %v2683
      %v2781 = vunpack.c.h.b16 %v2683
      %v2782 = vunpack.c.l.b16 %v2684
      %v2783 = vunpack.c.h.b16 %v2684
      %v2784 = vunpack.c.l.b16 %v2685
      %v2785 = vunpack.c.h.b16 %v2685
      %v2786 = vunpack.c.l.b16 %v2686
      %v2787 = vunpack.c.h.b16 %v2686
      %v2788 = vunpack.c.l.b16 %v2687
      %v2789 = vunpack.c.h.b16 %v2687
      %v2790 = vunpack.c.l.b16 %v2688
      %v2791 = vunpack.c.h.b16 %v2688
      %v2792 = vunpack.c.l.b16 %v2689
      %v2793 = vunpack.c.h.b16 %v2689
      %v2794 = vunpack.c.l.b16 %v2690
      %v2795 = vunpack.c.h.b16 %v2690
      %v2796 = vunpack.c.l.b16 %v2691
      %v2797 = vunpack.c.h.b16 %v2691
      %v2798 = vunpack.c.l.b16 %v2692
      %v2799 = vunpack.c.h.b16 %v2692
      %v2800 = vunpack.c.l.b16 %v2693
      %v2801 = vunpack.c.h.b16 %v2693
      %v2802 = vunpack.c.l.b16 %v2694
      %v2803 = vunpack.c.h.b16 %v2694
      %v2804 = vunpack.c.l.b16 %v2695
      %v2805 = vunpack.c.h.b16 %v2695
      %v2806 = vunpack.c.l.b16 %v2696
      %v2807 = vunpack.c.h.b16 %v2696
      %v2808 = vunpack.c.l.b16 %v2697
      %v2809 = vunpack.c.h.b16 %v2697
      %v2810 = vunpack.c.l.b16 %v2698
      %v2811 = vunpack.c.h.b16 %v2698
      %v2812 = vpack.c.b16 %v2748, %v2740
      %v2813 = vpack.c.b16 %v2749, %v2741
      %v2814 = vpack.c.b16 %v2750, %v2742
      %v2815 = vpack.c.b16 %v2751, %v2743
      %v2816 = vpack.c.b16 %v2752, %v2744
      %v2817 = vpack.c.b16 %v2753, %v2745
      %v2818 = vpack.c.b16 %v2754, %v2746
      %v2819 = vpack.c.b16 %v2755, %v2747
      %v2820 = vpack.c.b16 %v2764, %v2756
      %v2821 = vpack.c.b16 %v2765, %v2757
      %v2822 = vpack.c.b16 %v2766, %v2758
      %v2823 = vpack.c.b16 %v2767, %v2759
      %v2824 = vpack.c.b16 %v2768, %v2760
      %v2825 = vpack.c.b16 %v2769, %v2761
      %v2826 = vpack.c.b16 %v2770, %v2762
      %v2827 = vpack.c.b16 %v2771, %v2763
      %v2828 = vpack.c.b16 %v2780, %v2772
      %v2829 = vpack.c.b16 %v2781, %v2773
      %v2830 = vpack.c.b16 %v2782, %v2774
      %v2831 = vpack.c.b16 %v2783, %v2775
      %v2832 = vpack.c.b16 %v2784, %v2776
      %v2833 = vpack.c.b16 %v2785, %v2777
      %v2834 = vpack.c.b16 %v2786, %v2778
      %v2835 = vpack.c.b16 %v2787, %v2779
      %v2836 = vpack.c.b16 %v2796, %v2788
      %v2837 = vpack.c.b16 %v2797, %v2789
      %v2838 = vpack.c.b16 %v2798, %v2790
      %v2839 = vpack.c.b16 %v2799, %v2791
      %v2840 = vpack.c.b16 %v2800, %v2792
      %v2841 = vpack.c.b16 %v2801, %v2793
      %v2842 = vpack.c.b16 %v2802, %v2794
      %v2843 = vpack.c.b16 %v2803, %v2795
      %v2844 = vpack.c.b16 %v2804, %v2804
      %v2845 = vpack.c.b16 %v2805, %v2805
      %v2846 = vpack.c.b16 %v2806, %v2806
      %v2847 = vpack.c.b16 %v2807, %v2807
      %v2848 = vpack.c.b16 %v2808, %v2808
      %v2849 = vpack.c.b16 %v2809, %v2809
      %v2850 = vpack.c.b16 %v2810, %v2810
      %v2851 = vpack.c.b16 %v2811, %v2811
      %vm2884 = vcmask 588800
      %v2886 = vsel %vm2884, %v1356, 0
      %vm2888 = vcmask 1043456
      %v2890 = vsel %vm2888, %v2844, 0
      %v2893 = vsel %vm2888, %v2845, 0
      %v2896 = vsel %vm2888, %v2846, 0
      %v2899 = vsel %vm2888, %v2847, 0
      %v2902 = vsel %vm2888, %v2848, 0
      %v2905 = vsel %vm2888, %v2849, 0
      %v2908 = vsel %vm2888, %v2850, 0
      %v2911 = vsel %vm2888, %v2851, 0
      %2913 = vmatprep.subr.bf16.mxu0 %v2813
      %2914 = vmatpush1.bf16.msra.mxu0 %v2812
      %2915 = vmatprep.subr.bf16.mxu0 %v2821
      %2916 = vmatpush1.bf16.msra.mxu0 %v2820
      %2917 = vmatprep.subr.bf16.mxu0 %v2829
      %2918 = vmatpush1.bf16.msra.mxu0 %v2828
      %2919 = vmatprep.subr.bf16.mxu0 %v2837
      %2920 = vmatpush1.bf16.msra.mxu0 %v2836
      %2921 = vmatprep.subr.bf16.mxu0 %v2893
      %2922 = vmatpush1.bf16.msra.mxu0 %v2890
      %2923 = vmatprep.subr.bf16.mxu0 0
      %2924 = vmatpush1.bf16.msra.mxu0 0
      %2925 = vmatprep.subr.bf16.mxu0 0
      %2926 = vmatpush1.bf16.msra.mxu0 0
      %2927 = vmatprep.subr.bf16.mxu0 0
      %2928 = vmatpush1.bf16.msra.mxu0 0
      %2929 = vmatprep.subr.bf16.mxu0 0
      %2930 = vmatpush1.bf16.msra.mxu0 0
      %2931 = vmatprep.subr.bf16.mxu0 0
      %2932 = vmatpush1.bf16.msra.mxu0 0
      %2933 = vmatprep.subr.bf16.mxu0 0
      %2934 = vmatpush1.bf16.msra.mxu0 0
      %2935 = vmatprep.subr.bf16.mxu0 0
      %2936 = vmatpush1.bf16.msra.mxu0 0
      %2937 = vmatprep.subr.bf16.mxu0 0
      %2938 = vmatpush1.bf16.msra.mxu0 0
      %2939 = vmatprep.subr.bf16.mxu0 0
      %2940 = vmatpush1.bf16.msra.mxu0 0
      %2941 = vmatprep.subr.bf16.mxu0 0
      %2942 = vmatpush1.bf16.msra.mxu0 0
      %2943 = vmatprep.subr.bf16.mxu0 0
      %2944 = vmatpush1.bf16.msra.mxu0 0
      %2945 = vmatprep.mubr.bf16.mxu0 0
      %2946 = vmatmul.mubr.bf16.gmra.mrb[0].mxu0 %v2886
      %v2947 = vpop.f32.mrb[0].mxu0
      %v2948 = vadd.f32 %v2702, %v2947
      %v2949 = vpop.f32.mrb[0].mxu0
      %v2950 = vadd.f32 %v2702, %v2949
      %v2951 = vpop.f32.mrb[0].mxu0
      %v2952 = vpop.f32.mrb[0].mxu0
      %2953 = vdwg.mxu0
      %2954 = vmatprep.subr.bf16.mxu0 %v2815
      %2955 = vmatpush1.bf16.msra.mxu0 %v2814
      %2956 = vmatprep.subr.bf16.mxu0 %v2823
      %2957 = vmatpush1.bf16.msra.mxu0 %v2822
      %2958 = vmatprep.subr.bf16.mxu0 %v2831
      %2959 = vmatpush1.bf16.msra.mxu0 %v2830
      %2960 = vmatprep.subr.bf16.mxu0 %v2839
      %2961 = vmatpush1.bf16.msra.mxu0 %v2838
      %2962 = vmatprep.subr.bf16.mxu0 %v2899
      %2963 = vmatpush1.bf16.msra.mxu0 %v2896
      %2964 = vmatprep.subr.bf16.mxu0 0
      %2965 = vmatpush1.bf16.msra.mxu0 0
      %2966 = vmatprep.subr.bf16.mxu0 0
      %2967 = vmatpush1.bf16.msra.mxu0 0
      %2968 = vmatprep.subr.bf16.mxu0 0
      %2969 = vmatpush1.bf16.msra.mxu0 0
      %2970 = vmatprep.subr.bf16.mxu0 0
      %2971 = vmatpush1.bf16.msra.mxu0 0
      %2972 = vmatprep.subr.bf16.mxu0 0
      %2973 = vmatpush1.bf16.msra.mxu0 0
      %2974 = vmatprep.subr.bf16.mxu0 0
      %2975 = vmatpush1.bf16.msra.mxu0 0
      %2976 = vmatprep.subr.bf16.mxu0 0
      %2977 = vmatpush1.bf16.msra.mxu0 0
      %2978 = vmatprep.subr.bf16.mxu0 0
      %2979 = vmatpush1.bf16.msra.mxu0 0
      %2980 = vmatprep.subr.bf16.mxu0 0
      %2981 = vmatpush1.bf16.msra.mxu0 0
      %2982 = vmatprep.subr.bf16.mxu0 0
      %2983 = vmatpush1.bf16.msra.mxu0 0
      %2984 = vmatprep.subr.bf16.mxu0 0
      %2985 = vmatpush1.bf16.msra.mxu0 0
      %2986 = vmatprep.mubr.bf16.mxu0 0
      %2987 = vmatmul.mubr.bf16.gmra.mrb[0].mxu0 %v2886
      %v2988 = vpop.f32.mrb[0].mxu0
      %v2989 = vadd.f32 %v2702, %v2988
      %v2990 = vpop.f32.mrb[0].mxu0
      %v2991 = vadd.f32 %v2702, %v2990
      %v2992 = vpop.f32.mrb[0].mxu0
      %v2993 = vpop.f32.mrb[0].mxu0
      %2994 = vdwg.mxu0
      %2995 = vmatprep.subr.bf16.mxu0 %v2817
      %2996 = vmatpush1.bf16.msra.mxu0 %v2816
      %2997 = vmatprep.subr.bf16.mxu0 %v2825
      %2998 = vmatpush1.bf16.msra.mxu0 %v2824
      %2999 = vmatprep.subr.bf16.mxu0 %v2833
      %3000 = vmatpush1.bf16.msra.mxu0 %v2832
      %3001 = vmatprep.subr.bf16.mxu0 %v2841
      %3002 = vmatpush1.bf16.msra.mxu0 %v2840
      %3003 = vmatprep.subr.bf16.mxu0 %v2905
      %3004 = vmatpush1.bf16.msra.mxu0 %v2902
      %3005 = vmatprep.subr.bf16.mxu0 0
      %3006 = vmatpush1.bf16.msra.mxu0 0
      %3007 = vmatprep.subr.bf16.mxu0 0
      %3008 = vmatpush1.bf16.msra.mxu0 0
      %3009 = vmatprep.subr.bf16.mxu0 0
      %3010 = vmatpush1.bf16.msra.mxu0 0
      %3011 = vmatprep.subr.bf16.mxu0 0
      %3012 = vmatpush1.bf16.msra.mxu0 0
      %3013 = vmatprep.subr.bf16.mxu0 0
      %3014 = vmatpush1.bf16.msra.mxu0 0
      %3015 = vmatprep.subr.bf16.mxu0 0
      %3016 = vmatpush1.bf16.msra.mxu0 0
      %3017 = vmatprep.subr.bf16.mxu0 0
      %3018 = vmatpush1.bf16.msra.mxu0 0
      %3019 = vmatprep.subr.bf16.mxu0 0
      %3020 = vmatpush1.bf16.msra.mxu0 0
      %3021 = vmatprep.subr.bf16.mxu0 0
      %3022 = vmatpush1.bf16.msra.mxu0 0
      %3023 = vmatprep.subr.bf16.mxu0 0
      %3024 = vmatpush1.bf16.msra.mxu0 0
      %3025 = vmatprep.subr.bf16.mxu0 0
      %3026 = vmatpush1.bf16.msra.mxu0 0
      %3027 = vmatprep.mubr.bf16.mxu0 0
      %3028 = vmatmul.mubr.bf16.gmra.mrb[0].mxu0 %v2886
      %v3029 = vpop.f32.mrb[0].mxu0
      %v3030 = vadd.f32 %v2702, %v3029
      %v3031 = vpop.f32.mrb[0].mxu0
      %v3032 = vadd.f32 %v2702, %v3031
      %v3033 = vpop.f32.mrb[0].mxu0
      %v3034 = vpop.f32.mrb[0].mxu0
      %3035 = vdwg.mxu0
      %3036 = vmatprep.subr.bf16.mxu0 %v2819
      %3037 = vmatpush1.bf16.msra.mxu0 %v2818
      %3038 = vmatprep.subr.bf16.mxu0 %v2827
      %3039 = vmatpush1.bf16.msra.mxu0 %v2826
      %3040 = vmatprep.subr.bf16.mxu0 %v2835
      %3041 = vmatpush1.bf16.msra.mxu0 %v2834
      %3042 = vmatprep.subr.bf16.mxu0 %v2843
      %3043 = vmatpush1.bf16.msra.mxu0 %v2842
      %3044 = vmatprep.subr.bf16.mxu0 %v2911
      %3045 = vmatpush1.bf16.msra.mxu0 %v2908
      %3046 = vmatprep.subr.bf16.mxu0 0
      %3047 = vmatpush1.bf16.msra.mxu0 0
      %3048 = vmatprep.subr.bf16.mxu0 0
      %3049 = vmatpush1.bf16.msra.mxu0 0
      %3050 = vmatprep.subr.bf16.mxu0 0
      %3051 = vmatpush1.bf16.msra.mxu0 0
      %3052 = vmatprep.subr.bf16.mxu0 0
      %3053 = vmatpush1.bf16.msra.mxu0 0
      %3054 = vmatprep.subr.bf16.mxu0 0
      %3055 = vmatpush1.bf16.msra.mxu0 0
      %3056 = vmatprep.subr.bf16.mxu0 0
      %3057 = vmatpush1.bf16.msra.mxu0 0
      %3058 = vmatprep.subr.bf16.mxu0 0
      %3059 = vmatpush1.bf16.msra.mxu0 0
      %3060 = vmatprep.subr.bf16.mxu0 0
      %3061 = vmatpush1.bf16.msra.mxu0 0
      %3062 = vmatprep.subr.bf16.mxu0 0
      %3063 = vmatpush1.bf16.msra.mxu0 0
      %3064 = vmatprep.subr.bf16.mxu0 0
      %3065 = vmatpush1.bf16.msra.mxu0 0
      %3066 = vmatprep.subr.bf16.mxu0 0
      %3067 = vmatpush1.bf16.msra.mxu0 0
      %3068 = vmatprep.mubr.bf16.mxu0 0
      %3069 = vmatmul.mubr.bf16.gmra.mrb[0].mxu0 %v2886
      %v3070 = vpop.f32.mrb[0].mxu0
      %v3071 = vadd.f32 %v2702, %v3070
      %v3072 = vpop.f32.mrb[0].mxu0
      %v3073 = vadd.f32 %v2702, %v3072
      %v3074 = vpop.f32.mrb[0].mxu0
      %v3075 = vpop.f32.mrb[0].mxu0
      %3076 = vdwg.mxu0
      %v3077 = vmul.f32 %v2948, 0.2
      %v3078 = vmul.f32 %v2950, 0.2
      %v3079 = vmul.f32 %v2989, 0.2
      %v3080 = vmul.f32 %v2991, 0.2
      %v3081 = vmul.f32 %v3030, 0.2
      %v3082 = vmul.f32 %v3032, 0.2
      %v3083 = vmul.f32 %v3071, 0.2
      %v3084 = vmul.f32 %v3073, 0.2
      %v3085 = vmax.f32 %v2948, %v3077
      %v3086 = vmax.f32 %v2950, %v3078
      %v3087 = vmax.f32 %v2989, %v3079
      %v3088 = vmax.f32 %v2991, %v3080
      %v3089 = vmax.f32 %v3030, %v3081
      %v3090 = vmax.f32 %v3032, %v3082
      %v3091 = vmax.f32 %v3071, %v3083
      %v3092 = vmax.f32 %v3073, %v3084
      %3093 = vst [vmem:[#allocation3] sm:$0x3] 0
      %vm3094 = vcmask 263168
      %3095 = vst.msk [vmem:[#allocation3 + $0x12] sm:$0x3] %vm3094, 0
      %v3096 = vpack.c.bf16 %v3085, %v3085
      %v3097 = vpack.c.bf16 %v3086, %v3086
      %v3098 = vpack.c.bf16 %v3087, %v3087
      %v3099 = vpack.c.bf16 %v3088, %v3088
      %v3100 = vpack.c.bf16 %v3089, %v3089
      %v3101 = vpack.c.bf16 %v3090, %v3090
      %v3102 = vpack.c.bf16 %v3091, %v3091
      %v3103 = vpack.c.bf16 %v3092, %v3092
      %v3112 = vcombine.low %v3096, %v3097
      %v3113 = vcombine.low %v3098, %v3099
      %v3115 = vunpack.c.l.s4 1983009808
      %v3116 = vunpack.c.0.s8 %v3115
      %v3117 = vlaneseq
      %v3118 = vshrl.u32 %v3117, 7
      %v3119 = vsub.s32 %v3116, %v3118
      %v3120 = vrot.slane %v3112, %v3119
      %v3122 = vunpack.c.l.s4 1983009808
      %v3123 = vunpack.c.0.s8 %v3122
      %v3124 = vlaneseq
      %v3125 = vshrl.u32 %v3124, 7
      %v3126 = vsub.s32 %v3123, %v3125
      %v3127 = vrot.slane %v3113, %v3126
      %v3128 = vcombine.low %v3120, %v3127
      %v3129 = vcombine.low %v3100, %v3101
      %v3130 = vcombine.low %v3102, %v3103
      %v3132 = vunpack.c.l.s4 1983009808
      %v3133 = vunpack.c.0.s8 %v3132
      %v3134 = vlaneseq
      %v3135 = vshrl.u32 %v3134, 7
      %v3136 = vsub.s32 %v3133, %v3135
      %v3137 = vrot.slane %v3129, %v3136
      %v3139 = vunpack.c.l.s4 1983009808
      %v3140 = vunpack.c.0.s8 %v3139
      %v3141 = vlaneseq
      %v3142 = vshrl.u32 %v3141, 7
      %v3143 = vsub.s32 %v3140, %v3142
      %v3144 = vrot.slane %v3130, %v3143
      %v3145 = vcombine.low %v3137, %v3144
      %3148 = vst [vmem:[#allocation3 + $0x2] sm:$0xff] %v3128
      %3149 = vst [vmem:[#allocation3 + $0xa] sm:$0xff] %v3145
      %v3150 = vld [vmem:[%s5] sm:$0xf]
      %v3151 = vld [vmem:[%s6] sm:$0xff]
      %v3152 = vld [vmem:[#allocation3] sm:$0xff]
      %v3153 = vld [vmem:[#allocation3 + $0x8] sm:$0xff]
      %v3154 = vld [vmem:[#allocation3 + $0x10] sm:$0x3]
      %v3155 = vld [vmem:[%s7] sm:$0xff]
      %v3157 = vcombine.high %v3155, %v3155
      %v3159 = vunpack.c.l.s4 1966171168
      %v3160 = vunpack.c.0.s8 %v3159
      %v3161 = vlaneseq
      %v3162 = vshrl.u32 %v3161, 7
      %v3163 = vsub.s32 %v3160, %v3162
      %v3164 = vrot.slane %v3155, %v3163
      %v3166 = vunpack.c.l.s4 1966171168
      %v3167 = vunpack.c.0.s8 %v3166
      %v3168 = vlaneseq
      %v3169 = vshrl.u32 %v3168, 7
      %v3170 = vsub.s32 %v3167, %v3169
      %v3171 = vrot.slane %v3157, %v3170
      %v3172 = vcombine.high %v3164, %v3164
      %v3173 = vcombine.high %v3171, %v3171
      %v3175 = vunpack.c.l.s4 1966171168
      %v3176 = vunpack.c.0.s8 %v3175
      %v3177 = vlaneseq
      %v3178 = vshrl.u32 %v3177, 7
      %v3179 = vsub.s32 %v3176, %v3178
      %v3180 = vrot.slane %v3164, %v3179
      %v3182 = vunpack.c.l.s4 1966171168
      %v3183 = vunpack.c.0.s8 %v3182
      %v3184 = vlaneseq
      %v3185 = vshrl.u32 %v3184, 7
      %v3186 = vsub.s32 %v3183, %v3185
      %v3187 = vrot.slane %v3171, %v3186
      %v3189 = vunpack.c.l.s4 1966171168
      %v3190 = vunpack.c.0.s8 %v3189
      %v3191 = vlaneseq
      %v3192 = vshrl.u32 %v3191, 7
      %v3193 = vsub.s32 %v3190, %v3192
      %v3194 = vrot.slane %v3172, %v3193
      %v3196 = vunpack.c.l.s4 1966171168
      %v3197 = vunpack.c.0.s8 %v3196
      %v3198 = vlaneseq
      %v3199 = vshrl.u32 %v3198, 7
      %v3200 = vsub.s32 %v3197, %v3199
      %v3201 = vrot.slane %v3173, %v3200
      %v3202 = vcombine.high %v3180, %v3180
      %v3203 = vcombine.high %v3187, %v3187
      %v3204 = vcombine.high %v3194, %v3194
      %v3205 = vcombine.high %v3201, %v3201
      %v3207 = vpack.i.b16 %v3180, %v3180
      %v3209 = vlaneseq
      %v3210 = vshrl.u32 %v3209, 7
      %v3211 = vsub.s32 0, %v3210
      %v3212 = vrot.slane %v3207, %v3211
      %v3214 = vpack.i.b16 %v3194, %v3194
      %v3216 = vlaneseq
      %v3217 = vshrl.u32 %v3216, 7
      %v3218 = vsub.s32 0, %v3217
      %v3219 = vrot.slane %v3214, %v3218
      %v3221 = vpack.i.b16 %v3202, %v3202
      %v3223 = vlaneseq
      %v3224 = vshrl.u32 %v3223, 7
      %v3225 = vsub.s32 0, %v3224
      %v3226 = vrot.slane %v3221, %v3225
      %v3228 = vpack.i.b16 %v3204, %v3204
      %v3230 = vlaneseq
      %v3231 = vshrl.u32 %v3230, 7
      %v3232 = vsub.s32 0, %v3231
      %v3233 = vrot.slane %v3228, %v3232
      %v3235 = vpack.i.b16 %v3187, %v3187
      %v3237 = vlaneseq
      %v3238 = vshrl.u32 %v3237, 7
      %v3239 = vsub.s32 0, %v3238
      %v3240 = vrot.slane %v3235, %v3239
      %v3242 = vpack.i.b16 %v3201, %v3201
      %v3244 = vlaneseq
      %v3245 = vshrl.u32 %v3244, 7
      %v3246 = vsub.s32 0, %v3245
      %v3247 = vrot.slane %v3242, %v3246
      %v3249 = vpack.i.b16 %v3203, %v3203
      %v3251 = vlaneseq
      %v3252 = vshrl.u32 %v3251, 7
      %v3253 = vsub.s32 0, %v3252
      %v3254 = vrot.slane %v3249, %v3253
      %v3256 = vpack.i.b16 %v3205, %v3205
      %v3258 = vlaneseq
      %v3259 = vshrl.u32 %v3258, 7
      %v3260 = vsub.s32 0, %v3259
      %v3261 = vrot.slane %v3256, %v3260
      %v3270 = vcombine.low %v3212, %v3219
      %v3271 = vcombine.low %v3226, %v3233
      %v3273 = vunpack.c.l.s4 1983009808
      %v3274 = vunpack.c.0.s8 %v3273
      %v3275 = vlaneseq
      %v3276 = vshrl.u32 %v3275, 7
      %v3277 = vsub.s32 %v3274, %v3276
      %v3278 = vrot.slane %v3270, %v3277
      %v3280 = vunpack.c.l.s4 1983009808
      %v3281 = vunpack.c.0.s8 %v3280
      %v3282 = vlaneseq
      %v3283 = vshrl.u32 %v3282, 7
      %v3284 = vsub.s32 %v3281, %v3283
      %v3285 = vrot.slane %v3271, %v3284
      %v3286 = vcombine.low %v3278, %v3285
      %v3287 = vcombine.low %v3240, %v3247
      %v3288 = vcombine.low %v3254, %v3261
      %v3290 = vunpack.c.l.s4 1983009808
      %v3291 = vunpack.c.0.s8 %v3290
      %v3292 = vlaneseq
      %v3293 = vshrl.u32 %v3292, 7
      %v3294 = vsub.s32 %v3291, %v3293
      %v3295 = vrot.slane %v3287, %v3294
      %v3297 = vunpack.c.l.s4 1983009808
      %v3298 = vunpack.c.0.s8 %v3297
      %v3299 = vlaneseq
      %v3300 = vshrl.u32 %v3299, 7
      %v3301 = vsub.s32 %v3298, %v3300
      %v3302 = vrot.slane %v3288, %v3301
      %v3303 = vcombine.low %v3295, %v3302
      %3304 = vrot.lane.b32.xlu0 %v3286, 95
      %v3305 = vpop.permute.xlu0 %3304
      %3306 = vrot.lane.b32.xlu0 %v3303, 95
      %v3307 = vpop.permute.xlu0 %3306
      %v3308 = vrot.slane %v3305, 6
      %v3309 = vrot.slane %v3307, 6
      %v3310 = vsel %vm1502, %v3308, %v3305
      %vm3311 = vcmask 1041408
      %v3312 = vsel %vm3311, %v3308, %v3309
      %v3313 = vsel %vm1502, %v3312, %v3307
      %v3317 = vmul.bf16 %v3152, %v3310
      %v3318 = vmul.bf16 %v3153, %v3313
      %v3319 = vmul.bf16 %v3154, %v3309
      %v3323 = vcombine.high %v3317, %v3317
      %v3325 = vunpack.c.l.s4 1983009808
      %v3326 = vunpack.c.0.s8 %v3325
      %v3327 = vlaneseq
      %v3328 = vshrl.u32 %v3327, 7
      %v3329 = vsub.s32 %v3326, %v3328
      %v3330 = vrot.slane %v3317, %v3329
      %v3332 = vunpack.c.l.s4 1983009808
      %v3333 = vunpack.c.0.s8 %v3332
      %v3334 = vlaneseq
      %v3335 = vshrl.u32 %v3334, 7
      %v3336 = vsub.s32 %v3333, %v3335
      %v3337 = vrot.slane %v3323, %v3336
      %v3338 = vcombine.high %v3318, %v3318
      %v3340 = vunpack.c.l.s4 1983009808
      %v3341 = vunpack.c.0.s8 %v3340
      %v3342 = vlaneseq
      %v3343 = vshrl.u32 %v3342, 7
      %v3344 = vsub.s32 %v3341, %v3343
      %v3345 = vrot.slane %v3318, %v3344
      %v3347 = vunpack.c.l.s4 1983009808
      %v3348 = vunpack.c.0.s8 %v3347
      %v3349 = vlaneseq
      %v3350 = vshrl.u32 %v3349, 7
      %v3351 = vsub.s32 %v3348, %v3350
      %v3352 = vrot.slane %v3338, %v3351
      %v3354 = vunpack.c.l.s4 1983009808
      %v3355 = vunpack.c.0.s8 %v3354
      %v3356 = vlaneseq
      %v3357 = vshrl.u32 %v3356, 7
      %v3358 = vsub.s32 %v3355, %v3357
      %v3359 = vrot.slane %v3319, %v3358
      %3360 = vrot.lane.b32.xlu0 %v3330, 33
      %v3361 = vpop.permute.xlu0 %3360
      %3362 = vrot.lane.b32.xlu0 %v3337, 33
      %v3363 = vpop.permute.xlu0 %3362
      %3364 = vrot.lane.b32.xlu0 %v3345, 33
      %v3365 = vpop.permute.xlu0 %3364
      %3366 = vrot.lane.b32.xlu0 %v3352, 33
      %v3367 = vpop.permute.xlu0 %3366
      %3368 = vrot.lane.b32.xlu0 %v3359, 33
      %v3369 = vpop.permute.xlu0 %3368
      %v3370 = vrot.slane %v3361, 4
      %v3371 = vrot.slane %v3363, 4
      %v3372 = vrot.slane %v3365, 4
      %v3373 = vrot.slane %v3367, 4
      %v3374 = vrot.slane %v3369, 4
      %v3375 = vsel %vm1504, %v3370, %v3371
      %v3376 = vsel %vm1542, %v3361, %v3375
      %v3377 = vsel %vm1504, %v3371, %v3372
      %v3378 = vsel %vm1542, %v3363, %v3377
      %v3379 = vsel %vm1504, %v3372, %v3373
      %v3380 = vsel %vm1542, %v3365, %v3379
      %v3381 = vsel %vm1504, %v3373, %v3374
      %v3382 = vsel %vm1542, %v3367, %v3381
      %3387 = vst [vmem:[#allocation5] sm:$0x33] %v3376
      %3388 = vst [vmem:[#allocation5 + $0x8] sm:$0x33] %v3378
      %3389 = vst [vmem:[#allocation5 + $0x10] sm:$0x33] %v3380
      %3390 = vst [vmem:[#allocation5 + $0x18] sm:$0x33] %v3382
      %v3391 = vld [vmem:[#allocation3] sm:$0xff]
      %v3392 = vld [vmem:[#allocation3 + $0x8] sm:$0xff]
      %v3393 = vld [vmem:[#allocation3 + $0x10] sm:$0x3]
      %v3397 = vcombine.low %v3391, %v3391
      %v3399 = vunpack.c.l.s4 1983009808
      %v3400 = vunpack.c.0.s8 %v3399
      %v3401 = vlaneseq
      %v3402 = vshrl.u32 %v3401, 7
      %v3403 = vsub.s32 %v3400, %v3402
      %v3404 = vrot.slane %v3397, %v3403
      %v3406 = vunpack.c.l.s4 1983009808
      %v3407 = vunpack.c.0.s8 %v3406
      %v3408 = vlaneseq
      %v3409 = vshrl.u32 %v3408, 7
      %v3410 = vsub.s32 %v3407, %v3409
      %v3411 = vrot.slane %v3391, %v3410
      %v3412 = vcombine.low %v3392, %v3392
      %v3414 = vunpack.c.l.s4 1983009808
      %v3415 = vunpack.c.0.s8 %v3414
      %v3416 = vlaneseq
      %v3417 = vshrl.u32 %v3416, 7
      %v3418 = vsub.s32 %v3415, %v3417
      %v3419 = vrot.slane %v3412, %v3418
      %v3421 = vunpack.c.l.s4 1983009808
      %v3422 = vunpack.c.0.s8 %v3421
      %v3423 = vlaneseq
      %v3424 = vshrl.u32 %v3423, 7
      %v3425 = vsub.s32 %v3422, %v3424
      %v3426 = vrot.slane %v3392, %v3425
      %v3427 = vcombine.low %v3393, %v3393
      %v3429 = vunpack.c.l.s4 1983009808
      %v3430 = vunpack.c.0.s8 %v3429
      %v3431 = vlaneseq
      %v3432 = vshrl.u32 %v3431, 7
      %v3433 = vsub.s32 %v3430, %v3432
      %v3434 = vrot.slane %v3427, %v3433
      %3435 = vrot.lane.b32.xlu0 %v3404, 32
      %v3436 = vpop.permute.xlu0 %3435
      %3437 = vrot.lane.b32.xlu0 %v3411, 32
      %v3438 = vpop.permute.xlu0 %3437
      %3439 = vrot.lane.b32.xlu0 %v3419, 32
      %v3440 = vpop.permute.xlu0 %3439
      %3441 = vrot.lane.b32.xlu0 %v3426, 32
      %v3442 = vpop.permute.xlu0 %3441
      %3443 = vrot.lane.b32.xlu0 %v3434, 32
      %v3444 = vpop.permute.xlu0 %3443
      %v3445 = vrot.slane %v3436, 4
      %v3446 = vrot.slane %v3438, 4
      %v3447 = vrot.slane %v3440, 4
      %v3448 = vrot.slane %v3442, 4
      %v3449 = vrot.slane %v3444, 4
      %v3450 = vsel %vm1504, %v3445, %v3446
      %v3451 = vsel %vm1584, %v3436, %v3450
      %v3452 = vsel %vm1504, %v3446, %v3447
      %v3453 = vsel %vm1584, %v3438, %v3452
      %v3454 = vsel %vm1504, %v3447, %v3448
      %v3455 = vsel %vm1584, %v3440, %v3454
      %v3456 = vsel %vm1504, %v3448, %v3449
      %v3457 = vsel %vm1584, %v3442, %v3456
      %3462 = vst [vmem:[#allocation5] sm:$0xcc] %v3451
      %3463 = vst [vmem:[#allocation5 + $0x8] sm:$0xcc] %v3453
      %3464 = vst [vmem:[#allocation5 + $0x10] sm:$0xcc] %v3455
      %3465 = vst [vmem:[#allocation5 + $0x18] sm:$0xcc] %v3457
      %v3466 = vld [vmem:[#allocation3] sm:$0xff]
      %v3467 = vld [vmem:[#allocation3 + $0x8] sm:$0xff]
      %v3468 = vld [vmem:[#allocation3 + $0x10] sm:$0x3]
      %v3469 = vld [vmem:[%s7] sm:$0xff]
      %v3471 = vcombine.high %v3469, %v3469
      %v3473 = vunpack.c.l.s4 1966171168
      %v3474 = vunpack.c.0.s8 %v3473
      %v3475 = vlaneseq
      %v3476 = vshrl.u32 %v3475, 7
      %v3477 = vsub.s32 %v3474, %v3476
      %v3478 = vrot.slane %v3469, %v3477
      %v3480 = vunpack.c.l.s4 1966171168
      %v3481 = vunpack.c.0.s8 %v3480
      %v3482 = vlaneseq
      %v3483 = vshrl.u32 %v3482, 7
      %v3484 = vsub.s32 %v3481, %v3483
      %v3485 = vrot.slane %v3471, %v3484
      %v3486 = vcombine.high %v3478, %v3478
      %v3487 = vcombine.high %v3485, %v3485
      %v3489 = vunpack.c.l.s4 1966171168
      %v3490 = vunpack.c.0.s8 %v3489
      %v3491 = vlaneseq
      %v3492 = vshrl.u32 %v3491, 7
      %v3493 = vsub.s32 %v3490, %v3492
      %v3494 = vrot.slane %v3478, %v3493
      %v3496 = vunpack.c.l.s4 1966171168
      %v3497 = vunpack.c.0.s8 %v3496
      %v3498 = vlaneseq
      %v3499 = vshrl.u32 %v3498, 7
      %v3500 = vsub.s32 %v3497, %v3499
      %v3501 = vrot.slane %v3485, %v3500
      %v3503 = vunpack.c.l.s4 1966171168
      %v3504 = vunpack.c.0.s8 %v3503
      %v3505 = vlaneseq
      %v3506 = vshrl.u32 %v3505, 7
      %v3507 = vsub.s32 %v3504, %v3506
      %v3508 = vrot.slane %v3486, %v3507
      %v3510 = vunpack.c.l.s4 1966171168
      %v3511 = vunpack.c.0.s8 %v3510
      %v3512 = vlaneseq
      %v3513 = vshrl.u32 %v3512, 7
      %v3514 = vsub.s32 %v3511, %v3513
      %v3515 = vrot.slane %v3487, %v3514
      %v3516 = vcombine.high %v3494, %v3494
      %v3517 = vcombine.high %v3501, %v3501
      %v3518 = vcombine.high %v3508, %v3508
      %v3519 = vcombine.high %v3515, %v3515
      %v3521 = vshrl.u32 %v3494, 16
      %v3522 = vpack.i.b16 %v3521, %v3521
      %v3524 = vlaneseq
      %v3525 = vshrl.u32 %v3524, 7
      %v3526 = vsub.s32 0, %v3525
      %v3527 = vrot.slane %v3522, %v3526
      %v3529 = vshrl.u32 %v3508, 16
      %v3530 = vpack.i.b16 %v3529, %v3529
      %v3532 = vlaneseq
      %v3533 = vshrl.u32 %v3532, 7
      %v3534 = vsub.s32 0, %v3533
      %v3535 = vrot.slane %v3530, %v3534
      %v3537 = vshrl.u32 %v3516, 16
      %v3538 = vpack.i.b16 %v3537, %v3537
      %v3540 = vlaneseq
      %v3541 = vshrl.u32 %v3540, 7
      %v3542 = vsub.s32 0, %v3541
      %v3543 = vrot.slane %v3538, %v3542
      %v3545 = vshrl.u32 %v3518, 16
      %v3546 = vpack.i.b16 %v3545, %v3545
      %v3548 = vlaneseq
      %v3549 = vshrl.u32 %v3548, 7
      %v3550 = vsub.s32 0, %v3549
      %v3551 = vrot.slane %v3546, %v3550
      %v3553 = vshrl.u32 %v3501, 16
      %v3554 = vpack.i.b16 %v3553, %v3553
      %v3556 = vlaneseq
      %v3557 = vshrl.u32 %v3556, 7
      %v3558 = vsub.s32 0, %v3557
      %v3559 = vrot.slane %v3554, %v3558
      %v3561 = vshrl.u32 %v3515, 16
      %v3562 = vpack.i.b16 %v3561, %v3561
      %v3564 = vlaneseq
      %v3565 = vshrl.u32 %v3564, 7
      %v3566 = vsub.s32 0, %v3565
      %v3567 = vrot.slane %v3562, %v3566
      %v3569 = vshrl.u32 %v3517, 16
      %v3570 = vpack.i.b16 %v3569, %v3569
      %v3572 = vlaneseq
      %v3573 = vshrl.u32 %v3572, 7
      %v3574 = vsub.s32 0, %v3573
      %v3575 = vrot.slane %v3570, %v3574
      %v3577 = vshrl.u32 %v3519, 16
      %v3578 = vpack.i.b16 %v3577, %v3577
      %v3580 = vlaneseq
      %v3581 = vshrl.u32 %v3580, 7
      %v3582 = vsub.s32 0, %v3581
      %v3583 = vrot.slane %v3578, %v3582
      %v3592 = vcombine.low %v3527, %v3535
      %v3593 = vcombine.low %v3543, %v3551
      %v3595 = vunpack.c.l.s4 1983009808
      %v3596 = vunpack.c.0.s8 %v3595
      %v3597 = vlaneseq
      %v3598 = vshrl.u32 %v3597, 7
      %v3599 = vsub.s32 %v3596, %v3598
      %v3600 = vrot.slane %v3592, %v3599
      %v3602 = vunpack.c.l.s4 1983009808
      %v3603 = vunpack.c.0.s8 %v3602
      %v3604 = vlaneseq
      %v3605 = vshrl.u32 %v3604, 7
      %v3606 = vsub.s32 %v3603, %v3605
      %v3607 = vrot.slane %v3593, %v3606
      %v3608 = vcombine.low %v3600, %v3607
      %v3609 = vcombine.low %v3559, %v3567
      %v3610 = vcombine.low %v3575, %v3583
      %v3612 = vunpack.c.l.s4 1983009808
      %v3613 = vunpack.c.0.s8 %v3612
      %v3614 = vlaneseq
      %v3615 = vshrl.u32 %v3614, 7
      %v3616 = vsub.s32 %v3613, %v3615
      %v3617 = vrot.slane %v3609, %v3616
      %v3619 = vunpack.c.l.s4 1983009808
      %v3620 = vunpack.c.0.s8 %v3619
      %v3621 = vlaneseq
      %v3622 = vshrl.u32 %v3621, 7
      %v3623 = vsub.s32 %v3620, %v3622
      %v3624 = vrot.slane %v3610, %v3623
      %v3625 = vcombine.low %v3617, %v3624
      %3626 = vrot.lane.b32.xlu0 %v3608, 97
      %v3627 = vpop.permute.xlu0 %3626
      %3628 = vrot.lane.b32.xlu0 %v3625, 97
      %v3629 = vpop.permute.xlu0 %3628
      %v3630 = vrot.slane %v3627, 6
      %v3631 = vrot.slane %v3629, 6
      %v3632 = vsel %vm1752, %v3630, %v3627
      %v3633 = vsel %vm3311, %v3630, %v3631
      %v3634 = vsel %vm1752, %v3633, %v3629
      %v3638 = vmul.bf16 %v3466, %v3632
      %v3639 = vmul.bf16 %v3467, %v3634
      %v3640 = vmul.bf16 %v3468, %v3631
      %v3644 = vcombine.high %v3638, %v3638
      %v3646 = vunpack.c.l.s4 1983009808
      %v3647 = vunpack.c.0.s8 %v3646
      %v3648 = vlaneseq
      %v3649 = vshrl.u32 %v3648, 7
      %v3650 = vsub.s32 %v3647, %v3649
      %v3651 = vrot.slane %v3638, %v3650
      %v3653 = vunpack.c.l.s4 1983009808
      %v3654 = vunpack.c.0.s8 %v3653
      %v3655 = vlaneseq
      %v3656 = vshrl.u32 %v3655, 7
      %v3657 = vsub.s32 %v3654, %v3656
      %v3658 = vrot.slane %v3644, %v3657
      %v3659 = vcombine.high %v3639, %v3639
      %v3661 = vunpack.c.l.s4 1983009808
      %v3662 = vunpack.c.0.s8 %v3661
      %v3663 = vlaneseq
      %v3664 = vshrl.u32 %v3663, 7
      %v3665 = vsub.s32 %v3662, %v3664
      %v3666 = vrot.slane %v3639, %v3665
      %v3668 = vunpack.c.l.s4 1983009808
      %v3669 = vunpack.c.0.s8 %v3668
      %v3670 = vlaneseq
      %v3671 = vshrl.u32 %v3670, 7
      %v3672 = vsub.s32 %v3669, %v3671
      %v3673 = vrot.slane %v3659, %v3672
      %v3675 = vunpack.c.l.s4 1983009808
      %v3676 = vunpack.c.0.s8 %v3675
      %v3677 = vlaneseq
      %v3678 = vshrl.u32 %v3677, 7
      %v3679 = vsub.s32 %v3676, %v3678
      %v3680 = vrot.slane %v3640, %v3679
      %3681 = vrot.lane.b32.xlu0 %v3651, 31
      %v3682 = vpop.permute.xlu0 %3681
      %3683 = vrot.lane.b32.xlu0 %v3658, 31
      %v3684 = vpop.permute.xlu0 %3683
      %3685 = vrot.lane.b32.xlu0 %v3666, 31
      %v3686 = vpop.permute.xlu0 %3685
      %3687 = vrot.lane.b32.xlu0 %v3673, 31
      %v3688 = vpop.permute.xlu0 %3687
      %3689 = vrot.lane.b32.xlu0 %v3680, 31
      %v3690 = vpop.permute.xlu0 %3689
      %v3691 = vrot.slane %v3682, 4
      %v3692 = vrot.slane %v3684, 4
      %v3693 = vrot.slane %v3686, 4
      %v3694 = vrot.slane %v3688, 4
      %v3695 = vrot.slane %v3690, 4
      %v3696 = vsel %vm1504, %v3691, %v3692
      %v3697 = vsel %vm1791, %v3682, %v3696
      %v3698 = vsel %vm1504, %v3692, %v3693
      %v3699 = vsel %vm1791, %v3684, %v3698
      %v3700 = vsel %vm1504, %v3693, %v3694
      %v3701 = vsel %vm1791, %v3686, %v3700
      %v3702 = vsel %vm1504, %v3694, %v3695
      %v3703 = vsel %vm1791, %v3688, %v3702
      %3708 = vst [vmem:[#allocation5 + $0x20] sm:$0x33] %v3697
      %3709 = vst [vmem:[#allocation5 + $0x28] sm:$0x33] %v3699
      %3710 = vst [vmem:[#allocation5 + $0x30] sm:$0x33] %v3701
      %3711 = vst [vmem:[#allocation5 + $0x38] sm:$0x33] %v3703
      %v3712 = vld [vmem:[#allocation3] sm:$0xff]
      %v3713 = vld [vmem:[#allocation3 + $0x8] sm:$0xff]
      %v3714 = vld [vmem:[#allocation3 + $0x10] sm:$0x3]
      %v3715 = vld [vmem:[%s7] sm:$0xff]
      %v3717 = vcombine.high %v3715, %v3715
      %v3719 = vunpack.c.l.s4 1966171168
      %v3720 = vunpack.c.0.s8 %v3719
      %v3721 = vlaneseq
      %v3722 = vshrl.u32 %v3721, 7
      %v3723 = vsub.s32 %v3720, %v3722
      %v3724 = vrot.slane %v3715, %v3723
      %v3726 = vunpack.c.l.s4 1966171168
      %v3727 = vunpack.c.0.s8 %v3726
      %v3728 = vlaneseq
      %v3729 = vshrl.u32 %v3728, 7
      %v3730 = vsub.s32 %v3727, %v3729
      %v3731 = vrot.slane %v3717, %v3730
      %v3732 = vcombine.high %v3724, %v3724
      %v3733 = vcombine.high %v3731, %v3731
      %v3735 = vunpack.c.l.s4 1966171168
      %v3736 = vunpack.c.0.s8 %v3735
      %v3737 = vlaneseq
      %v3738 = vshrl.u32 %v3737, 7
      %v3739 = vsub.s32 %v3736, %v3738
      %v3740 = vrot.slane %v3724, %v3739
      %v3742 = vunpack.c.l.s4 1966171168
      %v3743 = vunpack.c.0.s8 %v3742
      %v3744 = vlaneseq
      %v3745 = vshrl.u32 %v3744, 7
      %v3746 = vsub.s32 %v3743, %v3745
      %v3747 = vrot.slane %v3731, %v3746
      %v3749 = vunpack.c.l.s4 1966171168
      %v3750 = vunpack.c.0.s8 %v3749
      %v3751 = vlaneseq
      %v3752 = vshrl.u32 %v3751, 7
      %v3753 = vsub.s32 %v3750, %v3752
      %v3754 = vrot.slane %v3732, %v3753
      %v3756 = vunpack.c.l.s4 1966171168
      %v3757 = vunpack.c.0.s8 %v3756
      %v3758 = vlaneseq
      %v3759 = vshrl.u32 %v3758, 7
      %v3760 = vsub.s32 %v3757, %v3759
      %v3761 = vrot.slane %v3733, %v3760
      %v3762 = vcombine.high %v3740, %v3740
      %v3763 = vcombine.high %v3747, %v3747
      %v3764 = vcombine.high %v3754, %v3754
      %v3765 = vcombine.high %v3761, %v3761
      %v3767 = vpack.i.b16 %v3740, %v3740
      %v3769 = vlaneseq
      %v3770 = vshrl.u32 %v3769, 7
      %v3771 = vsub.s32 0, %v3770
      %v3772 = vrot.slane %v3767, %v3771
      %v3774 = vpack.i.b16 %v3754, %v3754
      %v3776 = vlaneseq
      %v3777 = vshrl.u32 %v3776, 7
      %v3778 = vsub.s32 0, %v3777
      %v3779 = vrot.slane %v3774, %v3778
      %v3781 = vpack.i.b16 %v3762, %v3762
      %v3783 = vlaneseq
      %v3784 = vshrl.u32 %v3783, 7
      %v3785 = vsub.s32 0, %v3784
      %v3786 = vrot.slane %v3781, %v3785
      %v3788 = vpack.i.b16 %v3764, %v3764
      %v3790 = vlaneseq
      %v3791 = vshrl.u32 %v3790, 7
      %v3792 = vsub.s32 0, %v3791
      %v3793 = vrot.slane %v3788, %v3792
      %v3795 = vpack.i.b16 %v3747, %v3747
      %v3797 = vlaneseq
      %v3798 = vshrl.u32 %v3797, 7
      %v3799 = vsub.s32 0, %v3798
      %v3800 = vrot.slane %v3795, %v3799
      %v3802 = vpack.i.b16 %v3761, %v3761
      %v3804 = vlaneseq
      %v3805 = vshrl.u32 %v3804, 7
      %v3806 = vsub.s32 0, %v3805
      %v3807 = vrot.slane %v3802, %v3806
      %v3809 = vpack.i.b16 %v3763, %v3763
      %v3811 = vlaneseq
      %v3812 = vshrl.u32 %v3811, 7
      %v3813 = vsub.s32 0, %v3812
      %v3814 = vrot.slane %v3809, %v3813
      %v3816 = vpack.i.b16 %v3765, %v3765
      %v3818 = vlaneseq
      %v3819 = vshrl.u32 %v3818, 7
      %v3820 = vsub.s32 0, %v3819
      %v3821 = vrot.slane %v3816, %v3820
      %v3830 = vcombine.low %v3772, %v3779
      %v3831 = vcombine.low %v3786, %v3793
      %v3833 = vunpack.c.l.s4 1983009808
      %v3834 = vunpack.c.0.s8 %v3833
      %v3835 = vlaneseq
      %v3836 = vshrl.u32 %v3835, 7
      %v3837 = vsub.s32 %v3834, %v3836
      %v3838 = vrot.slane %v3830, %v3837
      %v3840 = vunpack.c.l.s4 1983009808
      %v3841 = vunpack.c.0.s8 %v3840
      %v3842 = vlaneseq
      %v3843 = vshrl.u32 %v3842, 7
      %v3844 = vsub.s32 %v3841, %v3843
      %v3845 = vrot.slane %v3831, %v3844
      %v3846 = vcombine.low %v3838, %v3845
      %v3847 = vcombine.low %v3800, %v3807
      %v3848 = vcombine.low %v3814, %v3821
      %v3850 = vunpack.c.l.s4 1983009808
      %v3851 = vunpack.c.0.s8 %v3850
      %v3852 = vlaneseq
      %v3853 = vshrl.u32 %v3852, 7
      %v3854 = vsub.s32 %v3851, %v3853
      %v3855 = vrot.slane %v3847, %v3854
      %v3857 = vunpack.c.l.s4 1983009808
      %v3858 = vunpack.c.0.s8 %v3857
      %v3859 = vlaneseq
      %v3860 = vshrl.u32 %v3859, 7
      %v3861 = vsub.s32 %v3858, %v3860
      %v3862 = vrot.slane %v3848, %v3861
      %v3863 = vcombine.low %v3855, %v3862
      %3864 = vrot.lane.b32.xlu0 %v3846, 127
      %v3865 = vpop.permute.xlu0 %3864
      %3866 = vrot.lane.b32.xlu0 %v3863, 127
      %v3867 = vpop.permute.xlu0 %3866
      %v3868 = vrot.slane %v3865, 6
      %v3869 = vrot.slane %v3867, 6
      %v3870 = vsel %vm1951, %v3868, %v3865
      %v3871 = vsel %vm3311, %v3868, %v3869
      %v3872 = vsel %vm1951, %v3871, %v3867
      %v3876 = vmul.bf16 %v3712, %v3870
      %v3877 = vmul.bf16 %v3713, %v3872
      %v3878 = vmul.bf16 %v3714, %v3869
      %v3882 = vcombine.low %v3876, %v3876
      %v3884 = vunpack.c.l.s4 1983009808
      %v3885 = vunpack.c.0.s8 %v3884
      %v3886 = vlaneseq
      %v3887 = vshrl.u32 %v3886, 7
      %v3888 = vsub.s32 %v3885, %v3887
      %v3889 = vrot.slane %v3882, %v3888
      %v3891 = vunpack.c.l.s4 1983009808
      %v3892 = vunpack.c.0.s8 %v3891
      %v3893 = vlaneseq
      %v3894 = vshrl.u32 %v3893, 7
      %v3895 = vsub.s32 %v3892, %v3894
      %v3896 = vrot.slane %v3876, %v3895
      %v3897 = vcombine.low %v3877, %v3877
      %v3899 = vunpack.c.l.s4 1983009808
      %v3900 = vunpack.c.0.s8 %v3899
      %v3901 = vlaneseq
      %v3902 = vshrl.u32 %v3901, 7
      %v3903 = vsub.s32 %v3900, %v3902
      %v3904 = vrot.slane %v3897, %v3903
      %v3906 = vunpack.c.l.s4 1983009808
      %v3907 = vunpack.c.0.s8 %v3906
      %v3908 = vlaneseq
      %v3909 = vshrl.u32 %v3908, 7
      %v3910 = vsub.s32 %v3907, %v3909
      %v3911 = vrot.slane %v3877, %v3910
      %v3912 = vcombine.low %v3878, %v3878
      %v3914 = vunpack.c.l.s4 1983009808
      %v3915 = vunpack.c.0.s8 %v3914
      %v3916 = vlaneseq
      %v3917 = vshrl.u32 %v3916, 7
      %v3918 = vsub.s32 %v3915, %v3917
      %v3919 = vrot.slane %v3912, %v3918
      %3920 = vrot.lane.b32.xlu0 %v3889, 1
      %v3921 = vpop.permute.xlu0 %3920
      %3922 = vrot.lane.b32.xlu0 %v3896, 1
      %v3923 = vpop.permute.xlu0 %3922
      %3924 = vrot.lane.b32.xlu0 %v3904, 1
      %v3925 = vpop.permute.xlu0 %3924
      %3926 = vrot.lane.b32.xlu0 %v3911, 1
      %v3927 = vpop.permute.xlu0 %3926
      %3928 = vrot.lane.b32.xlu0 %v3919, 1
      %v3929 = vpop.permute.xlu0 %3928
      %v3930 = vrot.slane %v3921, 4
      %v3931 = vrot.slane %v3923, 4
      %v3932 = vrot.slane %v3925, 4
      %v3933 = vrot.slane %v3927, 4
      %v3934 = vrot.slane %v3929, 4
      %v3935 = vsel %vm1504, %v3930, %v3931
      %v3936 = vsel %vm1990, %v3921, %v3935
      %v3937 = vsel %vm1504, %v3931, %v3932
      %v3938 = vsel %vm1990, %v3923, %v3937
      %v3939 = vsel %vm1504, %v3932, %v3933
      %v3940 = vsel %vm1990, %v3925, %v3939
      %v3941 = vsel %vm1504, %v3933, %v3934
      %v3942 = vsel %vm1990, %v3927, %v3941
      %3947 = vst [vmem:[#allocation5 + $0x20] sm:$0xcc] %v3936
      %3948 = vst [vmem:[#allocation5 + $0x28] sm:$0xcc] %v3938
      %3949 = vst [vmem:[#allocation5 + $0x30] sm:$0xcc] %v3940
      %3950 = vst [vmem:[#allocation5 + $0x38] sm:$0xcc] %v3942
      %v3951 = vld [vmem:[#allocation3 + $0x2] sm:$0xff]
      %v3952 = vld [vmem:[#allocation3 + $0xa] sm:$0xff]
      %v3955 = vcombine.high %v3951, %v3951
      %v3957 = vunpack.c.l.s4 1983009808
      %v3958 = vunpack.c.0.s8 %v3957
      %v3959 = vlaneseq
      %v3960 = vshrl.u32 %v3959, 7
      %v3961 = vsub.s32 %v3958, %v3960
      %v3962 = vrot.slane %v3951, %v3961
      %v3964 = vunpack.c.l.s4 1983009808
      %v3965 = vunpack.c.0.s8 %v3964
      %v3966 = vlaneseq
      %v3967 = vshrl.u32 %v3966, 7
      %v3968 = vsub.s32 %v3965, %v3967
      %v3969 = vrot.slane %v3955, %v3968
      %v3970 = vcombine.high %v3952, %v3952
      %v3972 = vunpack.c.l.s4 1983009808
      %v3973 = vunpack.c.0.s8 %v3972
      %v3974 = vlaneseq
      %v3975 = vshrl.u32 %v3974, 7
      %v3976 = vsub.s32 %v3973, %v3975
      %v3977 = vrot.slane %v3952, %v3976
      %v3979 = vunpack.c.l.s4 1983009808
      %v3980 = vunpack.c.0.s8 %v3979
      %v3981 = vlaneseq
      %v3982 = vshrl.u32 %v3981, 7
      %v3983 = vsub.s32 %v3980, %v3982
      %v3984 = vrot.slane %v3970, %v3983
      %3989 = vst [vmem:[#allocation5 + $0x40] sm:$0x33] %v3962
      %3990 = vst [vmem:[#allocation5 + $0x48] sm:$0x33] %v3969
      %3991 = vst [vmem:[#allocation5 + $0x50] sm:$0x33] %v3977
      %3992 = vst [vmem:[#allocation5 + $0x58] sm:$0x33] %v3984
      %v3993 = vld [vmem:[#allocation3 + $0x2] sm:$0xff]
      %v3994 = vld [vmem:[#allocation3 + $0xa] sm:$0xff]
      %v3995 = vld [vmem:[#allocation3 + $0x12] sm:$0x3]
      %v3996 = vld [vmem:[%s7] sm:$0xff]
      %v3998 = vcombine.high %v3996, %v3996
      %v4000 = vunpack.c.l.s4 1966171168
      %v4001 = vunpack.c.0.s8 %v4000
      %v4002 = vlaneseq
      %v4003 = vshrl.u32 %v4002, 7
      %v4004 = vsub.s32 %v4001, %v4003
      %v4005 = vrot.slane %v3996, %v4004
      %v4007 = vunpack.c.l.s4 1966171168
      %v4008 = vunpack.c.0.s8 %v4007
      %v4009 = vlaneseq
      %v4010 = vshrl.u32 %v4009, 7
      %v4011 = vsub.s32 %v4008, %v4010
      %v4012 = vrot.slane %v3998, %v4011
      %v4013 = vcombine.high %v4005, %v4005
      %v4014 = vcombine.high %v4012, %v4012
      %v4016 = vunpack.c.l.s4 1966171168
      %v4017 = vunpack.c.0.s8 %v4016
      %v4018 = vlaneseq
      %v4019 = vshrl.u32 %v4018, 7
      %v4020 = vsub.s32 %v4017, %v4019
      %v4021 = vrot.slane %v4005, %v4020
      %v4023 = vunpack.c.l.s4 1966171168
      %v4024 = vunpack.c.0.s8 %v4023
      %v4025 = vlaneseq
      %v4026 = vshrl.u32 %v4025, 7
      %v4027 = vsub.s32 %v4024, %v4026
      %v4028 = vrot.slane %v4012, %v4027
      %v4030 = vunpack.c.l.s4 1966171168
      %v4031 = vunpack.c.0.s8 %v4030
      %v4032 = vlaneseq
      %v4033 = vshrl.u32 %v4032, 7
      %v4034 = vsub.s32 %v4031, %v4033
      %v4035 = vrot.slane %v4013, %v4034
      %v4037 = vunpack.c.l.s4 1966171168
      %v4038 = vunpack.c.0.s8 %v4037
      %v4039 = vlaneseq
      %v4040 = vshrl.u32 %v4039, 7
      %v4041 = vsub.s32 %v4038, %v4040
      %v4042 = vrot.slane %v4014, %v4041
      %v4043 = vcombine.high %v4021, %v4021
      %v4044 = vcombine.high %v4028, %v4028
      %v4045 = vcombine.high %v4035, %v4035
      %v4046 = vcombine.high %v4042, %v4042
      %v4048 = vshrl.u32 %v4021, 16
      %v4049 = vpack.i.b16 %v4048, %v4048
      %v4051 = vlaneseq
      %v4052 = vshrl.u32 %v4051, 7
      %v4053 = vsub.s32 0, %v4052
      %v4054 = vrot.slane %v4049, %v4053
      %v4056 = vshrl.u32 %v4035, 16
      %v4057 = vpack.i.b16 %v4056, %v4056
      %v4059 = vlaneseq
      %v4060 = vshrl.u32 %v4059, 7
      %v4061 = vsub.s32 0, %v4060
      %v4062 = vrot.slane %v4057, %v4061
      %v4064 = vshrl.u32 %v4043, 16
      %v4065 = vpack.i.b16 %v4064, %v4064
      %v4067 = vlaneseq
      %v4068 = vshrl.u32 %v4067, 7
      %v4069 = vsub.s32 0, %v4068
      %v4070 = vrot.slane %v4065, %v4069
      %v4072 = vshrl.u32 %v4045, 16
      %v4073 = vpack.i.b16 %v4072, %v4072
      %v4075 = vlaneseq
      %v4076 = vshrl.u32 %v4075, 7
      %v4077 = vsub.s32 0, %v4076
      %v4078 = vrot.slane %v4073, %v4077
      %v4080 = vshrl.u32 %v4028, 16
      %v4081 = vpack.i.b16 %v4080, %v4080
      %v4083 = vlaneseq
      %v4084 = vshrl.u32 %v4083, 7
      %v4085 = vsub.s32 0, %v4084
      %v4086 = vrot.slane %v4081, %v4085
      %v4088 = vshrl.u32 %v4042, 16
      %v4089 = vpack.i.b16 %v4088, %v4088
      %v4091 = vlaneseq
      %v4092 = vshrl.u32 %v4091, 7
      %v4093 = vsub.s32 0, %v4092
      %v4094 = vrot.slane %v4089, %v4093
      %v4096 = vshrl.u32 %v4044, 16
      %v4097 = vpack.i.b16 %v4096, %v4096
      %v4099 = vlaneseq
      %v4100 = vshrl.u32 %v4099, 7
      %v4101 = vsub.s32 0, %v4100
      %v4102 = vrot.slane %v4097, %v4101
      %v4104 = vshrl.u32 %v4046, 16
      %v4105 = vpack.i.b16 %v4104, %v4104
      %v4107 = vlaneseq
      %v4108 = vshrl.u32 %v4107, 7
      %v4109 = vsub.s32 0, %v4108
      %v4110 = vrot.slane %v4105, %v4109
      %v4119 = vcombine.low %v4054, %v4062
      %v4120 = vcombine.low %v4070, %v4078
      %v4122 = vunpack.c.l.s4 1983009808
      %v4123 = vunpack.c.0.s8 %v4122
      %v4124 = vlaneseq
      %v4125 = vshrl.u32 %v4124, 7
      %v4126 = vsub.s32 %v4123, %v4125
      %v4127 = vrot.slane %v4119, %v4126
      %v4129 = vunpack.c.l.s4 1983009808
      %v4130 = vunpack.c.0.s8 %v4129
      %v4131 = vlaneseq
      %v4132 = vshrl.u32 %v4131, 7
      %v4133 = vsub.s32 %v4130, %v4132
      %v4134 = vrot.slane %v4120, %v4133
      %v4135 = vcombine.low %v4127, %v4134
      %v4136 = vcombine.low %v4086, %v4094
      %v4137 = vcombine.low %v4102, %v4110
      %v4139 = vunpack.c.l.s4 1983009808
      %v4140 = vunpack.c.0.s8 %v4139
      %v4141 = vlaneseq
      %v4142 = vshrl.u32 %v4141, 7
      %v4143 = vsub.s32 %v4140, %v4142
      %v4144 = vrot.slane %v4136, %v4143
      %v4146 = vunpack.c.l.s4 1983009808
      %v4147 = vunpack.c.0.s8 %v4146
      %v4148 = vlaneseq
      %v4149 = vshrl.u32 %v4148, 7
      %v4150 = vsub.s32 %v4147, %v4149
      %v4151 = vrot.slane %v4137, %v4150
      %v4152 = vcombine.low %v4144, %v4151
      %4153 = vrot.lane.b32.xlu0 %v4135, 1
      %v4154 = vpop.permute.xlu0 %4153
      %4155 = vrot.lane.b32.xlu0 %v4152, 1
      %v4156 = vpop.permute.xlu0 %4155
      %v4157 = vrot.slane %v4154, 6
      %v4158 = vrot.slane %v4156, 6
      %v4159 = vsel %vm1990, %v4157, %v4154
      %v4160 = vsel %vm3311, %v4157, %v4158
      %v4161 = vsel %vm1990, %v4160, %v4156
      %v4165 = vmul.bf16 %v3993, %v4159
      %v4166 = vmul.bf16 %v3994, %v4161
      %v4167 = vmul.bf16 %v3995, %v4158
      %v4171 = vcombine.low %v4165, %v4165
      %v4173 = vunpack.c.l.s4 1983009808
      %v4174 = vunpack.c.0.s8 %v4173
      %v4175 = vlaneseq
      %v4176 = vshrl.u32 %v4175, 7
      %v4177 = vsub.s32 %v4174, %v4176
      %v4178 = vrot.slane %v4171, %v4177
      %v4180 = vunpack.c.l.s4 1983009808
      %v4181 = vunpack.c.0.s8 %v4180
      %v4182 = vlaneseq
      %v4183 = vshrl.u32 %v4182, 7
      %v4184 = vsub.s32 %v4181, %v4183
      %v4185 = vrot.slane %v4165, %v4184
      %v4186 = vcombine.low %v4166, %v4166
      %v4188 = vunpack.c.l.s4 1983009808
      %v4189 = vunpack.c.0.s8 %v4188
      %v4190 = vlaneseq
      %v4191 = vshrl.u32 %v4190, 7
      %v4192 = vsub.s32 %v4189, %v4191
      %v4193 = vrot.slane %v4186, %v4192
      %v4195 = vunpack.c.l.s4 1983009808
      %v4196 = vunpack.c.0.s8 %v4195
      %v4197 = vlaneseq
      %v4198 = vshrl.u32 %v4197, 7
      %v4199 = vsub.s32 %v4196, %v4198
      %v4200 = vrot.slane %v4166, %v4199
      %v4201 = vcombine.low %v4167, %v4167
      %v4203 = vunpack.c.l.s4 1983009808
      %v4204 = vunpack.c.0.s8 %v4203
      %v4205 = vlaneseq
      %v4206 = vshrl.u32 %v4205, 7
      %v4207 = vsub.s32 %v4204, %v4206
      %v4208 = vrot.slane %v4201, %v4207
      %4209 = vrot.lane.b32.xlu0 %v4178, 127
      %v4210 = vpop.permute.xlu0 %4209
      %4211 = vrot.lane.b32.xlu0 %v4185, 127
      %v4212 = vpop.permute.xlu0 %4211
      %4213 = vrot.lane.b32.xlu0 %v4193, 127
      %v4214 = vpop.permute.xlu0 %4213
      %4215 = vrot.lane.b32.xlu0 %v4200, 127
      %v4216 = vpop.permute.xlu0 %4215
      %4217 = vrot.lane.b32.xlu0 %v4208, 127
      %v4218 = vpop.permute.xlu0 %4217
      %v4219 = vrot.slane %v4210, 4
      %v4220 = vrot.slane %v4212, 4
      %v4221 = vrot.slane %v4214, 4
      %v4222 = vrot.slane %v4216, 4
      %v4223 = vrot.slane %v4218, 4
      %v4224 = vsel %vm1504, %v4219, %v4220
      %v4225 = vsel %vm1951, %v4210, %v4224
      %v4226 = vsel %vm1504, %v4220, %v4221
      %v4227 = vsel %vm1951, %v4212, %v4226
      %v4228 = vsel %vm1504, %v4221, %v4222
      %v4229 = vsel %vm1951, %v4214, %v4228
      %v4230 = vsel %vm1504, %v4222, %v4223
      %v4231 = vsel %vm1951, %v4216, %v4230
      %4236 = vst [vmem:[#allocation5 + $0x40] sm:$0xcc] %v4225
      %4237 = vst [vmem:[#allocation5 + $0x48] sm:$0xcc] %v4227
      %4238 = vst [vmem:[#allocation5 + $0x50] sm:$0xcc] %v4229
      %4239 = vst [vmem:[#allocation5 + $0x58] sm:$0xcc] %v4231
      %v4240 = vld [vmem:[#allocation3 + $0x2] sm:$0xff]
      %v4241 = vld [vmem:[#allocation3 + $0xa] sm:$0xff]
      %v4242 = vld [vmem:[#allocation3 + $0x12] sm:$0x3]
      %v4243 = vld [vmem:[%s7] sm:$0xff]
      %v4245 = vcombine.high %v4243, %v4243
      %v4247 = vunpack.c.l.s4 1966171168
      %v4248 = vunpack.c.0.s8 %v4247
      %v4249 = vlaneseq
      %v4250 = vshrl.u32 %v4249, 7
      %v4251 = vsub.s32 %v4248, %v4250
      %v4252 = vrot.slane %v4243, %v4251
      %v4254 = vunpack.c.l.s4 1966171168
      %v4255 = vunpack.c.0.s8 %v4254
      %v4256 = vlaneseq
      %v4257 = vshrl.u32 %v4256, 7
      %v4258 = vsub.s32 %v4255, %v4257
      %v4259 = vrot.slane %v4245, %v4258
      %v4260 = vcombine.high %v4252, %v4252
      %v4261 = vcombine.high %v4259, %v4259
      %v4263 = vunpack.c.l.s4 1966171168
      %v4264 = vunpack.c.0.s8 %v4263
      %v4265 = vlaneseq
      %v4266 = vshrl.u32 %v4265, 7
      %v4267 = vsub.s32 %v4264, %v4266
      %v4268 = vrot.slane %v4252, %v4267
      %v4270 = vunpack.c.l.s4 1966171168
      %v4271 = vunpack.c.0.s8 %v4270
      %v4272 = vlaneseq
      %v4273 = vshrl.u32 %v4272, 7
      %v4274 = vsub.s32 %v4271, %v4273
      %v4275 = vrot.slane %v4259, %v4274
      %v4277 = vunpack.c.l.s4 1966171168
      %v4278 = vunpack.c.0.s8 %v4277
      %v4279 = vlaneseq
      %v4280 = vshrl.u32 %v4279, 7
      %v4281 = vsub.s32 %v4278, %v4280
      %v4282 = vrot.slane %v4260, %v4281
      %v4284 = vunpack.c.l.s4 1966171168
      %v4285 = vunpack.c.0.s8 %v4284
      %v4286 = vlaneseq
      %v4287 = vshrl.u32 %v4286, 7
      %v4288 = vsub.s32 %v4285, %v4287
      %v4289 = vrot.slane %v4261, %v4288
      %v4290 = vcombine.high %v4268, %v4268
      %v4291 = vcombine.high %v4275, %v4275
      %v4292 = vcombine.high %v4282, %v4282
      %v4293 = vcombine.high %v4289, %v4289
      %v4295 = vpack.i.b16 %v4268, %v4268
      %v4297 = vlaneseq
      %v4298 = vshrl.u32 %v4297, 7
      %v4299 = vsub.s32 0, %v4298
      %v4300 = vrot.slane %v4295, %v4299
      %v4302 = vpack.i.b16 %v4282, %v4282
      %v4304 = vlaneseq
      %v4305 = vshrl.u32 %v4304, 7
      %v4306 = vsub.s32 0, %v4305
      %v4307 = vrot.slane %v4302, %v4306
      %v4309 = vpack.i.b16 %v4290, %v4290
      %v4311 = vlaneseq
      %v4312 = vshrl.u32 %v4311, 7
      %v4313 = vsub.s32 0, %v4312
      %v4314 = vrot.slane %v4309, %v4313
      %v4316 = vpack.i.b16 %v4292, %v4292
      %v4318 = vlaneseq
      %v4319 = vshrl.u32 %v4318, 7
      %v4320 = vsub.s32 0, %v4319
      %v4321 = vrot.slane %v4316, %v4320
      %v4323 = vpack.i.b16 %v4275, %v4275
      %v4325 = vlaneseq
      %v4326 = vshrl.u32 %v4325, 7
      %v4327 = vsub.s32 0, %v4326
      %v4328 = vrot.slane %v4323, %v4327
      %v4330 = vpack.i.b16 %v4289, %v4289
      %v4332 = vlaneseq
      %v4333 = vshrl.u32 %v4332, 7
      %v4334 = vsub.s32 0, %v4333
      %v4335 = vrot.slane %v4330, %v4334
      %v4337 = vpack.i.b16 %v4291, %v4291
      %v4339 = vlaneseq
      %v4340 = vshrl.u32 %v4339, 7
      %v4341 = vsub.s32 0, %v4340
      %v4342 = vrot.slane %v4337, %v4341
      %v4344 = vpack.i.b16 %v4293, %v4293
      %v4346 = vlaneseq
      %v4347 = vshrl.u32 %v4346, 7
      %v4348 = vsub.s32 0, %v4347
      %v4349 = vrot.slane %v4344, %v4348
      %v4358 = vcombine.low %v4300, %v4307
      %v4359 = vcombine.low %v4314, %v4321
      %v4361 = vunpack.c.l.s4 1983009808
      %v4362 = vunpack.c.0.s8 %v4361
      %v4363 = vlaneseq
      %v4364 = vshrl.u32 %v4363, 7
      %v4365 = vsub.s32 %v4362, %v4364
      %v4366 = vrot.slane %v4358, %v4365
      %v4368 = vunpack.c.l.s4 1983009808
      %v4369 = vunpack.c.0.s8 %v4368
      %v4370 = vlaneseq
      %v4371 = vshrl.u32 %v4370, 7
      %v4372 = vsub.s32 %v4369, %v4371
      %v4373 = vrot.slane %v4359, %v4372
      %v4374 = vcombine.low %v4366, %v4373
      %v4375 = vcombine.low %v4328, %v4335
      %v4376 = vcombine.low %v4342, %v4349
      %v4378 = vunpack.c.l.s4 1983009808
      %v4379 = vunpack.c.0.s8 %v4378
      %v4380 = vlaneseq
      %v4381 = vshrl.u32 %v4380, 7
      %v4382 = vsub.s32 %v4379, %v4381
      %v4383 = vrot.slane %v4375, %v4382
      %v4385 = vunpack.c.l.s4 1983009808
      %v4386 = vunpack.c.0.s8 %v4385
      %v4387 = vlaneseq
      %v4388 = vshrl.u32 %v4387, 7
      %v4389 = vsub.s32 %v4386, %v4388
      %v4390 = vrot.slane %v4376, %v4389
      %v4391 = vcombine.low %v4383, %v4390
      %4392 = vrot.lane.b32.xlu0 %v4374, 31
      %v4393 = vpop.permute.xlu0 %4392
      %4394 = vrot.lane.b32.xlu0 %v4391, 31
      %v4395 = vpop.permute.xlu0 %4394
      %v4396 = vrot.slane %v4393, 6
      %v4397 = vrot.slane %v4395, 6
      %v4398 = vsel %vm1791, %v4396, %v4393
      %v4399 = vsel %vm3311, %v4396, %v4397
      %v4400 = vsel %vm1791, %v4399, %v4395
      %v4404 = vmul.bf16 %v4240, %v4398
      %v4405 = vmul.bf16 %v4241, %v4400
      %v4406 = vmul.bf16 %v4242, %v4397
      %v4410 = vcombine.high %v4404, %v4404
      %v4412 = vunpack.c.l.s4 1983009808
      %v4413 = vunpack.c.0.s8 %v4412
      %v4414 = vlaneseq
      %v4415 = vshrl.u32 %v4414, 7
      %v4416 = vsub.s32 %v4413, %v4415
      %v4417 = vrot.slane %v4404, %v4416
      %v4419 = vunpack.c.l.s4 1983009808
      %v4420 = vunpack.c.0.s8 %v4419
      %v4421 = vlaneseq
      %v4422 = vshrl.u32 %v4421, 7
      %v4423 = vsub.s32 %v4420, %v4422
      %v4424 = vrot.slane %v4410, %v4423
      %v4425 = vcombine.high %v4405, %v4405
      %v4427 = vunpack.c.l.s4 1983009808
      %v4428 = vunpack.c.0.s8 %v4427
      %v4429 = vlaneseq
      %v4430 = vshrl.u32 %v4429, 7
      %v4431 = vsub.s32 %v4428, %v4430
      %v4432 = vrot.slane %v4405, %v4431
      %v4434 = vunpack.c.l.s4 1983009808
      %v4435 = vunpack.c.0.s8 %v4434
      %v4436 = vlaneseq
      %v4437 = vshrl.u32 %v4436, 7
      %v4438 = vsub.s32 %v4435, %v4437
      %v4439 = vrot.slane %v4425, %v4438
      %v4441 = vunpack.c.l.s4 1983009808
      %v4442 = vunpack.c.0.s8 %v4441
      %v4443 = vlaneseq
      %v4444 = vshrl.u32 %v4443, 7
      %v4445 = vsub.s32 %v4442, %v4444
      %v4446 = vrot.slane %v4406, %v4445
      %4447 = vrot.lane.b32.xlu0 %v4417, 97
      %v4448 = vpop.permute.xlu0 %4447
      %4449 = vrot.lane.b32.xlu0 %v4424, 97
      %v4450 = vpop.permute.xlu0 %4449
      %4451 = vrot.lane.b32.xlu0 %v4432, 97
      %v4452 = vpop.permute.xlu0 %4451
      %4453 = vrot.lane.b32.xlu0 %v4439, 97
      %v4454 = vpop.permute.xlu0 %4453
      %4455 = vrot.lane.b32.xlu0 %v4446, 97
      %v4456 = vpop.permute.xlu0 %4455
      %v4457 = vrot.slane %v4448, 4
      %v4458 = vrot.slane %v4450, 4
      %v4459 = vrot.slane %v4452, 4
      %v4460 = vrot.slane %v4454, 4
      %v4461 = vrot.slane %v4456, 4
      %v4462 = vsel %vm1504, %v4457, %v4458
      %v4463 = vsel %vm1752, %v4448, %v4462
      %v4464 = vsel %vm1504, %v4458, %v4459
      %v4465 = vsel %vm1752, %v4450, %v4464
      %v4466 = vsel %vm1504, %v4459, %v4460
      %v4467 = vsel %vm1752, %v4452, %v4466
      %v4468 = vsel %vm1504, %v4460, %v4461
      %v4469 = vsel %vm1752, %v4454, %v4468
      %4474 = vst [vmem:[#allocation5 + $0x60] sm:$0x33] %v4463
      %4475 = vst [vmem:[#allocation5 + $0x68] sm:$0x33] %v4465
      %4476 = vst [vmem:[#allocation5 + $0x70] sm:$0x33] %v4467
      %4477 = vst [vmem:[#allocation5 + $0x78] sm:$0x33] %v4469
      %v4478 = vld [vmem:[#allocation3 + $0x2] sm:$0xff]
      %v4479 = vld [vmem:[#allocation3 + $0xa] sm:$0xff]
      %v4480 = vld [vmem:[#allocation3 + $0x12] sm:$0x3]
      %v4484 = vcombine.low %v4478, %v4478
      %v4486 = vunpack.c.l.s4 1983009808
      %v4487 = vunpack.c.0.s8 %v4486
      %v4488 = vlaneseq
      %v4489 = vshrl.u32 %v4488, 7
      %v4490 = vsub.s32 %v4487, %v4489
      %v4491 = vrot.slane %v4484, %v4490
      %v4493 = vunpack.c.l.s4 1983009808
      %v4494 = vunpack.c.0.s8 %v4493
      %v4495 = vlaneseq
      %v4496 = vshrl.u32 %v4495, 7
      %v4497 = vsub.s32 %v4494, %v4496
      %v4498 = vrot.slane %v4478, %v4497
      %v4499 = vcombine.low %v4479, %v4479
      %v4501 = vunpack.c.l.s4 1983009808
      %v4502 = vunpack.c.0.s8 %v4501
      %v4503 = vlaneseq
      %v4504 = vshrl.u32 %v4503, 7
      %v4505 = vsub.s32 %v4502, %v4504
      %v4506 = vrot.slane %v4499, %v4505
      %v4508 = vunpack.c.l.s4 1983009808
      %v4509 = vunpack.c.0.s8 %v4508
      %v4510 = vlaneseq
      %v4511 = vshrl.u32 %v4510, 7
      %v4512 = vsub.s32 %v4509, %v4511
      %v4513 = vrot.slane %v4479, %v4512
      %v4514 = vcombine.low %v4480, %v4480
      %v4516 = vunpack.c.l.s4 1983009808
      %v4517 = vunpack.c.0.s8 %v4516
      %v4518 = vlaneseq
      %v4519 = vshrl.u32 %v4518, 7
      %v4520 = vsub.s32 %v4517, %v4519
      %v4521 = vrot.slane %v4514, %v4520
      %4522 = vrot.lane.b32.xlu0 %v4491, 96
      %v4523 = vpop.permute.xlu0 %4522
      %4524 = vrot.lane.b32.xlu0 %v4498, 96
      %v4525 = vpop.permute.xlu0 %4524
      %4526 = vrot.lane.b32.xlu0 %v4506, 96
      %v4527 = vpop.permute.xlu0 %4526
      %4528 = vrot.lane.b32.xlu0 %v4513, 96
      %v4529 = vpop.permute.xlu0 %4528
      %4530 = vrot.lane.b32.xlu0 %v4521, 96
      %v4531 = vpop.permute.xlu0 %4530
      %v4532 = vrot.slane %v4523, 4
      %v4533 = vrot.slane %v4525, 4
      %v4534 = vrot.slane %v4527, 4
      %v4535 = vrot.slane %v4529, 4
      %v4536 = vrot.slane %v4531, 4
      %v4537 = vsel %vm1504, %v4532, %v4533
      %v4538 = vsel %vm2442, %v4523, %v4537
      %v4539 = vsel %vm1504, %v4533, %v4534
      %v4540 = vsel %vm2442, %v4525, %v4539
      %v4541 = vsel %vm1504, %v4534, %v4535
      %v4542 = vsel %vm2442, %v4527, %v4541
      %v4543 = vsel %vm1504, %v4535, %v4536
      %v4544 = vsel %vm2442, %v4529, %v4543
      %4549 = vst [vmem:[#allocation5 + $0x60] sm:$0xcc] %v4538
      %4550 = vst [vmem:[#allocation5 + $0x68] sm:$0xcc] %v4540
      %4551 = vst [vmem:[#allocation5 + $0x70] sm:$0xcc] %v4542
      %4552 = vst [vmem:[#allocation5 + $0x78] sm:$0xcc] %v4544
      %v4553 = vld [vmem:[#allocation3 + $0x2] sm:$0xff]
      %v4554 = vld [vmem:[#allocation3 + $0xa] sm:$0xff]
      %v4555 = vld [vmem:[#allocation3 + $0x12] sm:$0x3]
      %v4556 = vld [vmem:[%s7] sm:$0xff]
      %v4558 = vcombine.high %v4556, %v4556
      %v4560 = vunpack.c.l.s4 1966171168
      %v4561 = vunpack.c.0.s8 %v4560
      %v4562 = vlaneseq
      %v4563 = vshrl.u32 %v4562, 7
      %v4564 = vsub.s32 %v4561, %v4563
      %v4565 = vrot.slane %v4556, %v4564
      %v4567 = vunpack.c.l.s4 1966171168
      %v4568 = vunpack.c.0.s8 %v4567
      %v4569 = vlaneseq
      %v4570 = vshrl.u32 %v4569, 7
      %v4571 = vsub.s32 %v4568, %v4570
      %v4572 = vrot.slane %v4558, %v4571
      %v4573 = vcombine.high %v4565, %v4565
      %v4574 = vcombine.high %v4572, %v4572
      %v4576 = vunpack.c.l.s4 1966171168
      %v4577 = vunpack.c.0.s8 %v4576
      %v4578 = vlaneseq
      %v4579 = vshrl.u32 %v4578, 7
      %v4580 = vsub.s32 %v4577, %v4579
      %v4581 = vrot.slane %v4565, %v4580
      %v4583 = vunpack.c.l.s4 1966171168
      %v4584 = vunpack.c.0.s8 %v4583
      %v4585 = vlaneseq
      %v4586 = vshrl.u32 %v4585, 7
      %v4587 = vsub.s32 %v4584, %v4586
      %v4588 = vrot.slane %v4572, %v4587
      %v4590 = vunpack.c.l.s4 1966171168
      %v4591 = vunpack.c.0.s8 %v4590
      %v4592 = vlaneseq
      %v4593 = vshrl.u32 %v4592, 7
      %v4594 = vsub.s32 %v4591, %v4593
      %v4595 = vrot.slane %v4573, %v4594
      %v4597 = vunpack.c.l.s4 1966171168
      %v4598 = vunpack.c.0.s8 %v4597
      %v4599 = vlaneseq
      %v4600 = vshrl.u32 %v4599, 7
      %v4601 = vsub.s32 %v4598, %v4600
      %v4602 = vrot.slane %v4574, %v4601
      %v4603 = vcombine.high %v4581, %v4581
      %v4604 = vcombine.high %v4588, %v4588
      %v4605 = vcombine.high %v4595, %v4595
      %v4606 = vcombine.high %v4602, %v4602
      %v4608 = vshrl.u32 %v4581, 16
      %v4609 = vpack.i.b16 %v4608, %v4608
      %v4611 = vlaneseq
      %v4612 = vshrl.u32 %v4611, 7
      %v4613 = vsub.s32 0, %v4612
      %v4614 = vrot.slane %v4609, %v4613
      %v4616 = vshrl.u32 %v4595, 16
      %v4617 = vpack.i.b16 %v4616, %v4616
      %v4619 = vlaneseq
      %v4620 = vshrl.u32 %v4619, 7
      %v4621 = vsub.s32 0, %v4620
      %v4622 = vrot.slane %v4617, %v4621
      %v4624 = vshrl.u32 %v4603, 16
      %v4625 = vpack.i.b16 %v4624, %v4624
      %v4627 = vlaneseq
      %v4628 = vshrl.u32 %v4627, 7
      %v4629 = vsub.s32 0, %v4628
      %v4630 = vrot.slane %v4625, %v4629
      %v4632 = vshrl.u32 %v4605, 16
      %v4633 = vpack.i.b16 %v4632, %v4632
      %v4635 = vlaneseq
      %v4636 = vshrl.u32 %v4635, 7
      %v4637 = vsub.s32 0, %v4636
      %v4638 = vrot.slane %v4633, %v4637
      %v4640 = vshrl.u32 %v4588, 16
      %v4641 = vpack.i.b16 %v4640, %v4640
      %v4643 = vlaneseq
      %v4644 = vshrl.u32 %v4643, 7
      %v4645 = vsub.s32 0, %v4644
      %v4646 = vrot.slane %v4641, %v4645
      %v4648 = vshrl.u32 %v4602, 16
      %v4649 = vpack.i.b16 %v4648, %v4648
      %v4651 = vlaneseq
      %v4652 = vshrl.u32 %v4651, 7
      %v4653 = vsub.s32 0, %v4652
      %v4654 = vrot.slane %v4649, %v4653
      %v4656 = vshrl.u32 %v4604, 16
      %v4657 = vpack.i.b16 %v4656, %v4656
      %v4659 = vlaneseq
      %v4660 = vshrl.u32 %v4659, 7
      %v4661 = vsub.s32 0, %v4660
      %v4662 = vrot.slane %v4657, %v4661
      %v4664 = vshrl.u32 %v4606, 16
      %v4665 = vpack.i.b16 %v4664, %v4664
      %v4667 = vlaneseq
      %v4668 = vshrl.u32 %v4667, 7
      %v4669 = vsub.s32 0, %v4668
      %v4670 = vrot.slane %v4665, %v4669
      %v4679 = vcombine.low %v4614, %v4622
      %v4680 = vcombine.low %v4630, %v4638
      %v4682 = vunpack.c.l.s4 1983009808
      %v4683 = vunpack.c.0.s8 %v4682
      %v4684 = vlaneseq
      %v4685 = vshrl.u32 %v4684, 7
      %v4686 = vsub.s32 %v4683, %v4685
      %v4687 = vrot.slane %v4679, %v4686
      %v4689 = vunpack.c.l.s4 1983009808
      %v4690 = vunpack.c.0.s8 %v4689
      %v4691 = vlaneseq
      %v4692 = vshrl.u32 %v4691, 7
      %v4693 = vsub.s32 %v4690, %v4692
      %v4694 = vrot.slane %v4680, %v4693
      %v4695 = vcombine.low %v4687, %v4694
      %v4696 = vcombine.low %v4646, %v4654
      %v4697 = vcombine.low %v4662, %v4670
      %v4699 = vunpack.c.l.s4 1983009808
      %v4700 = vunpack.c.0.s8 %v4699
      %v4701 = vlaneseq
      %v4702 = vshrl.u32 %v4701, 7
      %v4703 = vsub.s32 %v4700, %v4702
      %v4704 = vrot.slane %v4696, %v4703
      %v4706 = vunpack.c.l.s4 1983009808
      %v4707 = vunpack.c.0.s8 %v4706
      %v4708 = vlaneseq
      %v4709 = vshrl.u32 %v4708, 7
      %v4710 = vsub.s32 %v4707, %v4709
      %v4711 = vrot.slane %v4697, %v4710
      %v4712 = vcombine.low %v4704, %v4711
      %4713 = vrot.lane.b32.xlu0 %v4695, 33
      %v4714 = vpop.permute.xlu0 %4713
      %4715 = vrot.lane.b32.xlu0 %v4712, 33
      %v4716 = vpop.permute.xlu0 %4715
      %v4717 = vrot.slane %v4714, 6
      %v4718 = vrot.slane %v4716, 6
      %v4719 = vsel %vm1542, %v4717, %v4714
      %v4720 = vsel %vm3311, %v4717, %v4718
      %v4721 = vsel %vm1542, %v4720, %v4716
      %v4725 = vmul.bf16 %v4553, %v4719
      %v4726 = vmul.bf16 %v4554, %v4721
      %v4727 = vmul.bf16 %v4555, %v4718
      %v4731 = vcombine.high %v4725, %v4725
      %v4733 = vunpack.c.l.s4 1983009808
      %v4734 = vunpack.c.0.s8 %v4733
      %v4735 = vlaneseq
      %v4736 = vshrl.u32 %v4735, 7
      %v4737 = vsub.s32 %v4734, %v4736
      %v4738 = vrot.slane %v4725, %v4737
      %v4740 = vunpack.c.l.s4 1983009808
      %v4741 = vunpack.c.0.s8 %v4740
      %v4742 = vlaneseq
      %v4743 = vshrl.u32 %v4742, 7
      %v4744 = vsub.s32 %v4741, %v4743
      %v4745 = vrot.slane %v4731, %v4744
      %v4746 = vcombine.high %v4726, %v4726
      %v4748 = vunpack.c.l.s4 1983009808
      %v4749 = vunpack.c.0.s8 %v4748
      %v4750 = vlaneseq
      %v4751 = vshrl.u32 %v4750, 7
      %v4752 = vsub.s32 %v4749, %v4751
      %v4753 = vrot.slane %v4726, %v4752
      %v4755 = vunpack.c.l.s4 1983009808
      %v4756 = vunpack.c.0.s8 %v4755
      %v4757 = vlaneseq
      %v4758 = vshrl.u32 %v4757, 7
      %v4759 = vsub.s32 %v4756, %v4758
      %v4760 = vrot.slane %v4746, %v4759
      %v4762 = vunpack.c.l.s4 1983009808
      %v4763 = vunpack.c.0.s8 %v4762
      %v4764 = vlaneseq
      %v4765 = vshrl.u32 %v4764, 7
      %v4766 = vsub.s32 %v4763, %v4765
      %v4767 = vrot.slane %v4727, %v4766
      %4768 = vrot.lane.b32.xlu0 %v4738, 95
      %v4769 = vpop.permute.xlu0 %4768
      %4770 = vrot.lane.b32.xlu0 %v4745, 95
      %v4771 = vpop.permute.xlu0 %4770
      %4772 = vrot.lane.b32.xlu0 %v4753, 95
      %v4773 = vpop.permute.xlu0 %4772
      %4774 = vrot.lane.b32.xlu0 %v4760, 95
      %v4775 = vpop.permute.xlu0 %4774
      %4776 = vrot.lane.b32.xlu0 %v4767, 95
      %v4777 = vpop.permute.xlu0 %4776
      %v4778 = vrot.slane %v4769, 4
      %v4779 = vrot.slane %v4771, 4
      %v4780 = vrot.slane %v4773, 4
      %v4781 = vrot.slane %v4775, 4
      %v4782 = vrot.slane %v4777, 4
      %v4783 = vsel %vm1504, %v4778, %v4779
      %v4784 = vsel %vm1502, %v4769, %v4783
      %v4785 = vsel %vm1504, %v4779, %v4780
      %v4786 = vsel %vm1502, %v4771, %v4785
      %v4787 = vsel %vm1504, %v4780, %v4781
      %v4788 = vsel %vm1502, %v4773, %v4787
      %v4789 = vsel %vm1504, %v4781, %v4782
      %v4790 = vsel %vm1502, %v4775, %v4789
      %4795 = vst [vmem:[#allocation5 + $0x80] sm:$0x33] %v4784
      %4796 = vst [vmem:[#allocation5 + $0x88] sm:$0x33] %v4786
      %4797 = vst [vmem:[#allocation5 + $0x90] sm:$0x33] %v4788
      %4798 = vst [vmem:[#allocation5 + $0x98] sm:$0x33] %v4790
      %v4799 = vld [vmem:[#allocation5] sm:$0xff]
      %v4800 = vld [vmem:[#allocation5 + $0x8] sm:$0xff]
      %v4801 = vld [vmem:[#allocation5 + $0x10] sm:$0xff]
      %v4802 = vld [vmem:[#allocation5 + $0x18] sm:$0xff]
      %v4803 = vld [vmem:[#allocation5 + $0x20] sm:$0xff]
      %v4804 = vld [vmem:[#allocation5 + $0x28] sm:$0xff]
      %v4805 = vld [vmem:[#allocation5 + $0x30] sm:$0xff]
      %v4806 = vld [vmem:[#allocation5 + $0x38] sm:$0xff]
      %v4807 = vld [vmem:[#allocation5 + $0x40] sm:$0xff]
      %v4808 = vld [vmem:[#allocation5 + $0x48] sm:$0xff]
      %v4809 = vld [vmem:[#allocation5 + $0x50] sm:$0xff]
      %v4810 = vld [vmem:[#allocation5 + $0x58] sm:$0xff]
      %v4811 = vld [vmem:[#allocation5 + $0x60] sm:$0xff]
      %v4812 = vld [vmem:[#allocation5 + $0x68] sm:$0xff]
      %v4813 = vld [vmem:[#allocation5 + $0x70] sm:$0xff]
      %v4814 = vld [vmem:[#allocation5 + $0x78] sm:$0xff]
      %v4815 = vld [vmem:[#allocation5 + $0x80] sm:$0x33]
      %v4816 = vld [vmem:[#allocation5 + $0x88] sm:$0x33]
      %v4817 = vld [vmem:[#allocation5 + $0x90] sm:$0x33]
      %v4818 = vld [vmem:[#allocation5 + $0x98] sm:$0x33]
      %4820 = vset.pattern.permute.xlu0 0
      %4821 = vperm.xlu0 %4820, %v3151
      %v4822 = vpop.permute.xlu0 %4821
      %v4844 = vunpack.c.l.b16 %v4799
      %v4845 = vunpack.c.h.b16 %v4799
      %v4846 = vunpack.c.l.b16 %v4800
      %v4847 = vunpack.c.h.b16 %v4800
      %v4848 = vunpack.c.l.b16 %v4801
      %v4849 = vunpack.c.h.b16 %v4801
      %v4850 = vunpack.c.l.b16 %v4802
      %v4851 = vunpack.c.h.b16 %v4802
      %v4852 = vunpack.c.l.b16 %v4803
      %v4853 = vunpack.c.h.b16 %v4803
      %v4854 = vunpack.c.l.b16 %v4804
      %v4855 = vunpack.c.h.b16 %v4804
      %v4856 = vunpack.c.l.b16 %v4805
      %v4857 = vunpack.c.h.b16 %v4805
      %v4858 = vunpack.c.l.b16 %v4806
      %v4859 = vunpack.c.h.b16 %v4806
      %v4860 = vunpack.c.l.b16 %v4807
      %v4861 = vunpack.c.h.b16 %v4807
      %v4862 = vunpack.c.l.b16 %v4808
      %v4863 = vunpack.c.h.b16 %v4808
      %v4864 = vunpack.c.l.b16 %v4809
      %v4865 = vunpack.c.h.b16 %v4809
      %v4866 = vunpack.c.l.b16 %v4810
      %v4867 = vunpack.c.h.b16 %v4810
      %v4868 = vunpack.c.l.b16 %v4811
      %v4869 = vunpack.c.h.b16 %v4811
      %v4870 = vunpack.c.l.b16 %v4812
      %v4871 = vunpack.c.h.b16 %v4812
      %v4872 = vunpack.c.l.b16 %v4813
      %v4873 = vunpack.c.h.b16 %v4813
      %v4874 = vunpack.c.l.b16 %v4814
      %v4875 = vunpack.c.h.b16 %v4814
      %v4876 = vunpack.c.l.b16 %v4815
      %v4877 = vunpack.c.h.b16 %v4815
      %v4878 = vunpack.c.l.b16 %v4816
      %v4879 = vunpack.c.h.b16 %v4816
      %v4880 = vunpack.c.l.b16 %v4817
      %v4881 = vunpack.c.h.b16 %v4817
      %v4882 = vunpack.c.l.b16 %v4818
      %v4883 = vunpack.c.h.b16 %v4818
      %v4884 = vpack.c.b16 %v4852, %v4844
      %v4885 = vpack.c.b16 %v4853, %v4845
      %v4886 = vpack.c.b16 %v4854, %v4846
      %v4887 = vpack.c.b16 %v4855, %v4847
      %v4888 = vpack.c.b16 %v4856, %v4848
      %v4889 = vpack.c.b16 %v4857, %v4849
      %v4890 = vpack.c.b16 %v4858, %v4850
      %v4891 = vpack.c.b16 %v4859, %v4851
      %v4892 = vpack.c.b16 %v4868, %v4860
      %v4893 = vpack.c.b16 %v4869, %v4861
      %v4894 = vpack.c.b16 %v4870, %v4862
      %v4895 = vpack.c.b16 %v4871, %v4863
      %v4896 = vpack.c.b16 %v4872, %v4864
      %v4897 = vpack.c.b16 %v4873, %v4865
      %v4898 = vpack.c.b16 %v4874, %v4866
      %v4899 = vpack.c.b16 %v4875, %v4867
      %v4900 = vpack.c.b16 %v4876, %v4876
      %v4901 = vpack.c.b16 %v4877, %v4877
      %v4902 = vpack.c.b16 %v4878, %v4878
      %v4903 = vpack.c.b16 %v4879, %v4879
      %v4904 = vpack.c.b16 %v4880, %v4880
      %v4905 = vpack.c.b16 %v4881, %v4881
      %v4906 = vpack.c.b16 %v4882, %v4882
      %v4907 = vpack.c.b16 %v4883, %v4883
      %vm4924 = vcmask 293888
      %v4926 = vsel %vm4924, %v3150, 0
      %vm4928 = vcmask 1041408
      %v4930 = vsel %vm4928, %v4900, 0
      %v4933 = vsel %vm4928, %v4901, 0
      %v4936 = vsel %vm4928, %v4902, 0
      %v4939 = vsel %vm4928, %v4903, 0
      %v4942 = vsel %vm4928, %v4904, 0
      %v4945 = vsel %vm4928, %v4905, 0
      %v4948 = vsel %vm4928, %v4906, 0
      %v4951 = vsel %vm4928, %v4907, 0
      %4953 = vmatprep.subr.bf16.mxu0 %v4885
      %4954 = vmatpush1.bf16.msra.mxu0 %v4884
      %4955 = vmatprep.subr.bf16.mxu0 %v4893
      %4956 = vmatpush1.bf16.msra.mxu0 %v4892
      %4957 = vmatprep.subr.bf16.mxu0 %v4933
      %4958 = vmatpush1.bf16.msra.mxu0 %v4930
      %4959 = vmatprep.subr.bf16.mxu0 0
      %4960 = vmatpush1.bf16.msra.mxu0 0
      %4961 = vmatprep.subr.bf16.mxu0 0
      %4962 = vmatpush1.bf16.msra.mxu0 0
      %4963 = vmatprep.subr.bf16.mxu0 0
      %4964 = vmatpush1.bf16.msra.mxu0 0
      %4965 = vmatprep.subr.bf16.mxu0 0
      %4966 = vmatpush1.bf16.msra.mxu0 0
      %4967 = vmatprep.subr.bf16.mxu0 0
      %4968 = vmatpush1.bf16.msra.mxu0 0
      %4969 = vmatprep.subr.bf16.mxu0 0
      %4970 = vmatpush1.bf16.msra.mxu0 0
      %4971 = vmatprep.subr.bf16.mxu0 0
      %4972 = vmatpush1.bf16.msra.mxu0 0
      %4973 = vmatprep.subr.bf16.mxu0 0
      %4974 = vmatpush1.bf16.msra.mxu0 0
      %4975 = vmatprep.subr.bf16.mxu0 0
      %4976 = vmatpush1.bf16.msra.mxu0 0
      %4977 = vmatprep.subr.bf16.mxu0 0
      %4978 = vmatpush1.bf16.msra.mxu0 0
      %4979 = vmatprep.subr.bf16.mxu0 0
      %4980 = vmatpush1.bf16.msra.mxu0 0
      %4981 = vmatprep.subr.bf16.mxu0 0
      %4982 = vmatpush1.bf16.msra.mxu0 0
      %4983 = vmatprep.subr.bf16.mxu0 0
      %4984 = vmatpush1.bf16.msra.mxu0 0
      %4985 = vmatprep.mubr.bf16.mxu0 0
      %4986 = vmatmul.mubr.bf16.gmra.mrb[0].mxu0 %v4926
      %v4987 = vpop.f32.mrb[0].mxu0
      %v4988 = vadd.f32 %v4822, %v4987
      %v4989 = vpop.f32.mrb[0].mxu0
      %v4990 = vadd.f32 %v4822, %v4989
      %v4991 = vpop.f32.mrb[0].mxu0
      %v4992 = vpop.f32.mrb[0].mxu0
      %4993 = vdwg.mxu0
      %4994 = vmatprep.subr.bf16.mxu0 %v4887
      %4995 = vmatpush1.bf16.msra.mxu0 %v4886
      %4996 = vmatprep.subr.bf16.mxu0 %v4895
      %4997 = vmatpush1.bf16.msra.mxu0 %v4894
      %4998 = vmatprep.subr.bf16.mxu0 %v4939
      %4999 = vmatpush1.bf16.msra.mxu0 %v4936
      %5000 = vmatprep.subr.bf16.mxu0 0
      %5001 = vmatpush1.bf16.msra.mxu0 0
      %5002 = vmatprep.subr.bf16.mxu0 0
      %5003 = vmatpush1.bf16.msra.mxu0 0
      %5004 = vmatprep.subr.bf16.mxu0 0
      %5005 = vmatpush1.bf16.msra.mxu0 0
      %5006 = vmatprep.subr.bf16.mxu0 0
      %5007 = vmatpush1.bf16.msra.mxu0 0
      %5008 = vmatprep.subr.bf16.mxu0 0
      %5009 = vmatpush1.bf16.msra.mxu0 0
      %5010 = vmatprep.subr.bf16.mxu0 0
      %5011 = vmatpush1.bf16.msra.mxu0 0
      %5012 = vmatprep.subr.bf16.mxu0 0
      %5013 = vmatpush1.bf16.msra.mxu0 0
      %5014 = vmatprep.subr.bf16.mxu0 0
      %5015 = vmatpush1.bf16.msra.mxu0 0
      %5016 = vmatprep.subr.bf16.mxu0 0
      %5017 = vmatpush1.bf16.msra.mxu0 0
      %5018 = vmatprep.subr.bf16.mxu0 0
      %5019 = vmatpush1.bf16.msra.mxu0 0
      %5020 = vmatprep.subr.bf16.mxu0 0
      %5021 = vmatpush1.bf16.msra.mxu0 0
      %5022 = vmatprep.subr.bf16.mxu0 0
      %5023 = vmatpush1.bf16.msra.mxu0 0
      %5024 = vmatprep.subr.bf16.mxu0 0
      %5025 = vmatpush1.bf16.msra.mxu0 0
      %5026 = vmatprep.mubr.bf16.mxu0 0
      %5027 = vmatmul.mubr.bf16.gmra.mrb[0].mxu0 %v4926
      %v5028 = vpop.f32.mrb[0].mxu0
      %v5029 = vadd.f32 %v4822, %v5028
      %v5030 = vpop.f32.mrb[0].mxu0
      %v5031 = vadd.f32 %v4822, %v5030
      %v5032 = vpop.f32.mrb[0].mxu0
      %v5033 = vpop.f32.mrb[0].mxu0
      %5034 = vdwg.mxu0
      %5035 = vmatprep.subr.bf16.mxu0 %v4889
      %5036 = vmatpush1.bf16.msra.mxu0 %v4888
      %5037 = vmatprep.subr.bf16.mxu0 %v4897
      %5038 = vmatpush1.bf16.msra.mxu0 %v4896
      %5039 = vmatprep.subr.bf16.mxu0 %v4945
      %5040 = vmatpush1.bf16.msra.mxu0 %v4942
      %5041 = vmatprep.subr.bf16.mxu0 0
      %5042 = vmatpush1.bf16.msra.mxu0 0
      %5043 = vmatprep.subr.bf16.mxu0 0
      %5044 = vmatpush1.bf16.msra.mxu0 0
      %5045 = vmatprep.subr.bf16.mxu0 0
      %5046 = vmatpush1.bf16.msra.mxu0 0
      %5047 = vmatprep.subr.bf16.mxu0 0
      %5048 = vmatpush1.bf16.msra.mxu0 0
      %5049 = vmatprep.subr.bf16.mxu0 0
      %5050 = vmatpush1.bf16.msra.mxu0 0
      %5051 = vmatprep.subr.bf16.mxu0 0
      %5052 = vmatpush1.bf16.msra.mxu0 0
      %5053 = vmatprep.subr.bf16.mxu0 0
      %5054 = vmatpush1.bf16.msra.mxu0 0
      %5055 = vmatprep.subr.bf16.mxu0 0
      %5056 = vmatpush1.bf16.msra.mxu0 0
      %5057 = vmatprep.subr.bf16.mxu0 0
      %5058 = vmatpush1.bf16.msra.mxu0 0
      %5059 = vmatprep.subr.bf16.mxu0 0
      %5060 = vmatpush1.bf16.msra.mxu0 0
      %5061 = vmatprep.subr.bf16.mxu0 0
      %5062 = vmatpush1.bf16.msra.mxu0 0
      %5063 = vmatprep.subr.bf16.mxu0 0
      %5064 = vmatpush1.bf16.msra.mxu0 0
      %5065 = vmatprep.subr.bf16.mxu0 0
      %5066 = vmatpush1.bf16.msra.mxu0 0
      %5067 = vmatprep.mubr.bf16.mxu0 0
      %5068 = vmatmul.mubr.bf16.gmra.mrb[0].mxu0 %v4926
      %v5069 = vpop.f32.mrb[0].mxu0
      %v5070 = vadd.f32 %v4822, %v5069
      %v5071 = vpop.f32.mrb[0].mxu0
      %v5072 = vadd.f32 %v4822, %v5071
      %v5073 = vpop.f32.mrb[0].mxu0
      %v5074 = vpop.f32.mrb[0].mxu0
      %5075 = vdwg.mxu0
      %5076 = vmatprep.subr.bf16.mxu0 %v4891
      %5077 = vmatpush1.bf16.msra.mxu0 %v4890
      %5078 = vmatprep.subr.bf16.mxu0 %v4899
      %5079 = vmatpush1.bf16.msra.mxu0 %v4898
      %5080 = vmatprep.subr.bf16.mxu0 %v4951
      %5081 = vmatpush1.bf16.msra.mxu0 %v4948
      %5082 = vmatprep.subr.bf16.mxu0 0
      %5083 = vmatpush1.bf16.msra.mxu0 0
      %5084 = vmatprep.subr.bf16.mxu0 0
      %5085 = vmatpush1.bf16.msra.mxu0 0
      %5086 = vmatprep.subr.bf16.mxu0 0
      %5087 = vmatpush1.bf16.msra.mxu0 0
      %5088 = vmatprep.subr.bf16.mxu0 0
      %5089 = vmatpush1.bf16.msra.mxu0 0
      %5090 = vmatprep.subr.bf16.mxu0 0
      %5091 = vmatpush1.bf16.msra.mxu0 0
      %5092 = vmatprep.subr.bf16.mxu0 0
      %5093 = vmatpush1.bf16.msra.mxu0 0
      %5094 = vmatprep.subr.bf16.mxu0 0
      %5095 = vmatpush1.bf16.msra.mxu0 0
      %5096 = vmatprep.subr.bf16.mxu0 0
      %5097 = vmatpush1.bf16.msra.mxu0 0
      %5098 = vmatprep.subr.bf16.mxu0 0
      %5099 = vmatpush1.bf16.msra.mxu0 0
      %5100 = vmatprep.subr.bf16.mxu0 0
      %5101 = vmatpush1.bf16.msra.mxu0 0
      %5102 = vmatprep.subr.bf16.mxu0 0
      %5103 = vmatpush1.bf16.msra.mxu0 0
      %5104 = vmatprep.subr.bf16.mxu0 0
      %5105 = vmatpush1.bf16.msra.mxu0 0
      %5106 = vmatprep.subr.bf16.mxu0 0
      %5107 = vmatpush1.bf16.msra.mxu0 0
      %5108 = vmatprep.mubr.bf16.mxu0 0
      %5109 = vmatmul.mubr.bf16.gmra.mrb[0].mxu0 %v4926
      %v5110 = vpop.f32.mrb[0].mxu0
      %v5111 = vadd.f32 %v4822, %v5110
      %v5112 = vpop.f32.mrb[0].mxu0
      %v5113 = vadd.f32 %v4822, %v5112
      %v5114 = vpop.f32.mrb[0].mxu0
      %v5115 = vpop.f32.mrb[0].mxu0
      %5116 = vdwg.mxu0
      %v5117 = vmul.f32 %v4988, 0.2
      %v5118 = vmul.f32 %v4990, 0.2
      %v5119 = vmul.f32 %v5029, 0.2
      %v5120 = vmul.f32 %v5031, 0.2
      %v5121 = vmul.f32 %v5070, 0.2
      %v5122 = vmul.f32 %v5072, 0.2
      %v5123 = vmul.f32 %v5111, 0.2
      %v5124 = vmul.f32 %v5113, 0.2
      %v5125 = vmax.f32 %v4988, %v5117
      %v5126 = vmax.f32 %v4990, %v5118
      %v5127 = vmax.f32 %v5029, %v5119
      %v5128 = vmax.f32 %v5031, %v5120
      %v5129 = vmax.f32 %v5070, %v5121
      %v5130 = vmax.f32 %v5072, %v5122
      %v5131 = vmax.f32 %v5111, %v5123
      %v5132 = vmax.f32 %v5113, %v5124
      %5133 = vst [vmem:[%s325] sm:$0xff] %v5125
      %5134 = vst [vmem:[%s325 + $0x8] sm:$0xff] %v5126
      %5135 = vst [vmem:[%s325 + $0x10] sm:$0xff] %v5127
      %5136 = vst [vmem:[%s325 + $0x18] sm:$0xff] %v5128
      %5137 = vst [vmem:[%s325 + $0x20] sm:$0xff] %v5129
      %5138 = vst [vmem:[%s325 + $0x28] sm:$0xff] %v5130
      %5139 = vst [vmem:[%s325 + $0x30] sm:$0xff] %v5131
      %5140 = vst [vmem:[%s325 + $0x38] sm:$0xff] %v5132
      %p5141 = scmp.lt.s32.totalorder %s19, 1
      %s5142 = scalar_select %p5141, %s19, 1
      %s5143 = smul.addr %s5142, 8
      %s5144 = smul.addr %s5143, 8
      %s5145 = scalar_lea.vmem %s8, %s5144
      // Predicated region
      $region53: #{up_forward.1} parent=51 // pred_check
        %p5146 = pneg %p215
      $region54: #{up_forward.1} parent=51 // pred_check_branch
        %5148 = sbr.rel (%p5146) target = $region56
      $region55: #{up_forward.1} parent=51 // pred_region
        _
      $region56: #{up_forward.1} parent=51 // pred_fallthru
        _
    $region52: #{up_forward.1} parent=5 // pred_fallthru
      _
    %p5149 = scmp.le.s32.totalorder 2, %s14
    // Predicated region
    $region57: #{up_forward.1} parent=5 // pred_check
      %p5150 = pneg %p5149
    $region58: #{up_forward.1} parent=5 // pred_check_branch
      %5152 = sbr.rel (%p5150) target = $region60
    $region59: #{up_forward.1} parent=5 // pred_region
      %s5153 = ssub.s32 %s14, 2
      // Predicated region
      $region61: #{up_forward.1} parent=59 // pred_check
        %p5154 = pneg %p221
      $region62: #{up_forward.1} parent=59 // pred_check_branch
        %5156 = sbr.rel (%p5154) target = $region64
      $region63: #{up_forward.1} parent=59 // pred_region
        %p5157 = scmp.lt.s32.totalorder %s20, 1
        %s5158 = scalar_select %p5157, %s20, 1
        %s5159 = smul.addr %s5158, 8
        %s5160 = smul.addr %s5159, 8
        %s5161 = scalar_lea.vmem %s8, %s5160
      $region64: #{up_forward.1} parent=59 // pred_fallthru
        _
    $region60: #{up_forward.1} parent=5 // pred_fallthru
      _
  $region6: #{up_forward.1} parent=0 // loop_footer
    %s18 = sadd.s32 1, %s14
  $region7: #{up_forward.1} parent=0 // loop_footer_branch
    %13 = sbr.rel target = $region3
  $region8: #{up_forward.1} parent=0 // loop_exit
    _

</llo_original>
